<compile_context>
chip_gen: v6e
topology: v6e:2x2x1
jax: 0.10.0
libtpu: 0.0.40
codegen_flags: <defaults>
</compile_context>

<pallas_src>
import functools

import jax
import jax.numpy as jnp
from jax.experimental import pallas as pl
from jax.experimental.pallas import tpu as pltpu


# ----------------------------------------------------------------------------
# Small shapes consistent with the module
# ----------------------------------------------------------------------------
B = 2            # batch
N = 128          # query points per batch element
C_DIM = 32       # latent plane feature channels (module default is 128; kept small)
OUT_DIM = 1      # fc output dimension
RESO = 16        # plane feature resolution (RESO x RESO), power of two
PADDING = 0.1    # ONet unit-cube padding
# plane -> (p-dim mapped to grid x / W index, p-dim mapped to grid y / H index)
PLANES = (("xz", (0, 2)), ("xy", (0, 1)), ("yz", (1, 2)))
_INV_SCALE = 1.0 / (1.0 + PADDING + 1e-3)          # normalize_coordinate scale (10e-4 in module)
_CLIP_HI = 1.0 - 1e-3                              # module's outlier clamp value
_HI = jax.lax.Precision.HIGHEST                    # full f32 MXU precision


# ----------------------------------------------------------------------------
# Kernel: one (batch) grid step = sample all 3 planes for all N points + fc
# ----------------------------------------------------------------------------
def _fc_decoder_kernel(pt_ref, fxz_ref, fxy_ref, fyz_ref,
                       wc_ref, wp_ref, b_ref, out_ref, *, reso):
    pt = pt_ref[...]                                         # (3, N)  points, dim-major
    n = pt.shape[1]
    rr = reso * reso

    # col / row index planes of the flattened (H*W) axis, computed once, shared by planes.
    # reso is a power of two so kf * (1/reso) is exact; avoids integer div/rem on the VPU.
    kf = jax.lax.broadcasted_iota(jnp.int32, (rr, n), 0).astype(jnp.float32)
    rowf = jnp.floor(kf * (1.0 / reso))                      # (rr, n)  y index  (H)
    colf = kf - rowf * reso                                  # (rr, n)  x index  (W)

    # normalize_coordinate: scale to (0,1), clamp outliers (module), then to pixel coords
    # (grid_sample align_corners=True): x = u * (R-1), y = v * (R-1)
    xyz = jnp.clip(pt * _INV_SCALE + 0.5, 0.0, _CLIP_HI) * (reso - 1)      # (3, N)

    def plane_weights(d0, d1):
        # dense (rr, n) bilinear weight matrix: separable "tent" = exactly the
        # 4-corner bilinear weights of grid_sample(bilinear, border, align_corners=True)
        wx = jnp.maximum(1.0 - jnp.abs(xyz[d0:d0 + 1, :] - colf), 0.0)     # (rr, n)
        wy = jnp.maximum(1.0 - jnp.abs(xyz[d1:d1 + 1, :] - rowf), 0.0)     # (rr, n)
        return wx * wy

    # per-point sampled features (C, N), summed over the three planes (MXU)
    c_feat = jnp.dot(fxz_ref[...], plane_weights(0, 2),
                     precision=_HI, preferred_element_type=jnp.float32)
    c_feat += jnp.dot(fxy_ref[...], plane_weights(0, 1),
                      precision=_HI, preferred_element_type=jnp.float32)
    c_feat += jnp.dot(fyz_ref[...], plane_weights(1, 2),
                      precision=_HI, preferred_element_type=jnp.float32)

    # fc(cat(c, p)) == c @ w_c + p @ w_p + b, with OUT_DIM == 1:
    #   c part: broadcast-mul + sublane reduce -> lane-dense (1, N) row
    #   p part: 3 broadcast FMAs on the VPU
    out = jnp.sum(c_feat * wc_ref[...], axis=0, keepdims=True)             # (1, N)
    wp = wp_ref[...]                                                       # (3, 1)
    out = out + pt[0:1, :] * wp[0:1, :] + pt[1:2, :] * wp[1:2, :] + pt[2:3, :] * wp[2:3, :]
    out_ref[...] = out + b_ref[...]                                        # (1, N)


# ----------------------------------------------------------------------------
# Wrapper
# ----------------------------------------------------------------------------
def fc_decoder_forward(p, c_plane, params):
    """p: (B, N, 3); c_plane: dict plane -> (B, C_DIM, RESO, RESO).  Returns (B, N)."""
    fc_w, fc_b = params                                      # (C_DIM + 3, OUT_DIM), (1, OUT_DIM)
    w_c, w_p = fc_w[:C_DIM], fc_w[C_DIM:]                    # (C_DIM, 1), (3, 1)
    # layout plumbing only (no compute hoisted out of the kernel):
    #   points dim-major (tiny transpose), plane features channel-major (free reshape).
    p_t = jnp.transpose(p, (0, 2, 1))                                       # (B, 3, N)
    feats = [c_plane[name].reshape(B, C_DIM, RESO * RESO) for name, _ in PLANES]

    full = lambda shape: pl.BlockSpec(shape, lambda b: (0,) * len(shape))
    batched = lambda shape: pl.BlockSpec((None,) + shape, lambda b: (b,) + (0,) * len(shape))
    kernel = functools.partial(_fc_decoder_kernel, reso=RESO)

    out = pl.pallas_call(
        kernel,
        out_shape=jax.ShapeDtypeStruct((B, 1, N), jnp.float32),
        grid=(B,),
        in_specs=[
            batched((3, N)),
            batched((C_DIM, RESO * RESO)),
            batched((C_DIM, RESO * RESO)),
            batched((C_DIM, RESO * RESO)),
            full((C_DIM, OUT_DIM)), full((3, OUT_DIM)), full((1, OUT_DIM)),
        ],
        out_specs=batched((1, N)),
        compiler_params=pltpu.CompilerParams(dimension_semantics=("parallel",)),
    )(p_t, feats[0], feats[1], feats[2], w_c, w_p, fc_b)
    return out[:, 0, :]                                      # (B, N)  == .squeeze(-1)


# ----------------------------------------------------------------------------
# Pure-JAX reference (gather-based grid_sample) for the correctness check
# ----------------------------------------------------------------------------
def _reference_forward(p, c_plane, params):
    fc_w, fc_b = params

    def sample_plane(feat, u, v):
        # feat: (C, R, R); u, v: (N,) in [0, 1); bilinear, border, align_corners=True
        x = u * (RESO - 1)
        y = v * (RESO - 1)
        x0 = jnp.clip(jnp.floor(x), 0, RESO - 2).astype(jnp.int32)
        y0 = jnp.clip(jnp.floor(y), 0, RESO - 2).astype(jnp.int32)
        fx = x - x0
        fy = y - y0
        g = lambda yy, xx: feat[:, yy, xx]                   # (C, N)
        return (g(y0, x0) * (1 - fy) * (1 - fx) + g(y0, x0 + 1) * (1 - fy) * fx
                + g(y0 + 1, x0) * fy * (1 - fx) + g(y0 + 1, x0 + 1) * fy * fx)

    outs = []
    for b in range(B):
        c = 0.0
        for name, (d0, d1) in PLANES:
            u = jnp.clip(p[b, :, d0] * _INV_SCALE + 0.5, 0.0, _CLIP_HI)
            v = jnp.clip(p[b, :, d1] * _INV_SCALE + 0.5, 0.0, _CLIP_HI)
            c = c + sample_plane(c_plane[name][b], u, v)     # (C, N)
        x = jnp.concatenate([c.T, p[b]], axis=-1)            # (N, C_DIM + 3)  == cat(c, p)
        outs.append(jnp.dot(x, fc_w, precision=_HI) + fc_b)
    return jnp.stack(outs)[..., 0]                           # (B, N)


# ----------------------------------------------------------------------------
if __name__ == "__main__":
    key = jax.random.PRNGKey(0)
    k_p, k_xz, k_xy, k_yz, k_w, k_b = jax.random.split(key, 6)

    # query points roughly in the padded unit cube, as in ONet / GIGA
    p = jax.random.uniform(k_p, (B, N, 3), jnp.float32, -0.55, 0.55)
    c_plane = {
        "xz": jax.random.normal(k_xz, (B, C_DIM, RESO, RESO), jnp.float32),
        "xy": jax.random.normal(k_xy, (B, C_DIM, RESO, RESO), jnp.float32),
        "yz": jax.random.normal(k_yz, (B, C_DIM, RESO, RESO), jnp.float32),
    }
    scale = 1.0 / jnp.sqrt(jnp.float32(C_DIM + 3))
    fc_w = jax.random.uniform(k_w, (C_DIM + 3, OUT_DIM), jnp.float32, -scale, scale)
    fc_b = jax.random.uniform(k_b, (1, OUT_DIM), jnp.float32, -scale, scale)
    params = (fc_w, fc_b)

    out = fc_decoder_forward(p, c_plane, params)
    jax.block_until_ready(out)

    assert out.shape == (B, N)
    ref = _reference_forward(p, c_plane, params)
    # f32 everywhere with HIGHEST matmul precision -> tight tolerance
    err = float(jnp.max(jnp.abs(out - ref)))
    assert jnp.allclose(out, ref, atol=2e-4, rtol=1e-4), err

    print("KERNEL_OK")
</pallas_src>

<mosaic_0001>
module attributes {stable_mosaic.version = 11 : i64} {
  func.func @_fc_decoder_kernel(%arg0: i32, %arg1: memref<1x3x128xf32, #tpu.memory_space<vmem>>, %arg2: memref<1x32x256xf32, #tpu.memory_space<vmem>>, %arg3: memref<1x32x256xf32, #tpu.memory_space<vmem>>, %arg4: memref<1x32x256xf32, #tpu.memory_space<vmem>>, %arg5: memref<32x1xf32, #tpu.memory_space<vmem>>, %arg6: memref<3x1xf32, #tpu.memory_space<vmem>>, %arg7: memref<1x1xf32, #tpu.memory_space<vmem>>, %arg8: memref<1x1x128xf32, #tpu.memory_space<vmem>>) attributes {dimension_semantics = [#tpu.dimension_semantics<parallel>], iteration_bounds = array<i64: 2>, scalar_prefetch = 0 : i64, scratch_operands = 0 : i64, tpu.core_type = #tpu.core_type<tc>, window_params = [{transform_indices = @transform_0, window_bounds = array<i64: 1, 3, 128>}, {transform_indices = @transform_1, window_bounds = array<i64: 1, 32, 256>}, {transform_indices = @transform_2, window_bounds = array<i64: 1, 32, 256>}, {transform_indices = @transform_3, window_bounds = array<i64: 1, 32, 256>}, {pipeline_mode = #tpu.pipeline_mode<synchronous>, transform_indices = @transform_4, window_bounds = array<i64: 32, 1>}, {pipeline_mode = #tpu.pipeline_mode<synchronous>, transform_indices = @transform_5, window_bounds = array<i64: 3, 1>}, {pipeline_mode = #tpu.pipeline_mode<synchronous>, transform_indices = @transform_6, window_bounds = array<i64: 1, 1>}, {transform_indices = @transform_7, window_bounds = array<i64: 1, 1, 128>}]} {
    %c0 = arith.constant 0 : index
    %c0_0 = arith.constant 0 : index
    %c0_1 = arith.constant 0 : index
    %0 = vector.load %arg1[%c0, %c0_0, %c0_1] : memref<1x3x128xf32, #tpu.memory_space<vmem>>, vector<1x3x128xf32>
    %1 = vector.shape_cast %0 : vector<1x3x128xf32> to vector<3x128xf32>
    %2 = tpu.iota {dimensions = array<i32: 0>} : vector<256x128xi32>
    %3 = arith.sitofp %2 : vector<256x128xi32> to vector<256x128xf32>
    %cst = arith.constant 6.250000e-02 : f32
    %4 = vector.broadcast %cst : f32 to vector<256x128xf32>
    %5 = arith.mulf %3, %4 : vector<256x128xf32>
    %6 = math.floor %5 : vector<256x128xf32>
    %cst_2 = arith.constant 1.600000e+01 : f32
    %7 = vector.broadcast %cst_2 : f32 to vector<256x128xf32>
    %8 = arith.mulf %6, %7 : vector<256x128xf32>
    %9 = arith.subf %3, %8 : vector<256x128xf32>
    %cst_3 = arith.constant 0.908265233 : f32
    %10 = vector.broadcast %cst_3 : f32 to vector<3x128xf32>
    %11 = arith.mulf %1, %10 : vector<3x128xf32>
    %cst_4 = arith.constant 5.000000e-01 : f32
    %12 = vector.broadcast %cst_4 : f32 to vector<3x128xf32>
    %13 = arith.addf %11, %12 : vector<3x128xf32>
    %cst_5 = arith.constant 0.000000e+00 : f32
    %cst_6 = arith.constant 9.990000e-01 : f32
    %14 = vector.broadcast %cst_5 : f32 to vector<3x128xf32>
    %15 = arith.maximumf %14, %13 : vector<3x128xf32>
    %16 = vector.broadcast %cst_6 : f32 to vector<3x128xf32>
    %17 = arith.minimumf %16, %15 : vector<3x128xf32>
    %cst_7 = arith.constant 1.500000e+01 : f32
    %18 = vector.broadcast %cst_7 : f32 to vector<3x128xf32>
    %19 = arith.mulf %17, %18 : vector<3x128xf32>
    %c0_8 = arith.constant 0 : index
    %c0_9 = arith.constant 0 : index
    %c0_10 = arith.constant 0 : index
    %20 = vector.load %arg2[%c0_8, %c0_9, %c0_10] : memref<1x32x256xf32, #tpu.memory_space<vmem>>, vector<1x32x256xf32>
    %21 = vector.shape_cast %20 : vector<1x32x256xf32> to vector<32x256xf32>
    %22 = vector.extract_strided_slice %19 {offsets = [0, 0], sizes = [1, 128], strides = [1, 1]} : vector<3x128xf32> to vector<1x128xf32>
    %23 = vector.broadcast %22 : vector<1x128xf32> to vector<256x128xf32>
    %24 = arith.subf %23, %9 : vector<256x128xf32>
    %25 = math.absf %24 : vector<256x128xf32>
    %cst_11 = arith.constant 1.000000e+00 : f32
    %26 = vector.broadcast %cst_11 : f32 to vector<256x128xf32>
    %27 = arith.subf %26, %25 : vector<256x128xf32>
    %cst_12 = arith.constant 0.000000e+00 : f32
    %28 = vector.broadcast %cst_12 : f32 to vector<256x128xf32>
    %29 = arith.maximumf %27, %28 : vector<256x128xf32>
    %30 = vector.extract_strided_slice %19 {offsets = [2, 0], sizes = [1, 128], strides = [1, 1]} : vector<3x128xf32> to vector<1x128xf32>
    %31 = vector.broadcast %30 : vector<1x128xf32> to vector<256x128xf32>
    %32 = arith.subf %31, %6 : vector<256x128xf32>
    %33 = math.absf %32 : vector<256x128xf32>
    %cst_13 = arith.constant 1.000000e+00 : f32
    %34 = vector.broadcast %cst_13 : f32 to vector<256x128xf32>
    %35 = arith.subf %34, %33 : vector<256x128xf32>
    %cst_14 = arith.constant 0.000000e+00 : f32
    %36 = vector.broadcast %cst_14 : f32 to vector<256x128xf32>
    %37 = arith.maximumf %35, %36 : vector<256x128xf32>
    %38 = arith.mulf %29, %37 : vector<256x128xf32>
    %cst_15 = arith.constant dense<0.000000e+00> : vector<32x128xf32>
    %39 = tpu.matmul %21, %38, %cst_15 {dimension_numbers = #tpu.dot_dimension_numbers<[1], [0], [0], [1], [0, 0, 1, 1], [], []>, precision = #tpu.contract_precision<fp32>} : vector<32x256xf32>, vector<256x128xf32>, vector<32x128xf32> -> vector<32x128xf32>
    %c0_16 = arith.constant 0 : index
    %c0_17 = arith.constant 0 : index
    %c0_18 = arith.constant 0 : index
    %40 = vector.load %arg3[%c0_16, %c0_17, %c0_18] : memref<1x32x256xf32, #tpu.memory_space<vmem>>, vector<1x32x256xf32>
    %41 = vector.shape_cast %40 : vector<1x32x256xf32> to vector<32x256xf32>
    %42 = vector.extract_strided_slice %19 {offsets = [0, 0], sizes = [1, 128], strides = [1, 1]} : vector<3x128xf32> to vector<1x128xf32>
    %43 = vector.broadcast %42 : vector<1x128xf32> to vector<256x128xf32>
    %44 = arith.subf %43, %9 : vector<256x128xf32>
    %45 = math.absf %44 : vector<256x128xf32>
    %cst_19 = arith.constant 1.000000e+00 : f32
    %46 = vector.broadcast %cst_19 : f32 to vector<256x128xf32>
    %47 = arith.subf %46, %45 : vector<256x128xf32>
    %cst_20 = arith.constant 0.000000e+00 : f32
    %48 = vector.broadcast %cst_20 : f32 to vector<256x128xf32>
    %49 = arith.maximumf %47, %48 : vector<256x128xf32>
    %50 = vector.extract_strided_slice %19 {offsets = [1, 0], sizes = [1, 128], strides = [1, 1]} : vector<3x128xf32> to vector<1x128xf32>
    %51 = vector.broadcast %50 : vector<1x128xf32> to vector<256x128xf32>
    %52 = arith.subf %51, %6 : vector<256x128xf32>
    %53 = math.absf %52 : vector<256x128xf32>
    %cst_21 = arith.constant 1.000000e+00 : f32
    %54 = vector.broadcast %cst_21 : f32 to vector<256x128xf32>
    %55 = arith.subf %54, %53 : vector<256x128xf32>
    %cst_22 = arith.constant 0.000000e+00 : f32
    %56 = vector.broadcast %cst_22 : f32 to vector<256x128xf32>
    %57 = arith.maximumf %55, %56 : vector<256x128xf32>
    %58 = arith.mulf %49, %57 : vector<256x128xf32>
    %cst_23 = arith.constant dense<0.000000e+00> : vector<32x128xf32>
    %59 = tpu.matmul %41, %58, %cst_23 {dimension_numbers = #tpu.dot_dimension_numbers<[1], [0], [0], [1], [0, 0, 1, 1], [], []>, precision = #tpu.contract_precision<fp32>} : vector<32x256xf32>, vector<256x128xf32>, vector<32x128xf32> -> vector<32x128xf32>
    %60 = arith.addf %39, %59 : vector<32x128xf32>
    %c0_24 = arith.constant 0 : index
    %c0_25 = arith.constant 0 : index
    %c0_26 = arith.constant 0 : index
    %61 = vector.load %arg4[%c0_24, %c0_25, %c0_26] : memref<1x32x256xf32, #tpu.memory_space<vmem>>, vector<1x32x256xf32>
    %62 = vector.shape_cast %61 : vector<1x32x256xf32> to vector<32x256xf32>
    %63 = vector.extract_strided_slice %19 {offsets = [1, 0], sizes = [1, 128], strides = [1, 1]} : vector<3x128xf32> to vector<1x128xf32>
    %64 = vector.broadcast %63 : vector<1x128xf32> to vector<256x128xf32>
    %65 = arith.subf %64, %9 : vector<256x128xf32>
    %66 = math.absf %65 : vector<256x128xf32>
    %cst_27 = arith.constant 1.000000e+00 : f32
    %67 = vector.broadcast %cst_27 : f32 to vector<256x128xf32>
    %68 = arith.subf %67, %66 : vector<256x128xf32>
    %cst_28 = arith.constant 0.000000e+00 : f32
    %69 = vector.broadcast %cst_28 : f32 to vector<256x128xf32>
    %70 = arith.maximumf %68, %69 : vector<256x128xf32>
    %71 = vector.extract_strided_slice %19 {offsets = [2, 0], sizes = [1, 128], strides = [1, 1]} : vector<3x128xf32> to vector<1x128xf32>
    %72 = vector.broadcast %71 : vector<1x128xf32> to vector<256x128xf32>
    %73 = arith.subf %72, %6 : vector<256x128xf32>
    %74 = math.absf %73 : vector<256x128xf32>
    %cst_29 = arith.constant 1.000000e+00 : f32
    %75 = vector.broadcast %cst_29 : f32 to vector<256x128xf32>
    %76 = arith.subf %75, %74 : vector<256x128xf32>
    %cst_30 = arith.constant 0.000000e+00 : f32
    %77 = vector.broadcast %cst_30 : f32 to vector<256x128xf32>
    %78 = arith.maximumf %76, %77 : vector<256x128xf32>
    %79 = arith.mulf %70, %78 : vector<256x128xf32>
    %cst_31 = arith.constant dense<0.000000e+00> : vector<32x128xf32>
    %80 = tpu.matmul %62, %79, %cst_31 {dimension_numbers = #tpu.dot_dimension_numbers<[1], [0], [0], [1], [0, 0, 1, 1], [], []>, precision = #tpu.contract_precision<fp32>} : vector<32x256xf32>, vector<256x128xf32>, vector<32x128xf32> -> vector<32x128xf32>
    %81 = arith.addf %60, %80 : vector<32x128xf32>
    %c0_32 = arith.constant 0 : index
    %c0_33 = arith.constant 0 : index
    %82 = vector.load %arg5[%c0_32, %c0_33] : memref<32x1xf32, #tpu.memory_space<vmem>>, vector<32x1xf32>
    %83 = vector.broadcast %82 : vector<32x1xf32> to vector<32x128xf32>
    %84 = arith.mulf %81, %83 : vector<32x128xf32>
    %cst_34 = arith.constant dense<0.000000e+00> : vector<128xf32>
    %85 = vector.multi_reduction <add>, %84, %cst_34 [0] : vector<32x128xf32> to vector<128xf32>
    %86 = vector.shape_cast %85 : vector<128xf32> to vector<1x128xf32>
    %c0_35 = arith.constant 0 : index
    %c0_36 = arith.constant 0 : index
    %87 = vector.load %arg6[%c0_35, %c0_36] : memref<3x1xf32, #tpu.memory_space<vmem>>, vector<3x1xf32>
    %88 = vector.extract_strided_slice %1 {offsets = [0, 0], sizes = [1, 128], strides = [1, 1]} : vector<3x128xf32> to vector<1x128xf32>
    %89 = vector.extract_strided_slice %87 {offsets = [0, 0], sizes = [1, 1], strides = [1, 1]} : vector<3x1xf32> to vector<1x1xf32>
    %90 = vector.broadcast %89 : vector<1x1xf32> to vector<1x128xf32>
    %91 = arith.mulf %88, %90 : vector<1x128xf32>
    %92 = arith.addf %86, %91 : vector<1x128xf32>
    %93 = vector.extract_strided_slice %1 {offsets = [1, 0], sizes = [1, 128], strides = [1, 1]} : vector<3x128xf32> to vector<1x128xf32>
    %94 = vector.extract_strided_slice %87 {offsets = [1, 0], sizes = [1, 1], strides = [1, 1]} : vector<3x1xf32> to vector<1x1xf32>
    %95 = vector.broadcast %94 : vector<1x1xf32> to vector<1x128xf32>
    %96 = arith.mulf %93, %95 : vector<1x128xf32>
    %97 = arith.addf %92, %96 : vector<1x128xf32>
    %98 = vector.extract_strided_slice %1 {offsets = [2, 0], sizes = [1, 128], strides = [1, 1]} : vector<3x128xf32> to vector<1x128xf32>
    %99 = vector.extract_strided_slice %87 {offsets = [2, 0], sizes = [1, 1], strides = [1, 1]} : vector<3x1xf32> to vector<1x1xf32>
    %100 = vector.broadcast %99 : vector<1x1xf32> to vector<1x128xf32>
    %101 = arith.mulf %98, %100 : vector<1x128xf32>
    %102 = arith.addf %97, %101 : vector<1x128xf32>
    %c0_37 = arith.constant 0 : index
    %c0_38 = arith.constant 0 : index
    %103 = vector.load %arg7[%c0_37, %c0_38] : memref<1x1xf32, #tpu.memory_space<vmem>>, vector<1x1xf32>
    %104 = vector.broadcast %103 : vector<1x1xf32> to vector<1x128xf32>
    %105 = arith.addf %102, %104 : vector<1x128xf32>
    %c0_39 = arith.constant 0 : index
    %c0_40 = arith.constant 0 : index
    %c0_41 = arith.constant 0 : index
    %106 = vector.load %arg8[%c0_39, %c0_40, %c0_41] : memref<1x1x128xf32, #tpu.memory_space<vmem>>, vector<1x1x128xf32>
    %107 = vector.shape_cast %106 : vector<1x1x128xf32> to vector<1x128xf32>
    %108 = vector.shape_cast %105 : vector<1x128xf32> to vector<1x1x128xf32>
    tpu.vector_store %arg8[%c0_39, %c0_40, %c0_41], %108 {strides = array<i32>} : memref<1x1x128xf32, #tpu.memory_space<vmem>>, vector<1x1x128xf32>,
    return
  }
  func.func @transform_0(%arg0: i32) -> (i32, i32, i32) {
    %c0_i32 = arith.constant 0 : i32
    %c0_i32_0 = arith.constant 0 : i32
    %c0_i32_1 = arith.constant 0 : i32
    return %arg0, %c0_i32, %c0_i32_0 : i32, i32, i32
  }
  func.func @transform_1(%arg0: i32) -> (i32, i32, i32) {
    %c0_i32 = arith.constant 0 : i32
    %c0_i32_0 = arith.constant 0 : i32
    %c0_i32_1 = arith.constant 0 : i32
    return %arg0, %c0_i32, %c0_i32_0 : i32, i32, i32
  }
  func.func @transform_2(%arg0: i32) -> (i32, i32, i32) {
    %c0_i32 = arith.constant 0 : i32
    %c0_i32_0 = arith.constant 0 : i32
    %c0_i32_1 = arith.constant 0 : i32
    return %arg0, %c0_i32, %c0_i32_0 : i32, i32, i32
  }
  func.func @transform_3(%arg0: i32) -> (i32, i32, i32) {
    %c0_i32 = arith.constant 0 : i32
    %c0_i32_0 = arith.constant 0 : i32
    %c0_i32_1 = arith.constant 0 : i32
    return %arg0, %c0_i32, %c0_i32_0 : i32, i32, i32
  }
  func.func @transform_4(%arg0: i32) -> (i32, i32) {
    %c0_i32 = arith.constant 0 : i32
    %c0_i32_0 = arith.constant 0 : i32
    %c0_i32_1 = arith.constant 0 : i32
    return %c0_i32, %c0_i32_0 : i32, i32
  }
  func.func @transform_5(%arg0: i32) -> (i32, i32) {
    %c0_i32 = arith.constant 0 : i32
    %c0_i32_0 = arith.constant 0 : i32
    %c0_i32_1 = arith.constant 0 : i32
    return %c0_i32, %c0_i32_0 : i32, i32
  }
  func.func @transform_6(%arg0: i32) -> (i32, i32) {
    %c0_i32 = arith.constant 0 : i32
    %c0_i32_0 = arith.constant 0 : i32
    %c0_i32_1 = arith.constant 0 : i32
    return %c0_i32, %c0_i32_0 : i32, i32
  }
  func.func @transform_7(%arg0: i32) -> (i32, i32, i32) {
    %c0_i32 = arith.constant 0 : i32
    %c0_i32_0 = arith.constant 0 : i32
    %c0_i32_1 = arith.constant 0 : i32
    return %arg0, %c0_i32, %c0_i32_0 : i32, i32, i32
  }
}

</mosaic_0001>

<llo_original>
// kernel: tpu_custom_call.1
$region0: #{tpu_custom_call.1}
  #allocation0 [shape = 'u32[]', space=smem, size = 0x4, offset = 0x4, fixed_abs, tag = 'smem constant byte address 0x4 - core index']
  #allocation1 [shape = 'u32[144,128]{1,0:T(1,128)}', space=vmem, size = 0x12000, scoped, tag = 'internal scratch']
  #allocation2 [shape = 'f32[1,1]{1,0:T(1,128)S(1)}', space=vmem, size = 0x200, scoped, tag = 'scoped memory for tpu_custom_call.1']
  %s0 = inlined_call_operand.vmem [shape: f32[2,3,128], index: 0, kind: input, shape index: {}]
  %s1 = inlined_call_operand.hbm [shape: f32[2,32,256], index: 1, kind: input, shape index: {}]
  %s2 = inlined_call_operand.hbm [shape: f32[2,32,256], index: 2, kind: input, shape index: {}]
  %s3 = inlined_call_operand.hbm [shape: f32[2,32,256], index: 3, kind: input, shape index: {}]
  %s4 = inlined_call_operand.vmem [shape: f32[32,1], index: 4, kind: input, shape index: {}]
  %s5 = inlined_call_operand.vmem [shape: f32[3,1], index: 5, kind: input, shape index: {}]
  %s6 = inlined_call_operand.<no memory space> [shape: f32[1,1], index: 6, kind: input, shape index: {}]
  %s7 = inlined_call_operand.hbm [shape: f32[2,1,128], index: 7, kind: output, shape index: {}]
  %s8 = sld [smem:[#allocation0]]
  $region73: #{tpu_custom_call.1} parent=0
    _
  %s10 = ssub.s32 1, %s8
  %s11 = scalar_select 0, %s10, %s8
  %v12 = vstv %s6
  %13 = vst [vmem:[#allocation2] sm:$0x1] %v12
  $region1: #{tpu_custom_call.1} parent=0
    #allocation3 [shape = 'u8[65536]{0}', space=vmem, size = 0x10000, scoped, tag = 'input window, operand 1']
    #allocation4 [shape = 's32[2]{0}', space=sflag, size = 0x8, scoped, tag = 'scoped memory for tpu_custom_call.1']
    #allocation5 [shape = 's32[2]{0}', space=sflag, size = 0x8, scoped, tag = 'scoped memory for tpu_custom_call.1']
    #allocation6 [shape = 'u8[65536]{0}', space=vmem, size = 0x10000, scoped, tag = 'input window, operand 2']
    #allocation7 [shape = 's32[2]{0}', space=sflag, size = 0x8, scoped, tag = 'scoped memory for tpu_custom_call.1']
    #allocation8 [shape = 'u8[65536]{0}', space=vmem, size = 0x10000, scoped, tag = 'input window, operand 3']
    #allocation9 [shape = 'u8[1024]{0}', space=vmem, size = 0x400, scoped, tag = 'output window, operand 0']
    %14 = vsyncpa [#allocation4], 0
    %s15 = scalar_lea.sflag [#allocation4], 1
    %16 = vsyncpa %s15, 0
    %17 = vsyncpa [#allocation7], 0
    %s18 = scalar_lea.sflag [#allocation7], 1
    %19 = vsyncpa %s18, 0
    %20 = vsyncpa [#allocation5], 0
    %s21 = scalar_lea.sflag [#allocation5], 1
    %22 = vsyncpa %s21, 0
    loop: start=0, step=1, limit=4
    $region2: #{tpu_custom_call.1} parent=1 // loop_pre_header
      _
    $region3: #{tpu_custom_call.1} parent=1 // loop_header
      %s24 = sphi 0, %s28
      %p25 = scmp.ge.s32.totalorder %s24, 4
      %s34 = sphi 0, %s36
      %s37 = sphi 0, %s34
      %s38 = sphi 0, %s37
      %s54 = sphi 0, %s38
      %s60 = sphi 0, %s62
      %s63 = sphi 0, %s60
      %s64 = sphi 0, %s63
      %s80 = sphi 0, %s64
      %s86 = sphi 0, %s88
      %s89 = sphi 0, %s86
      %s90 = sphi 0, %s89
      %s106 = sphi 0, %s90
      %s112 = sphi 0, %s114
      %s115 = sphi 0, %s112
      %s116 = sphi 0, %s115
      %s132 = sphi 0, %s116
      %s136 = sphi 0, %s136
      %s138 = sphi 0, %s136
      %s139 = sphi 0, %s138
      %s153 = sphi 0, %s139
      %s157 = sphi 0, %s157
      %s159 = sphi 0, %s157
      %s160 = sphi 0, %s159
      %s174 = sphi 0, %s160
      %s178 = sphi 0, %s178
      %s180 = sphi 0, %s178
      %s181 = sphi 0, %s180
      %s195 = sphi 0, %s181
      %s201 = sphi 0, %s203
      %s204 = sphi 0, %s201
      %s205 = sphi 0, %s204
      %s221 = sphi 0, %s205
    $region4: #{tpu_custom_call.1} parent=1 // loop_header_branch
      %27 = sbr.rel (%p25) target = $region8
    $region5: #{tpu_custom_call.1} parent=1 // loop_body
      %s29 = ssub.s32 %s24, 1
      %s30 = ssub.s32 %s24, 2
      %s31 = sadd.s32 %s24, 1
      %s32 = ssub.s32 %s24, %s31
      %p33 = scmp.eq.s32.totalorder %s32, 0
      %s35 = sadd.s32 %s34, 1
      %s36 = scalar_select %p33, %s34, %s35
      %p39 = pneg %p33
      %p40 = scmp.eq.s32.totalorder %s24, 1
      %p41 = por %p39, %p40
      %p42 = scmp.ne.s32.totalorder %s34, %s37
      %p43 = scmp.eq.s32.totalorder %s24, 0
      %p44 = por %p42, %p43
      %p45 = scmp.ne.s32.totalorder %s34, %s37
      %p46 = scmp.eq.s32.totalorder %s29, 1
      %p47 = por %p45, %p46
      %p48 = scmp.ne.s32.totalorder %s37, %s38
      %p49 = scmp.eq.s32.totalorder %s29, 0
      %p50 = por %p48, %p49
      %p51 = scmp.ne.s32.totalorder %s37, %s38
      %p52 = scmp.eq.s32.totalorder %s30, 1
      %p53 = por %p51, %p52
      %p55 = scmp.ne.s32.totalorder %s38, %s54
      %p56 = scmp.eq.s32.totalorder %s30, 0
      %p57 = por %p55, %p56
      %s58 = ssub.s32 %s24, %s31
      %p59 = scmp.eq.s32.totalorder %s58, 0
      %s61 = sadd.s32 %s60, 1
      %s62 = scalar_select %p59, %s60, %s61
      %p65 = pneg %p59
      %p66 = scmp.eq.s32.totalorder %s24, 1
      %p67 = por %p65, %p66
      %p68 = scmp.ne.s32.totalorder %s60, %s63
      %p69 = scmp.eq.s32.totalorder %s24, 0
      %p70 = por %p68, %p69
      %p71 = scmp.ne.s32.totalorder %s60, %s63
      %p72 = scmp.eq.s32.totalorder %s29, 1
      %p73 = por %p71, %p72
      %p74 = scmp.ne.s32.totalorder %s63, %s64
      %p75 = scmp.eq.s32.totalorder %s29, 0
      %p76 = por %p74, %p75
      %p77 = scmp.ne.s32.totalorder %s63, %s64
      %p78 = scmp.eq.s32.totalorder %s30, 1
      %p79 = por %p77, %p78
      %p81 = scmp.ne.s32.totalorder %s64, %s80
      %p82 = scmp.eq.s32.totalorder %s30, 0
      %p83 = por %p81, %p82
      %s84 = ssub.s32 %s24, %s31
      %p85 = scmp.eq.s32.totalorder %s84, 0
      %s87 = sadd.s32 %s86, 1
      %s88 = scalar_select %p85, %s86, %s87
      %p91 = pneg %p85
      %p92 = scmp.eq.s32.totalorder %s24, 1
      %p93 = por %p91, %p92
      %p94 = scmp.ne.s32.totalorder %s86, %s89
      %p95 = scmp.eq.s32.totalorder %s24, 0
      %p96 = por %p94, %p95
      %p97 = scmp.ne.s32.totalorder %s86, %s89
      %p98 = scmp.eq.s32.totalorder %s29, 1
      %p99 = por %p97, %p98
      %p100 = scmp.ne.s32.totalorder %s89, %s90
      %p101 = scmp.eq.s32.totalorder %s29, 0
      %p102 = por %p100, %p101
      %p103 = scmp.ne.s32.totalorder %s89, %s90
      %p104 = scmp.eq.s32.totalorder %s30, 1
      %p105 = por %p103, %p104
      %p107 = scmp.ne.s32.totalorder %s90, %s106
      %p108 = scmp.eq.s32.totalorder %s30, 0
      %p109 = por %p107, %p108
      %s110 = ssub.s32 %s24, %s31
      %p111 = scmp.eq.s32.totalorder %s110, 0
      %s113 = sadd.s32 %s112, 1
      %s114 = scalar_select %p111, %s112, %s113
      %p117 = pneg %p111
      %p118 = scmp.eq.s32.totalorder %s24, 1
      %p119 = por %p117, %p118
      %p120 = scmp.ne.s32.totalorder %s112, %s115
      %p121 = scmp.eq.s32.totalorder %s24, 0
      %p122 = por %p120, %p121
      %p123 = scmp.ne.s32.totalorder %s112, %s115
      %p124 = scmp.eq.s32.totalorder %s29, 1
      %p125 = por %p123, %p124
      %p126 = scmp.ne.s32.totalorder %s115, %s116
      %p127 = scmp.eq.s32.totalorder %s29, 0
      %p128 = por %p126, %p127
      %p129 = scmp.ne.s32.totalorder %s115, %s116
      %p130 = scmp.eq.s32.totalorder %s30, 1
      %p131 = por %p129, %p130
      %p133 = scmp.ne.s32.totalorder %s116, %s132
      %p134 = scmp.eq.s32.totalorder %s30, 0
      %p135 = por %p133, %p134
      %s137 = sadd.s32 %s136, 1
      %p140 = scmp.eq.s32.totalorder %s24, 1
      %p141 = scmp.ne.s32.totalorder %s136, %s138
      %p142 = scmp.eq.s32.totalorder %s24, 0
      %p143 = por %p141, %p142
      %p144 = scmp.ne.s32.totalorder %s136, %s138
      %p145 = scmp.eq.s32.totalorder %s29, 1
      %p146 = por %p144, %p145
      %p147 = scmp.ne.s32.totalorder %s138, %s139
      %p148 = scmp.eq.s32.totalorder %s29, 0
      %p149 = por %p147, %p148
      %p150 = scmp.ne.s32.totalorder %s138, %s139
      %p151 = scmp.eq.s32.totalorder %s30, 1
      %p152 = por %p150, %p151
      %p154 = scmp.ne.s32.totalorder %s139, %s153
      %p155 = scmp.eq.s32.totalorder %s30, 0
      %p156 = por %p154, %p155
      %s158 = sadd.s32 %s157, 1
      %p161 = scmp.eq.s32.totalorder %s24, 1
      %p162 = scmp.ne.s32.totalorder %s157, %s159
      %p163 = scmp.eq.s32.totalorder %s24, 0
      %p164 = por %p162, %p163
      %p165 = scmp.ne.s32.totalorder %s157, %s159
      %p166 = scmp.eq.s32.totalorder %s29, 1
      %p167 = por %p165, %p166
      %p168 = scmp.ne.s32.totalorder %s159, %s160
      %p169 = scmp.eq.s32.totalorder %s29, 0
      %p170 = por %p168, %p169
      %p171 = scmp.ne.s32.totalorder %s159, %s160
      %p172 = scmp.eq.s32.totalorder %s30, 1
      %p173 = por %p171, %p172
      %p175 = scmp.ne.s32.totalorder %s160, %s174
      %p176 = scmp.eq.s32.totalorder %s30, 0
      %p177 = por %p175, %p176
      %s179 = sadd.s32 %s178, 1
      %p182 = scmp.eq.s32.totalorder %s24, 1
      %p183 = scmp.ne.s32.totalorder %s178, %s180
      %p184 = scmp.eq.s32.totalorder %s24, 0
      %p185 = por %p183, %p184
      %p186 = scmp.ne.s32.totalorder %s178, %s180
      %p187 = scmp.eq.s32.totalorder %s29, 1
      %p188 = por %p186, %p187
      %p189 = scmp.ne.s32.totalorder %s180, %s181
      %p190 = scmp.eq.s32.totalorder %s29, 0
      %p191 = por %p189, %p190
      %p192 = scmp.ne.s32.totalorder %s180, %s181
      %p193 = scmp.eq.s32.totalorder %s30, 1
      %p194 = por %p192, %p193
      %p196 = scmp.ne.s32.totalorder %s181, %s195
      %p197 = scmp.eq.s32.totalorder %s30, 0
      %p198 = por %p196, %p197
      %s199 = ssub.s32 %s24, %s31
      %p200 = scmp.eq.s32.totalorder %s199, 0
      %s202 = sadd.s32 %s201, 1
      %s203 = scalar_select %p200, %s201, %s202
      %p206 = pneg %p200
      %p207 = scmp.eq.s32.totalorder %s24, 1
      %p208 = por %p206, %p207
      %p209 = scmp.ne.s32.totalorder %s201, %s204
      %p210 = scmp.eq.s32.totalorder %s24, 0
      %p211 = por %p209, %p210
      %p212 = scmp.ne.s32.totalorder %s201, %s204
      %p213 = scmp.eq.s32.totalorder %s29, 1
      %p214 = por %p212, %p213
      %p215 = scmp.ne.s32.totalorder %s204, %s205
      %p216 = scmp.eq.s32.totalorder %s29, 0
      %p217 = por %p215, %p216
      %p218 = scmp.ne.s32.totalorder %s204, %s205
      %p219 = scmp.eq.s32.totalorder %s30, 1
      %p220 = por %p218, %p219
      %p222 = scmp.ne.s32.totalorder %s205, %s221
      %p223 = scmp.eq.s32.totalorder %s30, 0
      %p224 = por %p222, %p223
      %p225 = scmp.le.s32.totalorder 1, %s24
      %p226 = scmp.lt.s32.totalorder %s24, 3
      %p227 = pnand %p225, %p226
      %p228 = pneg %p227
      // Predicated region
      $region9: #{tpu_custom_call.1} parent=5 // pred_check
        _
      $region10: #{tpu_custom_call.1} parent=5 // pred_check_branch
        %230 = sbr.rel (%p227) target = $region12
      $region11: #{tpu_custom_call.1} parent=5 // pred_region
        %s231 = ssub.s32 %s24, 1
        // Predicated region
        $region13: #{tpu_custom_call.1} parent=11 // pred_check
          %p232 = pneg %p149
        $region14: #{tpu_custom_call.1} parent=11 // pred_check_branch
          %234 = sbr.rel (%p232) target = $region16
        $region15: #{tpu_custom_call.1} parent=11 // pred_region
          _
        $region16: #{tpu_custom_call.1} parent=11 // pred_fallthru
          _
        // Predicated region
        $region17: #{tpu_custom_call.1} parent=11 // pred_check
          %p235 = pneg %p170
        $region18: #{tpu_custom_call.1} parent=11 // pred_check_branch
          %237 = sbr.rel (%p235) target = $region20
        $region19: #{tpu_custom_call.1} parent=11 // pred_region
          _
        $region20: #{tpu_custom_call.1} parent=11 // pred_fallthru
          _
        // Predicated region
        $region21: #{tpu_custom_call.1} parent=11 // pred_check
          %p238 = pneg %p191
        $region22: #{tpu_custom_call.1} parent=11 // pred_check_branch
          %240 = sbr.rel (%p238) target = $region24
        $region23: #{tpu_custom_call.1} parent=11 // pred_region
          _
        $region24: #{tpu_custom_call.1} parent=11 // pred_fallthru
          _
      $region12: #{tpu_custom_call.1} parent=5 // pred_fallthru
        _
      %p241 = scmp.lt.s32.totalorder %s24, 2
      // Predicated region
      $region25: #{tpu_custom_call.1} parent=5 // pred_check
        %p242 = pneg %p241
      $region26: #{tpu_custom_call.1} parent=5 // pred_check_branch
        %244 = sbr.rel (%p242) target = $region28
      $region27: #{tpu_custom_call.1} parent=5 // pred_region
        // Predicated region
        $region29: #{tpu_custom_call.1} parent=27 // pred_check
          %p245 = pneg %p44
        $region30: #{tpu_custom_call.1} parent=27 // pred_check_branch
          %247 = sbr.rel (%p245) target = $region32
        $region31: #{tpu_custom_call.1} parent=27 // pred_region
          %p248 = scmp.lt.s32.totalorder %s24, 1
          %s249 = scalar_select %p248, %s24, 1
          %s250 = smul.addr %s249, 4
          %s251 = scalar_lea.vmem %s0, %s250
        $region32: #{tpu_custom_call.1} parent=27 // pred_fallthru
          _
        // Predicated region
        $region33: #{tpu_custom_call.1} parent=27 // pred_check
          %p252 = pneg %p70
        $region34: #{tpu_custom_call.1} parent=27 // pred_check_branch
          %254 = sbr.rel (%p252) target = $region36
        $region35: #{tpu_custom_call.1} parent=27 // pred_region
          %s255 = sand.u32 %s60, 1
          %s256 = scalar_lea.sflag [#allocation4], %s255
          %s257 = sand.u32 %s60, 1
          %s258 = smul.addr %s257, 64
          %s259 = scalar_lea.vmem [#allocation3], %s258
          %s261 = ssub.s32 1024, 1024
          %262 = vsyncadd %s256, %s261
          %s263 = smul.addr %s24, 8
          %s264 = smul.addr %s263, 128
          %s265 = scalar_lea.hbm %s1, %s264
          %s266 = sshll.u32 %s259, 4
          %s267 = int_to_ptr.vmem [resolvable:$true] %s266
          %272 = dma.hbm_to_vmem [thread:$0]  %s265, 1024, %s267, %s256, 256, 256, 16
        $region36: #{tpu_custom_call.1} parent=27 // pred_fallthru
          _
        // Predicated region
        $region37: #{tpu_custom_call.1} parent=27 // pred_check
          %p273 = pneg %p96
        $region38: #{tpu_custom_call.1} parent=27 // pred_check_branch
          %275 = sbr.rel (%p273) target = $region40
        $region39: #{tpu_custom_call.1} parent=27 // pred_region
          %s276 = sand.u32 %s24, 1
          %s277 = scalar_lea.sflag [#allocation7], %s276
          %s278 = sand.u32 %s86, 1
          %s279 = smul.addr %s278, 64
          %s280 = scalar_lea.vmem [#allocation6], %s279
          %s282 = ssub.s32 1024, 1024
          %283 = vsyncadd %s277, %s282
          %s284 = smul.addr %s24, 8
          %s285 = smul.addr %s284, 128
          %s286 = scalar_lea.hbm %s2, %s285
          %s287 = sshll.u32 %s280, 4
          %s288 = int_to_ptr.vmem [resolvable:$true] %s287
          %293 = dma.hbm_to_vmem [thread:$0]  %s286, 1024, %s288, %s277, 256, 256, 16
        $region40: #{tpu_custom_call.1} parent=27 // pred_fallthru
          _
        // Predicated region
        $region41: #{tpu_custom_call.1} parent=27 // pred_check
          %p294 = pneg %p122
        $region42: #{tpu_custom_call.1} parent=27 // pred_check_branch
          %296 = sbr.rel (%p294) target = $region44
        $region43: #{tpu_custom_call.1} parent=27 // pred_region
          %s297 = sand.u32 %s24, 1
          %s298 = scalar_lea.sflag [#allocation7], %s297
          %s299 = sand.u32 %s112, 1
          %s300 = smul.addr %s299, 64
          %s301 = scalar_lea.vmem [#allocation8], %s300
          %s303 = ssub.s32 1024, 1024
          %304 = vsyncadd %s298, %s303
          %s305 = smul.addr %s24, 8
          %s306 = smul.addr %s305, 128
          %s307 = scalar_lea.hbm %s3, %s306
          %s308 = sshll.u32 %s301, 4
          %s309 = int_to_ptr.vmem [resolvable:$true] %s308
          %314 = dma.hbm_to_vmem [thread:$0]  %s307, 1024, %s309, %s298, 256, 256, 16
        $region44: #{tpu_custom_call.1} parent=27 // pred_fallthru
          _
      $region28: #{tpu_custom_call.1} parent=5 // pred_fallthru
        _
      %p315 = scmp.le.s32.totalorder 1, %s24
      %p316 = scmp.lt.s32.totalorder %s24, 3
      %p317 = pnand %p315, %p316
      %p318 = pneg %p317
      // Predicated region
      $region45: #{tpu_custom_call.1} parent=5 // pred_check
        _
      $region46: #{tpu_custom_call.1} parent=5 // pred_check_branch
        %320 = sbr.rel (%p317) target = $region48
      $region47: #{tpu_custom_call.1} parent=5 // pred_region
        %s321 = ssub.s32 %s24, 1
        %s322 = sand.u32 %s63, 1
        %s323 = scalar_lea.sflag [#allocation4], %s322
        %s324 = sand.u32 %s63, 1
        %s325 = smul.addr %s324, 64
        %s326 = scalar_lea.vmem [#allocation3], %s325
        // Predicated region
        $region49: #{tpu_custom_call.1} parent=47 // pred_check
          %p327 = pneg %p76
        $region50: #{tpu_custom_call.1} parent=47 // pred_check_branch
          %329 = sbr.rel (%p327) target = $region52
        $region51: #{tpu_custom_call.1} parent=47 // pred_region
          %330 = dma.done %s323, 1024
        $region52: #{tpu_custom_call.1} parent=47 // pred_fallthru
          _
        %s331 = sand.u32 %s29, 1
        %s332 = scalar_lea.sflag [#allocation7], %s331
        %s333 = sand.u32 %s89, 1
        %s334 = smul.addr %s333, 64
        %s335 = scalar_lea.vmem [#allocation6], %s334
        // Predicated region
        $region53: #{tpu_custom_call.1} parent=47 // pred_check
          %p336 = pneg %p102
        $region54: #{tpu_custom_call.1} parent=47 // pred_check_branch
          %338 = sbr.rel (%p336) target = $region56
        $region55: #{tpu_custom_call.1} parent=47 // pred_region
          %339 = dma.done %s332, 1024
        $region56: #{tpu_custom_call.1} parent=47 // pred_fallthru
          _
        %s340 = sand.u32 %s29, 1
        %s341 = scalar_lea.sflag [#allocation7], %s340
        %s342 = sand.u32 %s115, 1
        %s343 = smul.addr %s342, 64
        %s344 = scalar_lea.vmem [#allocation8], %s343
        // Predicated region
        $region57: #{tpu_custom_call.1} parent=47 // pred_check
          %p345 = pneg %p128
        $region58: #{tpu_custom_call.1} parent=47 // pred_check_branch
          %347 = sbr.rel (%p345) target = $region60
        $region59: #{tpu_custom_call.1} parent=47 // pred_region
          %348 = dma.done %s341, 1024
        $region60: #{tpu_custom_call.1} parent=47 // pred_fallthru
          _
        %p349 = scmp.lt.s32.totalorder %s29, 1
        %s350 = scalar_select %p349, %s29, 1
        %s351 = smul.addr %s350, 4
        %s352 = scalar_lea.vmem %s0, %s351
        %p353 = pneg %p50
        %p354 = pneg %p47
        %s355 = sand.u32 %s63, 1
        %s356 = scalar_lea.sflag [#allocation4], %s355
        %s357 = sand.u32 %s63, 1
        %s358 = smul.addr %s357, 64
        %s359 = scalar_lea.vmem [#allocation3], %s358
        %p360 = pneg %p76
        %p361 = pneg %p73
        %s362 = sand.u32 %s29, 1
        %s363 = scalar_lea.sflag [#allocation7], %s362
        %s364 = sand.u32 %s89, 1
        %s365 = smul.addr %s364, 64
        %s366 = scalar_lea.vmem [#allocation6], %s365
        %p367 = pneg %p102
        %p368 = pneg %p99
        %s369 = sand.u32 %s29, 1
        %s370 = scalar_lea.sflag [#allocation7], %s369
        %s371 = sand.u32 %s115, 1
        %s372 = smul.addr %s371, 64
        %s373 = scalar_lea.vmem [#allocation8], %s372
        %p374 = pneg %p128
        %p375 = pneg %p125
        %p376 = pneg %p149
        %p377 = pneg %p146
        %p378 = pneg %p170
        %p379 = pneg %p167
        %p380 = pneg %p191
        %p381 = pneg %p188
        %p382 = pneg %p217
        %p383 = pneg %p214
        %s384 = sand.u32 %s204, 1
        %s385 = scalar_lea.sflag [#allocation5], %s384
        %s386 = sand.u32 %s204, 1
        %s387 = scalar_lea.vmem [#allocation9], %s386
        %p388 = scmp.lt.s32.totalorder %s29, 1
        %s389 = scalar_select %p388, %s29, 1
        %s390 = smul.addr %s389, 4
        %s391 = scalar_lea.vmem %s0, %s390
        %v392 = vld [vmem:[%s391] sm:$0x7]
        %v393 = vlaneseq
        %v394 = vshrl.u32 %v393, 7
        %v395 = vadd.s32 %v394, 8
        %v396 = vadd.s32 %v394, 16
        %v397 = vadd.s32 %v394, 24
        %v398 = vadd.s32 %v394, 32
        %v399 = vadd.s32 %v394, 40
        %v400 = vadd.s32 %v394, 48
        %v401 = vadd.s32 %v394, 56
        %v402 = vadd.s32 %v394, 64
        %v403 = vadd.s32 %v394, 72
        %v404 = vadd.s32 %v394, 80
        %v405 = vadd.s32 %v394, 88
        %v406 = vadd.s32 %v394, 96
        %v407 = vadd.s32 %v394, 104
        %v408 = vadd.s32 %v394, 112
        %v409 = vadd.s32 %v394, 120
        %v410 = vadd.s32 %v394, 128
        %v411 = vadd.s32 %v394, 136
        %v412 = vadd.s32 %v394, 144
        %v413 = vadd.s32 %v394, 152
        %v414 = vadd.s32 %v394, 160
        %v415 = vadd.s32 %v394, 168
        %v416 = vadd.s32 %v394, 176
        %v417 = vadd.s32 %v394, 184
        %v418 = vadd.s32 %v394, 192
        %v419 = vadd.s32 %v394, 200
        %v420 = vadd.s32 %v394, 208
        %v421 = vadd.s32 %v394, 216
        %v422 = vadd.s32 %v394, 224
        %v423 = vadd.s32 %v394, 232
        %v424 = vadd.s32 %v394, 240
        %v425 = vadd.s32 %v394, 248
        %v426 = vcvt.s32.f32 %v394
        %v427 = vcvt.s32.f32 %v395
        %v428 = vcvt.s32.f32 %v396
        %v429 = vcvt.s32.f32 %v397
        %v430 = vcvt.s32.f32 %v398
        %v431 = vcvt.s32.f32 %v399
        %v432 = vcvt.s32.f32 %v400
        %v433 = vcvt.s32.f32 %v401
        %v434 = vcvt.s32.f32 %v402
        %v435 = vcvt.s32.f32 %v403
        %v436 = vcvt.s32.f32 %v404
        %v437 = vcvt.s32.f32 %v405
        %v438 = vcvt.s32.f32 %v406
        %v439 = vcvt.s32.f32 %v407
        %v440 = vcvt.s32.f32 %v408
        %v441 = vcvt.s32.f32 %v409
        %v442 = vcvt.s32.f32 %v410
        %v443 = vcvt.s32.f32 %v411
        %v444 = vcvt.s32.f32 %v412
        %v445 = vcvt.s32.f32 %v413
        %v446 = vcvt.s32.f32 %v414
        %v447 = vcvt.s32.f32 %v415
        %v448 = vcvt.s32.f32 %v416
        %v449 = vcvt.s32.f32 %v417
        %v450 = vcvt.s32.f32 %v418
        %v451 = vcvt.s32.f32 %v419
        %v452 = vcvt.s32.f32 %v420
        %v453 = vcvt.s32.f32 %v421
        %v454 = vcvt.s32.f32 %v422
        %v455 = vcvt.s32.f32 %v423
        %v456 = vcvt.s32.f32 %v424
        %v457 = vcvt.s32.f32 %v425
        %v458 = vmul.f32 %v426, 0.0625
        %v459 = vmul.f32 %v427, 0.0625
        %v460 = vmul.f32 %v428, 0.0625
        %v461 = vmul.f32 %v429, 0.0625
        %v462 = vmul.f32 %v430, 0.0625
        %v463 = vmul.f32 %v431, 0.0625
        %v464 = vmul.f32 %v432, 0.0625
        %v465 = vmul.f32 %v433, 0.0625
        %v466 = vmul.f32 %v434, 0.0625
        %v467 = vmul.f32 %v435, 0.0625
        %v468 = vmul.f32 %v436, 0.0625
        %v469 = vmul.f32 %v437, 0.0625
        %v470 = vmul.f32 %v438, 0.0625
        %v471 = vmul.f32 %v439, 0.0625
        %v472 = vmul.f32 %v440, 0.0625
        %v473 = vmul.f32 %v441, 0.0625
        %v474 = vmul.f32 %v442, 0.0625
        %v475 = vmul.f32 %v443, 0.0625
        %v476 = vmul.f32 %v444, 0.0625
        %v477 = vmul.f32 %v445, 0.0625
        %v478 = vmul.f32 %v446, 0.0625
        %v479 = vmul.f32 %v447, 0.0625
        %v480 = vmul.f32 %v448, 0.0625
        %v481 = vmul.f32 %v449, 0.0625
        %v482 = vmul.f32 %v450, 0.0625
        %v483 = vmul.f32 %v451, 0.0625
        %v484 = vmul.f32 %v452, 0.0625
        %v485 = vmul.f32 %v453, 0.0625
        %v486 = vmul.f32 %v454, 0.0625
        %v487 = vmul.f32 %v455, 0.0625
        %v488 = vmul.f32 %v456, 0.0625
        %v489 = vmul.f32 %v457, 0.0625
        %v490 = vfloor.f32 %v458
        %v491 = vfloor.f32 %v459
        %v492 = vfloor.f32 %v460
        %v493 = vfloor.f32 %v461
        %v494 = vfloor.f32 %v462
        %v495 = vfloor.f32 %v463
        %v496 = vfloor.f32 %v464
        %v497 = vfloor.f32 %v465
        %v498 = vfloor.f32 %v466
        %v499 = vfloor.f32 %v467
        %v500 = vfloor.f32 %v468
        %v501 = vfloor.f32 %v469
        %v502 = vfloor.f32 %v470
        %v503 = vfloor.f32 %v471
        %v504 = vfloor.f32 %v472
        %v505 = vfloor.f32 %v473
        %v506 = vfloor.f32 %v474
        %v507 = vfloor.f32 %v475
        %v508 = vfloor.f32 %v476
        %v509 = vfloor.f32 %v477
        %v510 = vfloor.f32 %v478
        %v511 = vfloor.f32 %v479
        %v512 = vfloor.f32 %v480
        %v513 = vfloor.f32 %v481
        %v514 = vfloor.f32 %v482
        %v515 = vfloor.f32 %v483
        %v516 = vfloor.f32 %v484
        %v517 = vfloor.f32 %v485
        %v518 = vfloor.f32 %v486
        %v519 = vfloor.f32 %v487
        %v520 = vfloor.f32 %v488
        %v521 = vfloor.f32 %v489
        %v522 = vmul.f32 %v490, 16.0
        %v523 = vmul.f32 %v491, 16.0
        %v524 = vmul.f32 %v492, 16.0
        %v525 = vmul.f32 %v493, 16.0
        %v526 = vmul.f32 %v494, 16.0
        %v527 = vmul.f32 %v495, 16.0
        %v528 = vmul.f32 %v496, 16.0
        %v529 = vmul.f32 %v497, 16.0
        %v530 = vmul.f32 %v498, 16.0
        %v531 = vmul.f32 %v499, 16.0
        %v532 = vmul.f32 %v500, 16.0
        %v533 = vmul.f32 %v501, 16.0
        %v534 = vmul.f32 %v502, 16.0
        %v535 = vmul.f32 %v503, 16.0
        %v536 = vmul.f32 %v504, 16.0
        %v537 = vmul.f32 %v505, 16.0
        %v538 = vmul.f32 %v506, 16.0
        %v539 = vmul.f32 %v507, 16.0
        %v540 = vmul.f32 %v508, 16.0
        %v541 = vmul.f32 %v509, 16.0
        %v542 = vmul.f32 %v510, 16.0
        %v543 = vmul.f32 %v511, 16.0
        %v544 = vmul.f32 %v512, 16.0
        %v545 = vmul.f32 %v513, 16.0
        %v546 = vmul.f32 %v514, 16.0
        %v547 = vmul.f32 %v515, 16.0
        %v548 = vmul.f32 %v516, 16.0
        %v549 = vmul.f32 %v517, 16.0
        %v550 = vmul.f32 %v518, 16.0
        %v551 = vmul.f32 %v519, 16.0
        %v552 = vmul.f32 %v520, 16.0
        %v553 = vmul.f32 %v521, 16.0
        %v554 = vsub.f32 %v426, %v522
        %v555 = vsub.f32 %v427, %v523
        %v556 = vsub.f32 %v428, %v524
        %v557 = vsub.f32 %v429, %v525
        %v558 = vsub.f32 %v430, %v526
        %v559 = vsub.f32 %v431, %v527
        %v560 = vsub.f32 %v432, %v528
        %v561 = vsub.f32 %v433, %v529
        %v562 = vsub.f32 %v434, %v530
        %v563 = vsub.f32 %v435, %v531
        %v564 = vsub.f32 %v436, %v532
        %v565 = vsub.f32 %v437, %v533
        %v566 = vsub.f32 %v438, %v534
        %v567 = vsub.f32 %v439, %v535
        %v568 = vsub.f32 %v440, %v536
        %v569 = vsub.f32 %v441, %v537
        %v570 = vsub.f32 %v442, %v538
        %v571 = vsub.f32 %v443, %v539
        %v572 = vsub.f32 %v444, %v540
        %v573 = vsub.f32 %v445, %v541
        %v574 = vsub.f32 %v446, %v542
        %v575 = vsub.f32 %v447, %v543
        %v576 = vsub.f32 %v448, %v544
        %v577 = vsub.f32 %v449, %v545
        %v578 = vsub.f32 %v450, %v546
        %v579 = vsub.f32 %v451, %v547
        %v580 = vsub.f32 %v452, %v548
        %v581 = vsub.f32 %v453, %v549
        %v582 = vsub.f32 %v454, %v550
        %v583 = vsub.f32 %v455, %v551
        %v584 = vsub.f32 %v456, %v552
        %v585 = vsub.f32 %v457, %v553
        %v586 = vmul.f32 %v392, 0.90826523
        %v587 = vadd.f32 %v586, 0.5
        %v588 = vmax.f32 %v587, 0.0
        %v589 = vmin.f32 %v588, 0.999
        %v590 = vmul.f32 %v589, 15.0
        %v591 = vld [vmem:[%s326] sm:$0xff]
        %v592 = vld [vmem:[%s326 + $0x8] sm:$0xff]
        %v593 = vld [vmem:[%s326 + $0x10] sm:$0xff]
        %v594 = vld [vmem:[%s326 + $0x18] sm:$0xff]
        %v595 = vld [vmem:[%s326 + $0x20] sm:$0xff]
        %v596 = vld [vmem:[%s326 + $0x28] sm:$0xff]
        %v597 = vld [vmem:[%s326 + $0x30] sm:$0xff]
        %v598 = vld [vmem:[%s326 + $0x38] sm:$0xff]
        %v599 = vlaneseq
        %v600 = vshrl.u32 %v599, 7
        %v601 = vsub.s32 0, %v600
        %v602 = vrot.slane %v590, %v601
        %v603 = vsub.f32 %v602, %v554
        %v604 = vsub.f32 %v602, %v555
        %v605 = vsub.f32 %v602, %v556
        %v606 = vsub.f32 %v602, %v557
        %v607 = vsub.f32 %v602, %v558
        %v608 = vsub.f32 %v602, %v559
        %v609 = vsub.f32 %v602, %v560
        %v610 = vsub.f32 %v602, %v561
        %v611 = vsub.f32 %v602, %v562
        %v612 = vsub.f32 %v602, %v563
        %v613 = vsub.f32 %v602, %v564
        %v614 = vsub.f32 %v602, %v565
        %v615 = vsub.f32 %v602, %v566
        %v616 = vsub.f32 %v602, %v567
        %v617 = vsub.f32 %v602, %v568
        %v618 = vsub.f32 %v602, %v569
        %v619 = vsub.f32 %v602, %v570
        %v620 = vsub.f32 %v602, %v571
        %v621 = vsub.f32 %v602, %v572
        %v622 = vsub.f32 %v602, %v573
        %v623 = vsub.f32 %v602, %v574
        %v624 = vsub.f32 %v602, %v575
        %v625 = vsub.f32 %v602, %v576
        %v626 = vsub.f32 %v602, %v577
        %v627 = vsub.f32 %v602, %v578
        %v628 = vsub.f32 %v602, %v579
        %v629 = vsub.f32 %v602, %v580
        %v630 = vsub.f32 %v602, %v581
        %v631 = vsub.f32 %v602, %v582
        %v632 = vsub.f32 %v602, %v583
        %v633 = vsub.f32 %v602, %v584
        %v634 = vsub.f32 %v602, %v585
        %v635 = vand.u32 2147483647, %v603
        %v636 = vand.u32 2147483647, %v604
        %v637 = vand.u32 2147483647, %v605
        %v638 = vand.u32 2147483647, %v606
        %v639 = vand.u32 2147483647, %v607
        %v640 = vand.u32 2147483647, %v608
        %v641 = vand.u32 2147483647, %v609
        %v642 = vand.u32 2147483647, %v610
        %v643 = vand.u32 2147483647, %v611
        %v644 = vand.u32 2147483647, %v612
        %v645 = vand.u32 2147483647, %v613
        %v646 = vand.u32 2147483647, %v614
        %v647 = vand.u32 2147483647, %v615
        %v648 = vand.u32 2147483647, %v616
        %v649 = vand.u32 2147483647, %v617
        %v650 = vand.u32 2147483647, %v618
        %v651 = vand.u32 2147483647, %v619
        %v652 = vand.u32 2147483647, %v620
        %v653 = vand.u32 2147483647, %v621
        %v654 = vand.u32 2147483647, %v622
        %v655 = vand.u32 2147483647, %v623
        %v656 = vand.u32 2147483647, %v624
        %v657 = vand.u32 2147483647, %v625
        %v658 = vand.u32 2147483647, %v626
        %v659 = vand.u32 2147483647, %v627
        %v660 = vand.u32 2147483647, %v628
        %v661 = vand.u32 2147483647, %v629
        %v662 = vand.u32 2147483647, %v630
        %v663 = vand.u32 2147483647, %v631
        %v664 = vand.u32 2147483647, %v632
        %v665 = vand.u32 2147483647, %v633
        %v666 = vand.u32 2147483647, %v634
        %v667 = vsub.f32 1.0, %v635
        %v668 = vsub.f32 1.0, %v636
        %v669 = vsub.f32 1.0, %v637
        %v670 = vsub.f32 1.0, %v638
        %v671 = vsub.f32 1.0, %v639
        %v672 = vsub.f32 1.0, %v640
        %v673 = vsub.f32 1.0, %v641
        %v674 = vsub.f32 1.0, %v642
        %v675 = vsub.f32 1.0, %v643
        %v676 = vsub.f32 1.0, %v644
        %v677 = vsub.f32 1.0, %v645
        %v678 = vsub.f32 1.0, %v646
        %v679 = vsub.f32 1.0, %v647
        %v680 = vsub.f32 1.0, %v648
        %v681 = vsub.f32 1.0, %v649
        %v682 = vsub.f32 1.0, %v650
        %v683 = vsub.f32 1.0, %v651
        %v684 = vsub.f32 1.0, %v652
        %v685 = vsub.f32 1.0, %v653
        %v686 = vsub.f32 1.0, %v654
        %v687 = vsub.f32 1.0, %v655
        %v688 = vsub.f32 1.0, %v656
        %v689 = vsub.f32 1.0, %v657
        %v690 = vsub.f32 1.0, %v658
        %v691 = vsub.f32 1.0, %v659
        %v692 = vsub.f32 1.0, %v660
        %v693 = vsub.f32 1.0, %v661
        %v694 = vsub.f32 1.0, %v662
        %v695 = vsub.f32 1.0, %v663
        %v696 = vsub.f32 1.0, %v664
        %v697 = vsub.f32 1.0, %v665
        %v698 = vsub.f32 1.0, %v666
        %v699 = vmax.f32 %v667, 0.0
        %v700 = vmax.f32 %v668, 0.0
        %v701 = vmax.f32 %v669, 0.0
        %v702 = vmax.f32 %v670, 0.0
        %v703 = vmax.f32 %v671, 0.0
        %v704 = vmax.f32 %v672, 0.0
        %v705 = vmax.f32 %v673, 0.0
        %v706 = vmax.f32 %v674, 0.0
        %v707 = vmax.f32 %v675, 0.0
        %v708 = vmax.f32 %v676, 0.0
        %v709 = vmax.f32 %v677, 0.0
        %v710 = vmax.f32 %v678, 0.0
        %v711 = vmax.f32 %v679, 0.0
        %v712 = vmax.f32 %v680, 0.0
        %v713 = vmax.f32 %v681, 0.0
        %v714 = vmax.f32 %v682, 0.0
        %v715 = vmax.f32 %v683, 0.0
        %v716 = vmax.f32 %v684, 0.0
        %v717 = vmax.f32 %v685, 0.0
        %v718 = vmax.f32 %v686, 0.0
        %v719 = vmax.f32 %v687, 0.0
        %v720 = vmax.f32 %v688, 0.0
        %v721 = vmax.f32 %v689, 0.0
        %v722 = vmax.f32 %v690, 0.0
        %v723 = vmax.f32 %v691, 0.0
        %v724 = vmax.f32 %v692, 0.0
        %v725 = vmax.f32 %v693, 0.0
        %v726 = vmax.f32 %v694, 0.0
        %v727 = vmax.f32 %v695, 0.0
        %v728 = vmax.f32 %v696, 0.0
        %v729 = vmax.f32 %v697, 0.0
        %v730 = vmax.f32 %v698, 0.0
        %v731 = vlaneseq
        %v732 = vshrl.u32 %v731, 7
        %v733 = vsub.s32 2, %v732
        %v734 = vrot.slane %v590, %v733
        %v735 = vsub.f32 %v734, %v490
        %v736 = vsub.f32 %v734, %v491
        %v737 = vsub.f32 %v734, %v492
        %v738 = vsub.f32 %v734, %v493
        %v739 = vsub.f32 %v734, %v494
        %v740 = vsub.f32 %v734, %v495
        %v741 = vsub.f32 %v734, %v496
        %v742 = vsub.f32 %v734, %v497
        %v743 = vsub.f32 %v734, %v498
        %v744 = vsub.f32 %v734, %v499
        %v745 = vsub.f32 %v734, %v500
        %v746 = vsub.f32 %v734, %v501
        %v747 = vsub.f32 %v734, %v502
        %v748 = vsub.f32 %v734, %v503
        %v749 = vsub.f32 %v734, %v504
        %v750 = vsub.f32 %v734, %v505
        %v751 = vsub.f32 %v734, %v506
        %v752 = vsub.f32 %v734, %v507
        %v753 = vsub.f32 %v734, %v508
        %v754 = vsub.f32 %v734, %v509
        %v755 = vsub.f32 %v734, %v510
        %v756 = vsub.f32 %v734, %v511
        %v757 = vsub.f32 %v734, %v512
        %v758 = vsub.f32 %v734, %v513
        %v759 = vsub.f32 %v734, %v514
        %v760 = vsub.f32 %v734, %v515
        %v761 = vsub.f32 %v734, %v516
        %v762 = vsub.f32 %v734, %v517
        %v763 = vsub.f32 %v734, %v518
        %v764 = vsub.f32 %v734, %v519
        %v765 = vsub.f32 %v734, %v520
        %v766 = vsub.f32 %v734, %v521
        %v767 = vand.u32 2147483647, %v735
        %v768 = vand.u32 2147483647, %v736
        %v769 = vand.u32 2147483647, %v737
        %v770 = vand.u32 2147483647, %v738
        %v771 = vand.u32 2147483647, %v739
        %v772 = vand.u32 2147483647, %v740
        %v773 = vand.u32 2147483647, %v741
        %v774 = vand.u32 2147483647, %v742
        %v775 = vand.u32 2147483647, %v743
        %v776 = vand.u32 2147483647, %v744
        %v777 = vand.u32 2147483647, %v745
        %v778 = vand.u32 2147483647, %v746
        %v779 = vand.u32 2147483647, %v747
        %v780 = vand.u32 2147483647, %v748
        %v781 = vand.u32 2147483647, %v749
        %v782 = vand.u32 2147483647, %v750
        %v783 = vand.u32 2147483647, %v751
        %v784 = vand.u32 2147483647, %v752
        %v785 = vand.u32 2147483647, %v753
        %v786 = vand.u32 2147483647, %v754
        %v787 = vand.u32 2147483647, %v755
        %v788 = vand.u32 2147483647, %v756
        %v789 = vand.u32 2147483647, %v757
        %v790 = vand.u32 2147483647, %v758
        %v791 = vand.u32 2147483647, %v759
        %v792 = vand.u32 2147483647, %v760
        %v793 = vand.u32 2147483647, %v761
        %v794 = vand.u32 2147483647, %v762
        %v795 = vand.u32 2147483647, %v763
        %v796 = vand.u32 2147483647, %v764
        %v797 = vand.u32 2147483647, %v765
        %v798 = vand.u32 2147483647, %v766
        %v799 = vsub.f32 1.0, %v767
        %v800 = vsub.f32 1.0, %v768
        %v801 = vsub.f32 1.0, %v769
        %v802 = vsub.f32 1.0, %v770
        %v803 = vsub.f32 1.0, %v771
        %v804 = vsub.f32 1.0, %v772
        %v805 = vsub.f32 1.0, %v773
        %v806 = vsub.f32 1.0, %v774
        %v807 = vsub.f32 1.0, %v775
        %v808 = vsub.f32 1.0, %v776
        %v809 = vsub.f32 1.0, %v777
        %v810 = vsub.f32 1.0, %v778
        %v811 = vsub.f32 1.0, %v779
        %v812 = vsub.f32 1.0, %v780
        %v813 = vsub.f32 1.0, %v781
        %v814 = vsub.f32 1.0, %v782
        %v815 = vsub.f32 1.0, %v783
        %v816 = vsub.f32 1.0, %v784
        %v817 = vsub.f32 1.0, %v785
        %v818 = vsub.f32 1.0, %v786
        %v819 = vsub.f32 1.0, %v787
        %v820 = vsub.f32 1.0, %v788
        %v821 = vsub.f32 1.0, %v789
        %v822 = vsub.f32 1.0, %v790
        %v823 = vsub.f32 1.0, %v791
        %v824 = vsub.f32 1.0, %v792
        %v825 = vsub.f32 1.0, %v793
        %v826 = vsub.f32 1.0, %v794
        %v827 = vsub.f32 1.0, %v795
        %v828 = vsub.f32 1.0, %v796
        %v829 = vsub.f32 1.0, %v797
        %v830 = vsub.f32 1.0, %v798
        %v831 = vmax.f32 %v799, 0.0
        %v832 = vmax.f32 %v800, 0.0
        %v833 = vmax.f32 %v801, 0.0
        %v834 = vmax.f32 %v802, 0.0
        %v835 = vmax.f32 %v803, 0.0
        %v836 = vmax.f32 %v804, 0.0
        %v837 = vmax.f32 %v805, 0.0
        %v838 = vmax.f32 %v806, 0.0
        %v839 = vmax.f32 %v807, 0.0
        %v840 = vmax.f32 %v808, 0.0
        %v841 = vmax.f32 %v809, 0.0
        %v842 = vmax.f32 %v810, 0.0
        %v843 = vmax.f32 %v811, 0.0
        %v844 = vmax.f32 %v812, 0.0
        %v845 = vmax.f32 %v813, 0.0
        %v846 = vmax.f32 %v814, 0.0
        %v847 = vmax.f32 %v815, 0.0
        %v848 = vmax.f32 %v816, 0.0
        %v849 = vmax.f32 %v817, 0.0
        %v850 = vmax.f32 %v818, 0.0
        %v851 = vmax.f32 %v819, 0.0
        %v852 = vmax.f32 %v820, 0.0
        %v853 = vmax.f32 %v821, 0.0
        %v854 = vmax.f32 %v822, 0.0
        %v855 = vmax.f32 %v823, 0.0
        %v856 = vmax.f32 %v824, 0.0
        %v857 = vmax.f32 %v825, 0.0
        %v858 = vmax.f32 %v826, 0.0
        %v859 = vmax.f32 %v827, 0.0
        %v860 = vmax.f32 %v828, 0.0
        %v861 = vmax.f32 %v829, 0.0
        %v862 = vmax.f32 %v830, 0.0
        %v863 = vmul.f32 %v699, %v831
        %v864 = vmul.f32 %v700, %v832
        %v865 = vmul.f32 %v701, %v833
        %v866 = vmul.f32 %v702, %v834
        %v867 = vmul.f32 %v703, %v835
        %v868 = vmul.f32 %v704, %v836
        %v869 = vmul.f32 %v705, %v837
        %v870 = vmul.f32 %v706, %v838
        %v871 = vmul.f32 %v707, %v839
        %v872 = vmul.f32 %v708, %v840
        %v873 = vmul.f32 %v709, %v841
        %v874 = vmul.f32 %v710, %v842
        %v875 = vmul.f32 %v711, %v843
        %v876 = vmul.f32 %v712, %v844
        %v877 = vmul.f32 %v713, %v845
        %v878 = vmul.f32 %v714, %v846
        %v879 = vmul.f32 %v715, %v847
        %v880 = vmul.f32 %v716, %v848
        %v881 = vmul.f32 %v717, %v849
        %v882 = vmul.f32 %v718, %v850
        %v883 = vmul.f32 %v719, %v851
        %v884 = vmul.f32 %v720, %v852
        %v885 = vmul.f32 %v721, %v853
        %v886 = vmul.f32 %v722, %v854
        %v887 = vmul.f32 %v723, %v855
        %v888 = vmul.f32 %v724, %v856
        %v889 = vmul.f32 %v725, %v857
        %v890 = vmul.f32 %v726, %v858
        %v891 = vmul.f32 %v727, %v859
        %v892 = vmul.f32 %v728, %v860
        %v893 = vmul.f32 %v729, %v861
        %v894 = vmul.f32 %v730, %v862
        %v895 = vld [vmem:[%s335] sm:$0xff]
        %v896 = vld [vmem:[%s335 + $0x8] sm:$0xff]
        %v897 = vld [vmem:[%s335 + $0x10] sm:$0xff]
        %v898 = vld [vmem:[%s335 + $0x18] sm:$0xff]
        %v899 = vld [vmem:[%s335 + $0x20] sm:$0xff]
        %v900 = vld [vmem:[%s335 + $0x28] sm:$0xff]
        %v901 = vld [vmem:[%s335 + $0x30] sm:$0xff]
        %v902 = vld [vmem:[%s335 + $0x38] sm:$0xff]
        %v903 = vlaneseq
        %v904 = vshrl.u32 %v903, 7
        %v905 = vsub.s32 1, %v904
        %v906 = vrot.slane %v590, %v905
        %v907 = vsub.f32 %v906, %v490
        %v908 = vsub.f32 %v906, %v491
        %v909 = vsub.f32 %v906, %v492
        %v910 = vsub.f32 %v906, %v493
        %v911 = vsub.f32 %v906, %v494
        %v912 = vsub.f32 %v906, %v495
        %v913 = vsub.f32 %v906, %v496
        %v914 = vsub.f32 %v906, %v497
        %v915 = vsub.f32 %v906, %v498
        %v916 = vsub.f32 %v906, %v499
        %v917 = vsub.f32 %v906, %v500
        %v918 = vsub.f32 %v906, %v501
        %v919 = vsub.f32 %v906, %v502
        %v920 = vsub.f32 %v906, %v503
        %v921 = vsub.f32 %v906, %v504
        %v922 = vsub.f32 %v906, %v505
        %v923 = vsub.f32 %v906, %v506
        %v924 = vsub.f32 %v906, %v507
        %v925 = vsub.f32 %v906, %v508
        %v926 = vsub.f32 %v906, %v509
        %v927 = vsub.f32 %v906, %v510
        %v928 = vsub.f32 %v906, %v511
        %v929 = vsub.f32 %v906, %v512
        %v930 = vsub.f32 %v906, %v513
        %v931 = vsub.f32 %v906, %v514
        %v932 = vsub.f32 %v906, %v515
        %v933 = vsub.f32 %v906, %v516
        %v934 = vsub.f32 %v906, %v517
        %v935 = vsub.f32 %v906, %v518
        %v936 = vsub.f32 %v906, %v519
        %v937 = vsub.f32 %v906, %v520
        %v938 = vsub.f32 %v906, %v521
        %v939 = vand.u32 2147483647, %v907
        %v940 = vand.u32 2147483647, %v908
        %v941 = vand.u32 2147483647, %v909
        %v942 = vand.u32 2147483647, %v910
        %v943 = vand.u32 2147483647, %v911
        %v944 = vand.u32 2147483647, %v912
        %v945 = vand.u32 2147483647, %v913
        %v946 = vand.u32 2147483647, %v914
        %v947 = vand.u32 2147483647, %v915
        %v948 = vand.u32 2147483647, %v916
        %v949 = vand.u32 2147483647, %v917
        %v950 = vand.u32 2147483647, %v918
        %v951 = vand.u32 2147483647, %v919
        %v952 = vand.u32 2147483647, %v920
        %v953 = vand.u32 2147483647, %v921
        %v954 = vand.u32 2147483647, %v922
        %v955 = vand.u32 2147483647, %v923
        %v956 = vand.u32 2147483647, %v924
        %v957 = vand.u32 2147483647, %v925
        %v958 = vand.u32 2147483647, %v926
        %v959 = vand.u32 2147483647, %v927
        %v960 = vand.u32 2147483647, %v928
        %v961 = vand.u32 2147483647, %v929
        %v962 = vand.u32 2147483647, %v930
        %v963 = vand.u32 2147483647, %v931
        %v964 = vand.u32 2147483647, %v932
        %v965 = vand.u32 2147483647, %v933
        %v966 = vand.u32 2147483647, %v934
        %v967 = vand.u32 2147483647, %v935
        %v968 = vand.u32 2147483647, %v936
        %v969 = vand.u32 2147483647, %v937
        %v970 = vand.u32 2147483647, %v938
        %v971 = vsub.f32 1.0, %v939
        %v972 = vsub.f32 1.0, %v940
        %v973 = vsub.f32 1.0, %v941
        %v974 = vsub.f32 1.0, %v942
        %v975 = vsub.f32 1.0, %v943
        %v976 = vsub.f32 1.0, %v944
        %v977 = vsub.f32 1.0, %v945
        %v978 = vsub.f32 1.0, %v946
        %v979 = vsub.f32 1.0, %v947
        %v980 = vsub.f32 1.0, %v948
        %v981 = vsub.f32 1.0, %v949
        %v982 = vsub.f32 1.0, %v950
        %v983 = vsub.f32 1.0, %v951
        %v984 = vsub.f32 1.0, %v952
        %v985 = vsub.f32 1.0, %v953
        %v986 = vsub.f32 1.0, %v954
        %v987 = vsub.f32 1.0, %v955
        %v988 = vsub.f32 1.0, %v956
        %v989 = vsub.f32 1.0, %v957
        %v990 = vsub.f32 1.0, %v958
        %v991 = vsub.f32 1.0, %v959
        %v992 = vsub.f32 1.0, %v960
        %v993 = vsub.f32 1.0, %v961
        %v994 = vsub.f32 1.0, %v962
        %v995 = vsub.f32 1.0, %v963
        %v996 = vsub.f32 1.0, %v964
        %v997 = vsub.f32 1.0, %v965
        %v998 = vsub.f32 1.0, %v966
        %v999 = vsub.f32 1.0, %v967
        %v1000 = vsub.f32 1.0, %v968
        %v1001 = vsub.f32 1.0, %v969
        %v1002 = vsub.f32 1.0, %v970
        %v1003 = vmax.f32 %v971, 0.0
        %v1004 = vmax.f32 %v972, 0.0
        %v1005 = vmax.f32 %v973, 0.0
        %v1006 = vmax.f32 %v974, 0.0
        %v1007 = vmax.f32 %v975, 0.0
        %v1008 = vmax.f32 %v976, 0.0
        %v1009 = vmax.f32 %v977, 0.0
        %v1010 = vmax.f32 %v978, 0.0
        %v1011 = vmax.f32 %v979, 0.0
        %v1012 = vmax.f32 %v980, 0.0
        %v1013 = vmax.f32 %v981, 0.0
        %v1014 = vmax.f32 %v982, 0.0
        %v1015 = vmax.f32 %v983, 0.0
        %v1016 = vmax.f32 %v984, 0.0
        %v1017 = vmax.f32 %v985, 0.0
        %v1018 = vmax.f32 %v986, 0.0
        %v1019 = vmax.f32 %v987, 0.0
        %v1020 = vmax.f32 %v988, 0.0
        %v1021 = vmax.f32 %v989, 0.0
        %v1022 = vmax.f32 %v990, 0.0
        %v1023 = vmax.f32 %v991, 0.0
        %v1024 = vmax.f32 %v992, 0.0
        %v1025 = vmax.f32 %v993, 0.0
        %v1026 = vmax.f32 %v994, 0.0
        %v1027 = vmax.f32 %v995, 0.0
        %v1028 = vmax.f32 %v996, 0.0
        %v1029 = vmax.f32 %v997, 0.0
        %v1030 = vmax.f32 %v998, 0.0
        %v1031 = vmax.f32 %v999, 0.0
        %v1032 = vmax.f32 %v1000, 0.0
        %v1033 = vmax.f32 %v1001, 0.0
        %v1034 = vmax.f32 %v1002, 0.0
        %v1035 = vmul.f32 %v699, %v1003
        %v1036 = vmul.f32 %v700, %v1004
        %v1037 = vmul.f32 %v701, %v1005
        %v1038 = vmul.f32 %v702, %v1006
        %v1039 = vmul.f32 %v703, %v1007
        %v1040 = vmul.f32 %v704, %v1008
        %v1041 = vmul.f32 %v705, %v1009
        %v1042 = vmul.f32 %v706, %v1010
        %v1043 = vmul.f32 %v707, %v1011
        %v1044 = vmul.f32 %v708, %v1012
        %v1045 = vmul.f32 %v709, %v1013
        %v1046 = vmul.f32 %v710, %v1014
        %v1047 = vmul.f32 %v711, %v1015
        %v1048 = vmul.f32 %v712, %v1016
        %v1049 = vmul.f32 %v713, %v1017
        %v1050 = vmul.f32 %v714, %v1018
        %v1051 = vmul.f32 %v715, %v1019
        %v1052 = vmul.f32 %v716, %v1020
        %v1053 = vmul.f32 %v717, %v1021
        %v1054 = vmul.f32 %v718, %v1022
        %v1055 = vmul.f32 %v719, %v1023
        %v1056 = vmul.f32 %v720, %v1024
        %v1057 = vmul.f32 %v721, %v1025
        %v1058 = vmul.f32 %v722, %v1026
        %v1059 = vmul.f32 %v723, %v1027
        %v1060 = vmul.f32 %v724, %v1028
        %v1061 = vmul.f32 %v725, %v1029
        %v1062 = vmul.f32 %v726, %v1030
        %v1063 = vmul.f32 %v727, %v1031
        %v1064 = vmul.f32 %v728, %v1032
        %v1065 = vmul.f32 %v729, %v1033
        %v1066 = vmul.f32 %v730, %v1034
        %1067 = vmatprep.subr.mxu0 0.0
        %v1068 = vand.u32 %v1050, 4294901760
        %1069 = vmatpush1.msra.mxu0 %v1068
        %1070 = vmatprep.subr.mxu0 0.0
        %v1071 = vand.u32 %v1049, 4294901760
        %1072 = vmatpush1.msra.mxu0 %v1071
        %1073 = vmatprep.subr.mxu0 0.0
        %v1074 = vand.u32 %v1048, 4294901760
        %1075 = vmatpush1.msra.mxu0 %v1074
        %1076 = vmatprep.subr.mxu0 0.0
        %v1077 = vand.u32 %v1047, 4294901760
        %1078 = vmatpush1.msra.mxu0 %v1077
        %1079 = vmatprep.subr.mxu0 0.0
        %v1080 = vand.u32 %v1046, 4294901760
        %1081 = vmatpush1.msra.mxu0 %v1080
        %1082 = vmatprep.subr.mxu0 0.0
        %v1083 = vand.u32 %v1045, 4294901760
        %1084 = vmatpush1.msra.mxu0 %v1083
        %1085 = vmatprep.subr.mxu0 0.0
        %v1086 = vand.u32 %v1044, 4294901760
        %1087 = vmatpush1.msra.mxu0 %v1086
        %1088 = vmatprep.subr.mxu0 0.0
        %v1089 = vand.u32 %v1043, 4294901760
        %1090 = vmatpush1.msra.mxu0 %v1089
        %1091 = vmatprep.subr.mxu0 0.0
        %v1092 = vand.u32 %v1042, 4294901760
        %1093 = vmatpush1.msra.mxu0 %v1092
        %1094 = vmatprep.subr.mxu0 0.0
        %v1095 = vand.u32 %v1041, 4294901760
        %1096 = vmatpush1.msra.mxu0 %v1095
        %1097 = vmatprep.subr.mxu0 0.0
        %v1098 = vand.u32 %v1040, 4294901760
        %1099 = vmatpush1.msra.mxu0 %v1098
        %1100 = vmatprep.subr.mxu0 0.0
        %v1101 = vand.u32 %v1039, 4294901760
        %1102 = vmatpush1.msra.mxu0 %v1101
        %1103 = vmatprep.subr.mxu0 0.0
        %v1104 = vand.u32 %v1038, 4294901760
        %1105 = vmatpush1.msra.mxu0 %v1104
        %1106 = vmatprep.subr.mxu0 0.0
        %v1107 = vand.u32 %v1037, 4294901760
        %1108 = vmatpush1.msra.mxu0 %v1107
        %1109 = vmatprep.subr.mxu0 0.0
        %v1110 = vand.u32 %v1036, 4294901760
        %1111 = vmatpush1.msra.mxu0 %v1110
        %1112 = vmatprep.subr.mxu0 0.0
        %v1113 = vand.u32 %v1035, 4294901760
        %1114 = vmatpush1.msra.mxu0 %v1113
        %1115 = vmatprep.subr.mxu0 0.0
        %v1116 = vand.u32 %v1066, 4294901760
        %1117 = vmatpush2.msra.mxu0 %v1116
        %1118 = vmatprep.subr.mxu0 0.0
        %v1119 = vand.u32 %v1065, 4294901760
        %1120 = vmatpush2.msra.mxu0 %v1119
        %1121 = vmatprep.subr.mxu0 0.0
        %v1122 = vand.u32 %v1064, 4294901760
        %1123 = vmatpush2.msra.mxu0 %v1122
        %1124 = vmatprep.subr.mxu0 0.0
        %v1125 = vand.u32 %v1063, 4294901760
        %1126 = vmatpush2.msra.mxu0 %v1125
        %1127 = vmatprep.subr.mxu0 0.0
        %v1128 = vand.u32 %v1062, 4294901760
        %1129 = vmatpush2.msra.mxu0 %v1128
        %1130 = vmatprep.subr.mxu0 0.0
        %v1131 = vand.u32 %v1061, 4294901760
        %1132 = vmatpush2.msra.mxu0 %v1131
        %1133 = vmatprep.subr.mxu0 0.0
        %v1134 = vand.u32 %v1060, 4294901760
        %1135 = vmatpush2.msra.mxu0 %v1134
        %1136 = vmatprep.subr.mxu0 0.0
        %v1137 = vand.u32 %v1059, 4294901760
        %1138 = vmatpush2.msra.mxu0 %v1137
        %1139 = vmatprep.subr.mxu0 0.0
        %v1140 = vand.u32 %v1058, 4294901760
        %1141 = vmatpush2.msra.mxu0 %v1140
        %1142 = vmatprep.subr.mxu0 0.0
        %v1143 = vand.u32 %v1057, 4294901760
        %1144 = vmatpush2.msra.mxu0 %v1143
        %1145 = vmatprep.subr.mxu0 0.0
        %v1146 = vand.u32 %v1056, 4294901760
        %1147 = vmatpush2.msra.mxu0 %v1146
        %1148 = vmatprep.subr.mxu0 0.0
        %v1149 = vand.u32 %v1055, 4294901760
        %1150 = vmatpush2.msra.mxu0 %v1149
        %1151 = vmatprep.subr.mxu0 0.0
        %v1152 = vand.u32 %v1054, 4294901760
        %1153 = vmatpush2.msra.mxu0 %v1152
        %1154 = vmatprep.subr.mxu0 0.0
        %v1155 = vand.u32 %v1053, 4294901760
        %1156 = vmatpush2.msra.mxu0 %v1155
        %1157 = vmatprep.subr.mxu0 0.0
        %v1158 = vand.u32 %v1052, 4294901760
        %1159 = vmatpush2.msra.mxu0 %v1158
        %1160 = vmatprep.subr.mxu0 0.0
        %v1161 = vand.u32 %v1051, 4294901760
        %1162 = vmatpush2.msra.mxu0 %v1161
        %v1163 = vand.u32 %v896, 4294901760
        %v1164 = vsub.f32 %v896, %v1163
        %v1165 = vand.u32 %v1164, 4294901760
        %v1166 = vsub.f32 %v1164, %v1165
        %v1167 = vand.u32 %v1166, 4294901760
        %1168 = vmatprep.mubr.f32.mxu0 %v1167
        %v1169 = vand.u32 %v895, 4294901760
        %v1170 = vsub.f32 %v895, %v1169
        %v1171 = vand.u32 %v1170, 4294901760
        %v1172 = vsub.f32 %v1170, %v1171
        %v1173 = vand.u32 %v1172, 4294901760
        %1174 = vmatmul.mubr.f32.gmra.mxu0 %v1173
        %v1175 = vpop.f32.mrf.mxu0
        %v1176 = vadd.f32 0.0, %v1175
        %v1177 = vpop.f32.mrf.mxu0
        %v1178 = vand.u32 %v898, 4294901760
        %v1179 = vsub.f32 %v898, %v1178
        %v1180 = vand.u32 %v1179, 4294901760
        %v1181 = vsub.f32 %v1179, %v1180
        %v1182 = vand.u32 %v1181, 4294901760
        %1183 = vmatprep.mubr.f32.mxu0 %v1182
        %v1184 = vand.u32 %v897, 4294901760
        %v1185 = vsub.f32 %v897, %v1184
        %v1186 = vand.u32 %v1185, 4294901760
        %v1187 = vsub.f32 %v1185, %v1186
        %v1188 = vand.u32 %v1187, 4294901760
        %1189 = vmatmul.mubr.f32.gmra.mxu0 %v1188
        %v1190 = vpop.f32.mrf.mxu0
        %v1191 = vadd.f32 0.0, %v1190
        %v1192 = vpop.f32.mrf.mxu0
        %v1193 = vand.u32 %v900, 4294901760
        %v1194 = vsub.f32 %v900, %v1193
        %v1195 = vand.u32 %v1194, 4294901760
        %v1196 = vsub.f32 %v1194, %v1195
        %v1197 = vand.u32 %v1196, 4294901760
        %1198 = vmatprep.mubr.f32.mxu0 %v1197
        %v1199 = vand.u32 %v899, 4294901760
        %v1200 = vsub.f32 %v899, %v1199
        %v1201 = vand.u32 %v1200, 4294901760
        %v1202 = vsub.f32 %v1200, %v1201
        %v1203 = vand.u32 %v1202, 4294901760
        %1204 = vmatmul.mubr.f32.gmra.mxu0 %v1203
        %v1205 = vpop.f32.mrf.mxu0
        %v1206 = vadd.f32 0.0, %v1205
        %v1207 = vpop.f32.mrf.mxu0
        %v1208 = vand.u32 %v902, 4294901760
        %v1209 = vsub.f32 %v902, %v1208
        %v1210 = vand.u32 %v1209, 4294901760
        %v1211 = vsub.f32 %v1209, %v1210
        %v1212 = vand.u32 %v1211, 4294901760
        %1213 = vmatprep.mubr.f32.mxu0 %v1212
        %v1214 = vand.u32 %v901, 4294901760
        %v1215 = vsub.f32 %v901, %v1214
        %v1216 = vand.u32 %v1215, 4294901760
        %v1217 = vsub.f32 %v1215, %v1216
        %v1218 = vand.u32 %v1217, 4294901760
        %1219 = vmatmul.mubr.f32.gmra.mxu0 %v1218
        %v1220 = vpop.f32.mrf.mxu0
        %v1221 = vadd.f32 0.0, %v1220
        %v1222 = vpop.f32.mrf.mxu0
        %1223 = vdwg.mxu0
        %1224 = vmatprep.subr.mxu0 0.0
        %v1225 = vand.u32 %v1050, 4294901760
        %v1226 = vsub.f32 %v1050, %v1225
        %v1227 = vand.u32 %v1226, 4294901760
        %v1228 = vsub.f32 %v1226, %v1227
        %v1229 = vand.u32 %v1228, 4294901760
        %1230 = vmatpush1.msra.mxu0 %v1229
        %1231 = vmatprep.subr.mxu0 0.0
        %v1232 = vand.u32 %v1049, 4294901760
        %v1233 = vsub.f32 %v1049, %v1232
        %v1234 = vand.u32 %v1233, 4294901760
        %v1235 = vsub.f32 %v1233, %v1234
        %v1236 = vand.u32 %v1235, 4294901760
        %1237 = vmatpush1.msra.mxu0 %v1236
        %1238 = vmatprep.subr.mxu0 0.0
        %v1239 = vand.u32 %v1048, 4294901760
        %v1240 = vsub.f32 %v1048, %v1239
        %v1241 = vand.u32 %v1240, 4294901760
        %v1242 = vsub.f32 %v1240, %v1241
        %v1243 = vand.u32 %v1242, 4294901760
        %1244 = vmatpush1.msra.mxu0 %v1243
        %1245 = vmatprep.subr.mxu0 0.0
        %v1246 = vand.u32 %v1047, 4294901760
        %v1247 = vsub.f32 %v1047, %v1246
        %v1248 = vand.u32 %v1247, 4294901760
        %v1249 = vsub.f32 %v1247, %v1248
        %v1250 = vand.u32 %v1249, 4294901760
        %1251 = vmatpush1.msra.mxu0 %v1250
        %1252 = vmatprep.subr.mxu0 0.0
        %v1253 = vand.u32 %v1046, 4294901760
        %v1254 = vsub.f32 %v1046, %v1253
        %v1255 = vand.u32 %v1254, 4294901760
        %v1256 = vsub.f32 %v1254, %v1255
        %v1257 = vand.u32 %v1256, 4294901760
        %1258 = vmatpush1.msra.mxu0 %v1257
        %1259 = vmatprep.subr.mxu0 0.0
        %v1260 = vand.u32 %v1045, 4294901760
        %v1261 = vsub.f32 %v1045, %v1260
        %v1262 = vand.u32 %v1261, 4294901760
        %v1263 = vsub.f32 %v1261, %v1262
        %v1264 = vand.u32 %v1263, 4294901760
        %1265 = vmatpush1.msra.mxu0 %v1264
        %1266 = vmatprep.subr.mxu0 0.0
        %v1267 = vand.u32 %v1044, 4294901760
        %v1268 = vsub.f32 %v1044, %v1267
        %v1269 = vand.u32 %v1268, 4294901760
        %v1270 = vsub.f32 %v1268, %v1269
        %v1271 = vand.u32 %v1270, 4294901760
        %1272 = vmatpush1.msra.mxu0 %v1271
        %1273 = vmatprep.subr.mxu0 0.0
        %v1274 = vand.u32 %v1043, 4294901760
        %v1275 = vsub.f32 %v1043, %v1274
        %v1276 = vand.u32 %v1275, 4294901760
        %v1277 = vsub.f32 %v1275, %v1276
        %v1278 = vand.u32 %v1277, 4294901760
        %1279 = vmatpush1.msra.mxu0 %v1278
        %1280 = vmatprep.subr.mxu0 0.0
        %v1281 = vand.u32 %v1042, 4294901760
        %v1282 = vsub.f32 %v1042, %v1281
        %v1283 = vand.u32 %v1282, 4294901760
        %v1284 = vsub.f32 %v1282, %v1283
        %v1285 = vand.u32 %v1284, 4294901760
        %1286 = vmatpush1.msra.mxu0 %v1285
        %1287 = vmatprep.subr.mxu0 0.0
        %v1288 = vand.u32 %v1041, 4294901760
        %v1289 = vsub.f32 %v1041, %v1288
        %v1290 = vand.u32 %v1289, 4294901760
        %v1291 = vsub.f32 %v1289, %v1290
        %v1292 = vand.u32 %v1291, 4294901760
        %1293 = vmatpush1.msra.mxu0 %v1292
        %1294 = vmatprep.subr.mxu0 0.0
        %v1295 = vand.u32 %v1040, 4294901760
        %v1296 = vsub.f32 %v1040, %v1295
        %v1297 = vand.u32 %v1296, 4294901760
        %v1298 = vsub.f32 %v1296, %v1297
        %v1299 = vand.u32 %v1298, 4294901760
        %1300 = vmatpush1.msra.mxu0 %v1299
        %1301 = vmatprep.subr.mxu0 0.0
        %v1302 = vand.u32 %v1039, 4294901760
        %v1303 = vsub.f32 %v1039, %v1302
        %v1304 = vand.u32 %v1303, 4294901760
        %v1305 = vsub.f32 %v1303, %v1304
        %v1306 = vand.u32 %v1305, 4294901760
        %1307 = vmatpush1.msra.mxu0 %v1306
        %1308 = vmatprep.subr.mxu0 0.0
        %v1309 = vand.u32 %v1038, 4294901760
        %v1310 = vsub.f32 %v1038, %v1309
        %v1311 = vand.u32 %v1310, 4294901760
        %v1312 = vsub.f32 %v1310, %v1311
        %v1313 = vand.u32 %v1312, 4294901760
        %1314 = vmatpush1.msra.mxu0 %v1313
        %1315 = vmatprep.subr.mxu0 0.0
        %v1316 = vand.u32 %v1037, 4294901760
        %v1317 = vsub.f32 %v1037, %v1316
        %v1318 = vand.u32 %v1317, 4294901760
        %v1319 = vsub.f32 %v1317, %v1318
        %v1320 = vand.u32 %v1319, 4294901760
        %1321 = vmatpush1.msra.mxu0 %v1320
        %1322 = vmatprep.subr.mxu0 0.0
        %v1323 = vand.u32 %v1036, 4294901760
        %v1324 = vsub.f32 %v1036, %v1323
        %v1325 = vand.u32 %v1324, 4294901760
        %v1326 = vsub.f32 %v1324, %v1325
        %v1327 = vand.u32 %v1326, 4294901760
        %1328 = vmatpush1.msra.mxu0 %v1327
        %1329 = vmatprep.subr.mxu0 0.0
        %v1330 = vand.u32 %v1035, 4294901760
        %v1331 = vsub.f32 %v1035, %v1330
        %v1332 = vand.u32 %v1331, 4294901760
        %v1333 = vsub.f32 %v1331, %v1332
        %v1334 = vand.u32 %v1333, 4294901760
        %1335 = vmatpush1.msra.mxu0 %v1334
        %1336 = vmatprep.subr.mxu0 0.0
        %v1337 = vand.u32 %v1066, 4294901760
        %v1338 = vsub.f32 %v1066, %v1337
        %v1339 = vand.u32 %v1338, 4294901760
        %v1340 = vsub.f32 %v1338, %v1339
        %v1341 = vand.u32 %v1340, 4294901760
        %1342 = vmatpush2.msra.mxu0 %v1341
        %1343 = vmatprep.subr.mxu0 0.0
        %v1344 = vand.u32 %v1065, 4294901760
        %v1345 = vsub.f32 %v1065, %v1344
        %v1346 = vand.u32 %v1345, 4294901760
        %v1347 = vsub.f32 %v1345, %v1346
        %v1348 = vand.u32 %v1347, 4294901760
        %1349 = vmatpush2.msra.mxu0 %v1348
        %1350 = vmatprep.subr.mxu0 0.0
        %v1351 = vand.u32 %v1064, 4294901760
        %v1352 = vsub.f32 %v1064, %v1351
        %v1353 = vand.u32 %v1352, 4294901760
        %v1354 = vsub.f32 %v1352, %v1353
        %v1355 = vand.u32 %v1354, 4294901760
        %1356 = vmatpush2.msra.mxu0 %v1355
        %1357 = vmatprep.subr.mxu0 0.0
        %v1358 = vand.u32 %v1063, 4294901760
        %v1359 = vsub.f32 %v1063, %v1358
        %v1360 = vand.u32 %v1359, 4294901760
        %v1361 = vsub.f32 %v1359, %v1360
        %v1362 = vand.u32 %v1361, 4294901760
        %1363 = vmatpush2.msra.mxu0 %v1362
        %1364 = vmatprep.subr.mxu0 0.0
        %v1365 = vand.u32 %v1062, 4294901760
        %v1366 = vsub.f32 %v1062, %v1365
        %v1367 = vand.u32 %v1366, 4294901760
        %v1368 = vsub.f32 %v1366, %v1367
        %v1369 = vand.u32 %v1368, 4294901760
        %1370 = vmatpush2.msra.mxu0 %v1369
        %1371 = vmatprep.subr.mxu0 0.0
        %v1372 = vand.u32 %v1061, 4294901760
        %v1373 = vsub.f32 %v1061, %v1372
        %v1374 = vand.u32 %v1373, 4294901760
        %v1375 = vsub.f32 %v1373, %v1374
        %v1376 = vand.u32 %v1375, 4294901760
        %1377 = vmatpush2.msra.mxu0 %v1376
        %1378 = vmatprep.subr.mxu0 0.0
        %v1379 = vand.u32 %v1060, 4294901760
        %v1380 = vsub.f32 %v1060, %v1379
        %v1381 = vand.u32 %v1380, 4294901760
        %v1382 = vsub.f32 %v1380, %v1381
        %v1383 = vand.u32 %v1382, 4294901760
        %1384 = vmatpush2.msra.mxu0 %v1383
        %1385 = vmatprep.subr.mxu0 0.0
        %v1386 = vand.u32 %v1059, 4294901760
        %v1387 = vsub.f32 %v1059, %v1386
        %v1388 = vand.u32 %v1387, 4294901760
        %v1389 = vsub.f32 %v1387, %v1388
        %v1390 = vand.u32 %v1389, 4294901760
        %1391 = vmatpush2.msra.mxu0 %v1390
        %1392 = vmatprep.subr.mxu0 0.0
        %v1393 = vand.u32 %v1058, 4294901760
        %v1394 = vsub.f32 %v1058, %v1393
        %v1395 = vand.u32 %v1394, 4294901760
        %v1396 = vsub.f32 %v1394, %v1395
        %v1397 = vand.u32 %v1396, 4294901760
        %1398 = vmatpush2.msra.mxu0 %v1397
        %1399 = vmatprep.subr.mxu0 0.0
        %v1400 = vand.u32 %v1057, 4294901760
        %v1401 = vsub.f32 %v1057, %v1400
        %v1402 = vand.u32 %v1401, 4294901760
        %v1403 = vsub.f32 %v1401, %v1402
        %v1404 = vand.u32 %v1403, 4294901760
        %1405 = vmatpush2.msra.mxu0 %v1404
        %1406 = vmatprep.subr.mxu0 0.0
        %v1407 = vand.u32 %v1056, 4294901760
        %v1408 = vsub.f32 %v1056, %v1407
        %v1409 = vand.u32 %v1408, 4294901760
        %v1410 = vsub.f32 %v1408, %v1409
        %v1411 = vand.u32 %v1410, 4294901760
        %1412 = vmatpush2.msra.mxu0 %v1411
        %1413 = vmatprep.subr.mxu0 0.0
        %v1414 = vand.u32 %v1055, 4294901760
        %v1415 = vsub.f32 %v1055, %v1414
        %v1416 = vand.u32 %v1415, 4294901760
        %v1417 = vsub.f32 %v1415, %v1416
        %v1418 = vand.u32 %v1417, 4294901760
        %1419 = vmatpush2.msra.mxu0 %v1418
        %1420 = vmatprep.subr.mxu0 0.0
        %v1421 = vand.u32 %v1054, 4294901760
        %v1422 = vsub.f32 %v1054, %v1421
        %v1423 = vand.u32 %v1422, 4294901760
        %v1424 = vsub.f32 %v1422, %v1423
        %v1425 = vand.u32 %v1424, 4294901760
        %1426 = vmatpush2.msra.mxu0 %v1425
        %1427 = vmatprep.subr.mxu0 0.0
        %v1428 = vand.u32 %v1053, 4294901760
        %v1429 = vsub.f32 %v1053, %v1428
        %v1430 = vand.u32 %v1429, 4294901760
        %v1431 = vsub.f32 %v1429, %v1430
        %v1432 = vand.u32 %v1431, 4294901760
        %1433 = vmatpush2.msra.mxu0 %v1432
        %1434 = vmatprep.subr.mxu0 0.0
        %v1435 = vand.u32 %v1052, 4294901760
        %v1436 = vsub.f32 %v1052, %v1435
        %v1437 = vand.u32 %v1436, 4294901760
        %v1438 = vsub.f32 %v1436, %v1437
        %v1439 = vand.u32 %v1438, 4294901760
        %1440 = vmatpush2.msra.mxu0 %v1439
        %1441 = vmatprep.subr.mxu0 0.0
        %v1442 = vand.u32 %v1051, 4294901760
        %v1443 = vsub.f32 %v1051, %v1442
        %v1444 = vand.u32 %v1443, 4294901760
        %v1445 = vsub.f32 %v1443, %v1444
        %v1446 = vand.u32 %v1445, 4294901760
        %1447 = vmatpush2.msra.mxu0 %v1446
        %v1448 = vand.u32 %v896, 4294901760
        %1449 = vmatprep.mubr.f32.mxu0 %v1448
        %v1450 = vand.u32 %v895, 4294901760
        %1451 = vmatmul.mubr.f32.gmra.mxu0 %v1450
        %v1452 = vpop.f32.mrf.mxu0
        %v1453 = vadd.f32 %v1176, %v1452
        %v1454 = vpop.f32.mrf.mxu0
        %v1455 = vand.u32 %v898, 4294901760
        %1456 = vmatprep.mubr.f32.mxu0 %v1455
        %v1457 = vand.u32 %v897, 4294901760
        %1458 = vmatmul.mubr.f32.gmra.mxu0 %v1457
        %v1459 = vpop.f32.mrf.mxu0
        %v1460 = vadd.f32 %v1191, %v1459
        %v1461 = vpop.f32.mrf.mxu0
        %v1462 = vand.u32 %v900, 4294901760
        %1463 = vmatprep.mubr.f32.mxu0 %v1462
        %v1464 = vand.u32 %v899, 4294901760
        %1465 = vmatmul.mubr.f32.gmra.mxu0 %v1464
        %v1466 = vpop.f32.mrf.mxu0
        %v1467 = vadd.f32 %v1206, %v1466
        %v1468 = vpop.f32.mrf.mxu0
        %v1469 = vand.u32 %v902, 4294901760
        %1470 = vmatprep.mubr.f32.mxu0 %v1469
        %v1471 = vand.u32 %v901, 4294901760
        %1472 = vmatmul.mubr.f32.gmra.mxu0 %v1471
        %v1473 = vpop.f32.mrf.mxu0
        %v1474 = vadd.f32 %v1221, %v1473
        %v1475 = vpop.f32.mrf.mxu0
        %1476 = vdwg.mxu0
        %1477 = vmatprep.subr.mxu0 0.0
        %v1478 = vand.u32 %v1050, 4294901760
        %v1479 = vsub.f32 %v1050, %v1478
        %1480 = vmatpush1.msra.mxu0 %v1479
        %1481 = vmatprep.subr.mxu0 0.0
        %v1482 = vand.u32 %v1049, 4294901760
        %v1483 = vsub.f32 %v1049, %v1482
        %1484 = vmatpush1.msra.mxu0 %v1483
        %1485 = vmatprep.subr.mxu0 0.0
        %v1486 = vand.u32 %v1048, 4294901760
        %v1487 = vsub.f32 %v1048, %v1486
        %1488 = vmatpush1.msra.mxu0 %v1487
        %1489 = vmatprep.subr.mxu0 0.0
        %v1490 = vand.u32 %v1047, 4294901760
        %v1491 = vsub.f32 %v1047, %v1490
        %1492 = vmatpush1.msra.mxu0 %v1491
        %1493 = vmatprep.subr.mxu0 0.0
        %v1494 = vand.u32 %v1046, 4294901760
        %v1495 = vsub.f32 %v1046, %v1494
        %1496 = vmatpush1.msra.mxu0 %v1495
        %1497 = vmatprep.subr.mxu0 0.0
        %v1498 = vand.u32 %v1045, 4294901760
        %v1499 = vsub.f32 %v1045, %v1498
        %1500 = vmatpush1.msra.mxu0 %v1499
        %1501 = vmatprep.subr.mxu0 0.0
        %v1502 = vand.u32 %v1044, 4294901760
        %v1503 = vsub.f32 %v1044, %v1502
        %1504 = vmatpush1.msra.mxu0 %v1503
        %1505 = vmatprep.subr.mxu0 0.0
        %v1506 = vand.u32 %v1043, 4294901760
        %v1507 = vsub.f32 %v1043, %v1506
        %1508 = vmatpush1.msra.mxu0 %v1507
        %1509 = vmatprep.subr.mxu0 0.0
        %v1510 = vand.u32 %v1042, 4294901760
        %v1511 = vsub.f32 %v1042, %v1510
        %1512 = vmatpush1.msra.mxu0 %v1511
        %1513 = vmatprep.subr.mxu0 0.0
        %v1514 = vand.u32 %v1041, 4294901760
        %v1515 = vsub.f32 %v1041, %v1514
        %1516 = vmatpush1.msra.mxu0 %v1515
        %1517 = vmatprep.subr.mxu0 0.0
        %v1518 = vand.u32 %v1040, 4294901760
        %v1519 = vsub.f32 %v1040, %v1518
        %1520 = vmatpush1.msra.mxu0 %v1519
        %1521 = vmatprep.subr.mxu0 0.0
        %v1522 = vand.u32 %v1039, 4294901760
        %v1523 = vsub.f32 %v1039, %v1522
        %1524 = vmatpush1.msra.mxu0 %v1523
        %1525 = vmatprep.subr.mxu0 0.0
        %v1526 = vand.u32 %v1038, 4294901760
        %v1527 = vsub.f32 %v1038, %v1526
        %1528 = vmatpush1.msra.mxu0 %v1527
        %1529 = vmatprep.subr.mxu0 0.0
        %v1530 = vand.u32 %v1037, 4294901760
        %v1531 = vsub.f32 %v1037, %v1530
        %1532 = vmatpush1.msra.mxu0 %v1531
        %1533 = vmatprep.subr.mxu0 0.0
        %v1534 = vand.u32 %v1036, 4294901760
        %v1535 = vsub.f32 %v1036, %v1534
        %1536 = vmatpush1.msra.mxu0 %v1535
        %1537 = vmatprep.subr.mxu0 0.0
        %v1538 = vand.u32 %v1035, 4294901760
        %v1539 = vsub.f32 %v1035, %v1538
        %1540 = vmatpush1.msra.mxu0 %v1539
        %1541 = vmatprep.subr.mxu0 0.0
        %v1542 = vand.u32 %v1066, 4294901760
        %v1543 = vsub.f32 %v1066, %v1542
        %1544 = vmatpush2.msra.mxu0 %v1543
        %1545 = vmatprep.subr.mxu0 0.0
        %v1546 = vand.u32 %v1065, 4294901760
        %v1547 = vsub.f32 %v1065, %v1546
        %1548 = vmatpush2.msra.mxu0 %v1547
        %1549 = vmatprep.subr.mxu0 0.0
        %v1550 = vand.u32 %v1064, 4294901760
        %v1551 = vsub.f32 %v1064, %v1550
        %1552 = vmatpush2.msra.mxu0 %v1551
        %1553 = vmatprep.subr.mxu0 0.0
        %v1554 = vand.u32 %v1063, 4294901760
        %v1555 = vsub.f32 %v1063, %v1554
        %1556 = vmatpush2.msra.mxu0 %v1555
        %1557 = vmatprep.subr.mxu0 0.0
        %v1558 = vand.u32 %v1062, 4294901760
        %v1559 = vsub.f32 %v1062, %v1558
        %1560 = vmatpush2.msra.mxu0 %v1559
        %1561 = vmatprep.subr.mxu0 0.0
        %v1562 = vand.u32 %v1061, 4294901760
        %v1563 = vsub.f32 %v1061, %v1562
        %1564 = vmatpush2.msra.mxu0 %v1563
        %1565 = vmatprep.subr.mxu0 0.0
        %v1566 = vand.u32 %v1060, 4294901760
        %v1567 = vsub.f32 %v1060, %v1566
        %1568 = vmatpush2.msra.mxu0 %v1567
        %1569 = vmatprep.subr.mxu0 0.0
        %v1570 = vand.u32 %v1059, 4294901760
        %v1571 = vsub.f32 %v1059, %v1570
        %1572 = vmatpush2.msra.mxu0 %v1571
        %1573 = vmatprep.subr.mxu0 0.0
        %v1574 = vand.u32 %v1058, 4294901760
        %v1575 = vsub.f32 %v1058, %v1574
        %1576 = vmatpush2.msra.mxu0 %v1575
        %1577 = vmatprep.subr.mxu0 0.0
        %v1578 = vand.u32 %v1057, 4294901760
        %v1579 = vsub.f32 %v1057, %v1578
        %1580 = vmatpush2.msra.mxu0 %v1579
        %1581 = vmatprep.subr.mxu0 0.0
        %v1582 = vand.u32 %v1056, 4294901760
        %v1583 = vsub.f32 %v1056, %v1582
        %1584 = vmatpush2.msra.mxu0 %v1583
        %1585 = vmatprep.subr.mxu0 0.0
        %v1586 = vand.u32 %v1055, 4294901760
        %v1587 = vsub.f32 %v1055, %v1586
        %1588 = vmatpush2.msra.mxu0 %v1587
        %1589 = vmatprep.subr.mxu0 0.0
        %v1590 = vand.u32 %v1054, 4294901760
        %v1591 = vsub.f32 %v1054, %v1590
        %1592 = vmatpush2.msra.mxu0 %v1591
        %1593 = vmatprep.subr.mxu0 0.0
        %v1594 = vand.u32 %v1053, 4294901760
        %v1595 = vsub.f32 %v1053, %v1594
        %1596 = vmatpush2.msra.mxu0 %v1595
        %1597 = vmatprep.subr.mxu0 0.0
        %v1598 = vand.u32 %v1052, 4294901760
        %v1599 = vsub.f32 %v1052, %v1598
        %1600 = vmatpush2.msra.mxu0 %v1599
        %1601 = vmatprep.subr.mxu0 0.0
        %v1602 = vand.u32 %v1051, 4294901760
        %v1603 = vsub.f32 %v1051, %v1602
        %1604 = vmatpush2.msra.mxu0 %v1603
        %v1605 = vand.u32 %v896, 4294901760
        %v1606 = vsub.f32 %v896, %v1605
        %1607 = vmatprep.mubr.f32.mxu0 %v1606
        %v1608 = vand.u32 %v895, 4294901760
        %v1609 = vsub.f32 %v895, %v1608
        %1610 = vmatmul.mubr.f32.gmra.mxu0 %v1609
        %v1611 = vpop.f32.mrf.mxu0
        %v1612 = vadd.f32 %v1453, %v1611
        %v1613 = vpop.f32.mrf.mxu0
        %v1614 = vand.u32 %v898, 4294901760
        %v1615 = vsub.f32 %v898, %v1614
        %1616 = vmatprep.mubr.f32.mxu0 %v1615
        %v1617 = vand.u32 %v897, 4294901760
        %v1618 = vsub.f32 %v897, %v1617
        %1619 = vmatmul.mubr.f32.gmra.mxu0 %v1618
        %v1620 = vpop.f32.mrf.mxu0
        %v1621 = vadd.f32 %v1460, %v1620
        %v1622 = vpop.f32.mrf.mxu0
        %v1623 = vand.u32 %v900, 4294901760
        %v1624 = vsub.f32 %v900, %v1623
        %1625 = vmatprep.mubr.f32.mxu0 %v1624
        %v1626 = vand.u32 %v899, 4294901760
        %v1627 = vsub.f32 %v899, %v1626
        %1628 = vmatmul.mubr.f32.gmra.mxu0 %v1627
        %v1629 = vpop.f32.mrf.mxu0
        %v1630 = vadd.f32 %v1467, %v1629
        %v1631 = vpop.f32.mrf.mxu0
        %v1632 = vand.u32 %v902, 4294901760
        %v1633 = vsub.f32 %v902, %v1632
        %1634 = vmatprep.mubr.f32.mxu0 %v1633
        %v1635 = vand.u32 %v901, 4294901760
        %v1636 = vsub.f32 %v901, %v1635
        %1637 = vmatmul.mubr.f32.gmra.mxu0 %v1636
        %v1638 = vpop.f32.mrf.mxu0
        %v1639 = vadd.f32 %v1474, %v1638
        %v1640 = vpop.f32.mrf.mxu0
        %1641 = vdwg.mxu0
        %1642 = vmatprep.subr.mxu0 0.0
        %v1643 = vand.u32 %v1050, 4294901760
        %1644 = vmatpush1.msra.mxu0 %v1643
        %1645 = vmatprep.subr.mxu0 0.0
        %v1646 = vand.u32 %v1049, 4294901760
        %1647 = vmatpush1.msra.mxu0 %v1646
        %1648 = vmatprep.subr.mxu0 0.0
        %v1649 = vand.u32 %v1048, 4294901760
        %1650 = vmatpush1.msra.mxu0 %v1649
        %1651 = vmatprep.subr.mxu0 0.0
        %v1652 = vand.u32 %v1047, 4294901760
        %1653 = vmatpush1.msra.mxu0 %v1652
        %1654 = vmatprep.subr.mxu0 0.0
        %v1655 = vand.u32 %v1046, 4294901760
        %1656 = vmatpush1.msra.mxu0 %v1655
        %1657 = vmatprep.subr.mxu0 0.0
        %v1658 = vand.u32 %v1045, 4294901760
        %1659 = vmatpush1.msra.mxu0 %v1658
        %1660 = vmatprep.subr.mxu0 0.0
        %v1661 = vand.u32 %v1044, 4294901760
        %1662 = vmatpush1.msra.mxu0 %v1661
        %1663 = vmatprep.subr.mxu0 0.0
        %v1664 = vand.u32 %v1043, 4294901760
        %1665 = vmatpush1.msra.mxu0 %v1664
        %1666 = vmatprep.subr.mxu0 0.0
        %v1667 = vand.u32 %v1042, 4294901760
        %1668 = vmatpush1.msra.mxu0 %v1667
        %1669 = vmatprep.subr.mxu0 0.0
        %v1670 = vand.u32 %v1041, 4294901760
        %1671 = vmatpush1.msra.mxu0 %v1670
        %1672 = vmatprep.subr.mxu0 0.0
        %v1673 = vand.u32 %v1040, 4294901760
        %1674 = vmatpush1.msra.mxu0 %v1673
        %1675 = vmatprep.subr.mxu0 0.0
        %v1676 = vand.u32 %v1039, 4294901760
        %1677 = vmatpush1.msra.mxu0 %v1676
        %1678 = vmatprep.subr.mxu0 0.0
        %v1679 = vand.u32 %v1038, 4294901760
        %1680 = vmatpush1.msra.mxu0 %v1679
        %1681 = vmatprep.subr.mxu0 0.0
        %v1682 = vand.u32 %v1037, 4294901760
        %1683 = vmatpush1.msra.mxu0 %v1682
        %1684 = vmatprep.subr.mxu0 0.0
        %v1685 = vand.u32 %v1036, 4294901760
        %1686 = vmatpush1.msra.mxu0 %v1685
        %1687 = vmatprep.subr.mxu0 0.0
        %v1688 = vand.u32 %v1035, 4294901760
        %1689 = vmatpush1.msra.mxu0 %v1688
        %1690 = vmatprep.subr.mxu0 0.0
        %v1691 = vand.u32 %v1066, 4294901760
        %1692 = vmatpush2.msra.mxu0 %v1691
        %1693 = vmatprep.subr.mxu0 0.0
        %v1694 = vand.u32 %v1065, 4294901760
        %1695 = vmatpush2.msra.mxu0 %v1694
        %1696 = vmatprep.subr.mxu0 0.0
        %v1697 = vand.u32 %v1064, 4294901760
        %1698 = vmatpush2.msra.mxu0 %v1697
        %1699 = vmatprep.subr.mxu0 0.0
        %v1700 = vand.u32 %v1063, 4294901760
        %1701 = vmatpush2.msra.mxu0 %v1700
        %1702 = vmatprep.subr.mxu0 0.0
        %v1703 = vand.u32 %v1062, 4294901760
        %1704 = vmatpush2.msra.mxu0 %v1703
        %1705 = vmatprep.subr.mxu0 0.0
        %v1706 = vand.u32 %v1061, 4294901760
        %1707 = vmatpush2.msra.mxu0 %v1706
        %1708 = vmatprep.subr.mxu0 0.0
        %v1709 = vand.u32 %v1060, 4294901760
        %1710 = vmatpush2.msra.mxu0 %v1709
        %1711 = vmatprep.subr.mxu0 0.0
        %v1712 = vand.u32 %v1059, 4294901760
        %1713 = vmatpush2.msra.mxu0 %v1712
        %1714 = vmatprep.subr.mxu0 0.0
        %v1715 = vand.u32 %v1058, 4294901760
        %1716 = vmatpush2.msra.mxu0 %v1715
        %1717 = vmatprep.subr.mxu0 0.0
        %v1718 = vand.u32 %v1057, 4294901760
        %1719 = vmatpush2.msra.mxu0 %v1718
        %1720 = vmatprep.subr.mxu0 0.0
        %v1721 = vand.u32 %v1056, 4294901760
        %1722 = vmatpush2.msra.mxu0 %v1721
        %1723 = vmatprep.subr.mxu0 0.0
        %v1724 = vand.u32 %v1055, 4294901760
        %1725 = vmatpush2.msra.mxu0 %v1724
        %1726 = vmatprep.subr.mxu0 0.0
        %v1727 = vand.u32 %v1054, 4294901760
        %1728 = vmatpush2.msra.mxu0 %v1727
        %1729 = vmatprep.subr.mxu0 0.0
        %v1730 = vand.u32 %v1053, 4294901760
        %1731 = vmatpush2.msra.mxu0 %v1730
        %1732 = vmatprep.subr.mxu0 0.0
        %v1733 = vand.u32 %v1052, 4294901760
        %1734 = vmatpush2.msra.mxu0 %v1733
        %1735 = vmatprep.subr.mxu0 0.0
        %v1736 = vand.u32 %v1051, 4294901760
        %1737 = vmatpush2.msra.mxu0 %v1736
        %v1738 = vand.u32 %v896, 4294901760
        %v1739 = vsub.f32 %v896, %v1738
        %v1740 = vand.u32 %v1739, 4294901760
        %1741 = vmatprep.mubr.f32.mxu0 %v1740
        %v1742 = vand.u32 %v895, 4294901760
        %v1743 = vsub.f32 %v895, %v1742
        %v1744 = vand.u32 %v1743, 4294901760
        %1745 = vmatmul.mubr.f32.gmra.mxu0 %v1744
        %v1746 = vpop.f32.mrf.mxu0
        %v1747 = vadd.f32 %v1612, %v1746
        %v1748 = vpop.f32.mrf.mxu0
        %v1749 = vand.u32 %v898, 4294901760
        %v1750 = vsub.f32 %v898, %v1749
        %v1751 = vand.u32 %v1750, 4294901760
        %1752 = vmatprep.mubr.f32.mxu0 %v1751
        %v1753 = vand.u32 %v897, 4294901760
        %v1754 = vsub.f32 %v897, %v1753
        %v1755 = vand.u32 %v1754, 4294901760
        %1756 = vmatmul.mubr.f32.gmra.mxu0 %v1755
        %v1757 = vpop.f32.mrf.mxu0
        %v1758 = vadd.f32 %v1621, %v1757
        %v1759 = vpop.f32.mrf.mxu0
        %v1760 = vand.u32 %v900, 4294901760
        %v1761 = vsub.f32 %v900, %v1760
        %v1762 = vand.u32 %v1761, 4294901760
        %1763 = vmatprep.mubr.f32.mxu0 %v1762
        %v1764 = vand.u32 %v899, 4294901760
        %v1765 = vsub.f32 %v899, %v1764
        %v1766 = vand.u32 %v1765, 4294901760
        %1767 = vmatmul.mubr.f32.gmra.mxu0 %v1766
        %v1768 = vpop.f32.mrf.mxu0
        %v1769 = vadd.f32 %v1630, %v1768
        %v1770 = vpop.f32.mrf.mxu0
        %v1771 = vand.u32 %v902, 4294901760
        %v1772 = vsub.f32 %v902, %v1771
        %v1773 = vand.u32 %v1772, 4294901760
        %1774 = vmatprep.mubr.f32.mxu0 %v1773
        %v1775 = vand.u32 %v901, 4294901760
        %v1776 = vsub.f32 %v901, %v1775
        %v1777 = vand.u32 %v1776, 4294901760
        %1778 = vmatmul.mubr.f32.gmra.mxu0 %v1777
        %v1779 = vpop.f32.mrf.mxu0
        %v1780 = vadd.f32 %v1639, %v1779
        %v1781 = vpop.f32.mrf.mxu0
        %1782 = vdwg.mxu0
        %1783 = vmatprep.subr.mxu0 0.0
        %v1784 = vand.u32 %v1050, 4294901760
        %v1785 = vsub.f32 %v1050, %v1784
        %v1786 = vand.u32 %v1785, 4294901760
        %1787 = vmatpush1.msra.mxu0 %v1786
        %1788 = vmatprep.subr.mxu0 0.0
        %v1789 = vand.u32 %v1049, 4294901760
        %v1790 = vsub.f32 %v1049, %v1789
        %v1791 = vand.u32 %v1790, 4294901760
        %1792 = vmatpush1.msra.mxu0 %v1791
        %1793 = vmatprep.subr.mxu0 0.0
        %v1794 = vand.u32 %v1048, 4294901760
        %v1795 = vsub.f32 %v1048, %v1794
        %v1796 = vand.u32 %v1795, 4294901760
        %1797 = vmatpush1.msra.mxu0 %v1796
        %1798 = vmatprep.subr.mxu0 0.0
        %v1799 = vand.u32 %v1047, 4294901760
        %v1800 = vsub.f32 %v1047, %v1799
        %v1801 = vand.u32 %v1800, 4294901760
        %1802 = vmatpush1.msra.mxu0 %v1801
        %1803 = vmatprep.subr.mxu0 0.0
        %v1804 = vand.u32 %v1046, 4294901760
        %v1805 = vsub.f32 %v1046, %v1804
        %v1806 = vand.u32 %v1805, 4294901760
        %1807 = vmatpush1.msra.mxu0 %v1806
        %1808 = vmatprep.subr.mxu0 0.0
        %v1809 = vand.u32 %v1045, 4294901760
        %v1810 = vsub.f32 %v1045, %v1809
        %v1811 = vand.u32 %v1810, 4294901760
        %1812 = vmatpush1.msra.mxu0 %v1811
        %1813 = vmatprep.subr.mxu0 0.0
        %v1814 = vand.u32 %v1044, 4294901760
        %v1815 = vsub.f32 %v1044, %v1814
        %v1816 = vand.u32 %v1815, 4294901760
        %1817 = vmatpush1.msra.mxu0 %v1816
        %1818 = vmatprep.subr.mxu0 0.0
        %v1819 = vand.u32 %v1043, 4294901760
        %v1820 = vsub.f32 %v1043, %v1819
        %v1821 = vand.u32 %v1820, 4294901760
        %1822 = vmatpush1.msra.mxu0 %v1821
        %1823 = vmatprep.subr.mxu0 0.0
        %v1824 = vand.u32 %v1042, 4294901760
        %v1825 = vsub.f32 %v1042, %v1824
        %v1826 = vand.u32 %v1825, 4294901760
        %1827 = vmatpush1.msra.mxu0 %v1826
        %1828 = vmatprep.subr.mxu0 0.0
        %v1829 = vand.u32 %v1041, 4294901760
        %v1830 = vsub.f32 %v1041, %v1829
        %v1831 = vand.u32 %v1830, 4294901760
        %1832 = vmatpush1.msra.mxu0 %v1831
        %1833 = vmatprep.subr.mxu0 0.0
        %v1834 = vand.u32 %v1040, 4294901760
        %v1835 = vsub.f32 %v1040, %v1834
        %v1836 = vand.u32 %v1835, 4294901760
        %1837 = vmatpush1.msra.mxu0 %v1836
        %1838 = vmatprep.subr.mxu0 0.0
        %v1839 = vand.u32 %v1039, 4294901760
        %v1840 = vsub.f32 %v1039, %v1839
        %v1841 = vand.u32 %v1840, 4294901760
        %1842 = vmatpush1.msra.mxu0 %v1841
        %1843 = vmatprep.subr.mxu0 0.0
        %v1844 = vand.u32 %v1038, 4294901760
        %v1845 = vsub.f32 %v1038, %v1844
        %v1846 = vand.u32 %v1845, 4294901760
        %1847 = vmatpush1.msra.mxu0 %v1846
        %1848 = vmatprep.subr.mxu0 0.0
        %v1849 = vand.u32 %v1037, 4294901760
        %v1850 = vsub.f32 %v1037, %v1849
        %v1851 = vand.u32 %v1850, 4294901760
        %1852 = vmatpush1.msra.mxu0 %v1851
        %1853 = vmatprep.subr.mxu0 0.0
        %v1854 = vand.u32 %v1036, 4294901760
        %v1855 = vsub.f32 %v1036, %v1854
        %v1856 = vand.u32 %v1855, 4294901760
        %1857 = vmatpush1.msra.mxu0 %v1856
        %1858 = vmatprep.subr.mxu0 0.0
        %v1859 = vand.u32 %v1035, 4294901760
        %v1860 = vsub.f32 %v1035, %v1859
        %v1861 = vand.u32 %v1860, 4294901760
        %1862 = vmatpush1.msra.mxu0 %v1861
        %1863 = vmatprep.subr.mxu0 0.0
        %v1864 = vand.u32 %v1066, 4294901760
        %v1865 = vsub.f32 %v1066, %v1864
        %v1866 = vand.u32 %v1865, 4294901760
        %1867 = vmatpush2.msra.mxu0 %v1866
        %1868 = vmatprep.subr.mxu0 0.0
        %v1869 = vand.u32 %v1065, 4294901760
        %v1870 = vsub.f32 %v1065, %v1869
        %v1871 = vand.u32 %v1870, 4294901760
        %1872 = vmatpush2.msra.mxu0 %v1871
        %1873 = vmatprep.subr.mxu0 0.0
        %v1874 = vand.u32 %v1064, 4294901760
        %v1875 = vsub.f32 %v1064, %v1874
        %v1876 = vand.u32 %v1875, 4294901760
        %1877 = vmatpush2.msra.mxu0 %v1876
        %1878 = vmatprep.subr.mxu0 0.0
        %v1879 = vand.u32 %v1063, 4294901760
        %v1880 = vsub.f32 %v1063, %v1879
        %v1881 = vand.u32 %v1880, 4294901760
        %1882 = vmatpush2.msra.mxu0 %v1881
        %1883 = vmatprep.subr.mxu0 0.0
        %v1884 = vand.u32 %v1062, 4294901760
        %v1885 = vsub.f32 %v1062, %v1884
        %v1886 = vand.u32 %v1885, 4294901760
        %1887 = vmatpush2.msra.mxu0 %v1886
        %1888 = vmatprep.subr.mxu0 0.0
        %v1889 = vand.u32 %v1061, 4294901760
        %v1890 = vsub.f32 %v1061, %v1889
        %v1891 = vand.u32 %v1890, 4294901760
        %1892 = vmatpush2.msra.mxu0 %v1891
        %1893 = vmatprep.subr.mxu0 0.0
        %v1894 = vand.u32 %v1060, 4294901760
        %v1895 = vsub.f32 %v1060, %v1894
        %v1896 = vand.u32 %v1895, 4294901760
        %1897 = vmatpush2.msra.mxu0 %v1896
        %1898 = vmatprep.subr.mxu0 0.0
        %v1899 = vand.u32 %v1059, 4294901760
        %v1900 = vsub.f32 %v1059, %v1899
        %v1901 = vand.u32 %v1900, 4294901760
        %1902 = vmatpush2.msra.mxu0 %v1901
        %1903 = vmatprep.subr.mxu0 0.0
        %v1904 = vand.u32 %v1058, 4294901760
        %v1905 = vsub.f32 %v1058, %v1904
        %v1906 = vand.u32 %v1905, 4294901760
        %1907 = vmatpush2.msra.mxu0 %v1906
        %1908 = vmatprep.subr.mxu0 0.0
        %v1909 = vand.u32 %v1057, 4294901760
        %v1910 = vsub.f32 %v1057, %v1909
        %v1911 = vand.u32 %v1910, 4294901760
        %1912 = vmatpush2.msra.mxu0 %v1911
        %1913 = vmatprep.subr.mxu0 0.0
        %v1914 = vand.u32 %v1056, 4294901760
        %v1915 = vsub.f32 %v1056, %v1914
        %v1916 = vand.u32 %v1915, 4294901760
        %1917 = vmatpush2.msra.mxu0 %v1916
        %1918 = vmatprep.subr.mxu0 0.0
        %v1919 = vand.u32 %v1055, 4294901760
        %v1920 = vsub.f32 %v1055, %v1919
        %v1921 = vand.u32 %v1920, 4294901760
        %1922 = vmatpush2.msra.mxu0 %v1921
        %1923 = vmatprep.subr.mxu0 0.0
        %v1924 = vand.u32 %v1054, 4294901760
        %v1925 = vsub.f32 %v1054, %v1924
        %v1926 = vand.u32 %v1925, 4294901760
        %1927 = vmatpush2.msra.mxu0 %v1926
        %1928 = vmatprep.subr.mxu0 0.0
        %v1929 = vand.u32 %v1053, 4294901760
        %v1930 = vsub.f32 %v1053, %v1929
        %v1931 = vand.u32 %v1930, 4294901760
        %1932 = vmatpush2.msra.mxu0 %v1931
        %1933 = vmatprep.subr.mxu0 0.0
        %v1934 = vand.u32 %v1052, 4294901760
        %v1935 = vsub.f32 %v1052, %v1934
        %v1936 = vand.u32 %v1935, 4294901760
        %1937 = vmatpush2.msra.mxu0 %v1936
        %1938 = vmatprep.subr.mxu0 0.0
        %v1939 = vand.u32 %v1051, 4294901760
        %v1940 = vsub.f32 %v1051, %v1939
        %v1941 = vand.u32 %v1940, 4294901760
        %1942 = vmatpush2.msra.mxu0 %v1941
        %v1943 = vand.u32 %v896, 4294901760
        %1944 = vmatprep.mubr.f32.mxu0 %v1943
        %v1945 = vand.u32 %v895, 4294901760
        %1946 = vmatmul.mubr.f32.gmra.mxu0 %v1945
        %v1947 = vpop.f32.mrf.mxu0
        %v1948 = vadd.f32 %v1747, %v1947
        %v1949 = vpop.f32.mrf.mxu0
        %v1950 = vand.u32 %v898, 4294901760
        %1951 = vmatprep.mubr.f32.mxu0 %v1950
        %v1952 = vand.u32 %v897, 4294901760
        %1953 = vmatmul.mubr.f32.gmra.mxu0 %v1952
        %v1954 = vpop.f32.mrf.mxu0
        %v1955 = vadd.f32 %v1758, %v1954
        %v1956 = vpop.f32.mrf.mxu0
        %v1957 = vand.u32 %v900, 4294901760
        %1958 = vmatprep.mubr.f32.mxu0 %v1957
        %v1959 = vand.u32 %v899, 4294901760
        %1960 = vmatmul.mubr.f32.gmra.mxu0 %v1959
        %v1961 = vpop.f32.mrf.mxu0
        %v1962 = vadd.f32 %v1769, %v1961
        %v1963 = vpop.f32.mrf.mxu0
        %v1964 = vand.u32 %v902, 4294901760
        %1965 = vmatprep.mubr.f32.mxu0 %v1964
        %v1966 = vand.u32 %v901, 4294901760
        %1967 = vmatmul.mubr.f32.gmra.mxu0 %v1966
        %v1968 = vpop.f32.mrf.mxu0
        %v1969 = vadd.f32 %v1780, %v1968
        %v1970 = vpop.f32.mrf.mxu0
        %1971 = vdwg.mxu0
        %1972 = vmatprep.subr.mxu0 0.0
        %v1973 = vand.u32 %v1050, 4294901760
        %1974 = vmatpush1.msra.mxu0 %v1973
        %1975 = vmatprep.subr.mxu0 0.0
        %v1976 = vand.u32 %v1049, 4294901760
        %1977 = vmatpush1.msra.mxu0 %v1976
        %1978 = vmatprep.subr.mxu0 0.0
        %v1979 = vand.u32 %v1048, 4294901760
        %1980 = vmatpush1.msra.mxu0 %v1979
        %1981 = vmatprep.subr.mxu0 0.0
        %v1982 = vand.u32 %v1047, 4294901760
        %1983 = vmatpush1.msra.mxu0 %v1982
        %1984 = vmatprep.subr.mxu0 0.0
        %v1985 = vand.u32 %v1046, 4294901760
        %1986 = vmatpush1.msra.mxu0 %v1985
        %1987 = vmatprep.subr.mxu0 0.0
        %v1988 = vand.u32 %v1045, 4294901760
        %1989 = vmatpush1.msra.mxu0 %v1988
        %1990 = vmatprep.subr.mxu0 0.0
        %v1991 = vand.u32 %v1044, 4294901760
        %1992 = vmatpush1.msra.mxu0 %v1991
        %1993 = vmatprep.subr.mxu0 0.0
        %v1994 = vand.u32 %v1043, 4294901760
        %1995 = vmatpush1.msra.mxu0 %v1994
        %1996 = vmatprep.subr.mxu0 0.0
        %v1997 = vand.u32 %v1042, 4294901760
        %1998 = vmatpush1.msra.mxu0 %v1997
        %1999 = vmatprep.subr.mxu0 0.0
        %v2000 = vand.u32 %v1041, 4294901760
        %2001 = vmatpush1.msra.mxu0 %v2000
        %2002 = vmatprep.subr.mxu0 0.0
        %v2003 = vand.u32 %v1040, 4294901760
        %2004 = vmatpush1.msra.mxu0 %v2003
        %2005 = vmatprep.subr.mxu0 0.0
        %v2006 = vand.u32 %v1039, 4294901760
        %2007 = vmatpush1.msra.mxu0 %v2006
        %2008 = vmatprep.subr.mxu0 0.0
        %v2009 = vand.u32 %v1038, 4294901760
        %2010 = vmatpush1.msra.mxu0 %v2009
        %2011 = vmatprep.subr.mxu0 0.0
        %v2012 = vand.u32 %v1037, 4294901760
        %2013 = vmatpush1.msra.mxu0 %v2012
        %2014 = vmatprep.subr.mxu0 0.0
        %v2015 = vand.u32 %v1036, 4294901760
        %2016 = vmatpush1.msra.mxu0 %v2015
        %2017 = vmatprep.subr.mxu0 0.0
        %v2018 = vand.u32 %v1035, 4294901760
        %2019 = vmatpush1.msra.mxu0 %v2018
        %2020 = vmatprep.subr.mxu0 0.0
        %v2021 = vand.u32 %v1066, 4294901760
        %2022 = vmatpush2.msra.mxu0 %v2021
        %2023 = vmatprep.subr.mxu0 0.0
        %v2024 = vand.u32 %v1065, 4294901760
        %2025 = vmatpush2.msra.mxu0 %v2024
        %2026 = vmatprep.subr.mxu0 0.0
        %v2027 = vand.u32 %v1064, 4294901760
        %2028 = vmatpush2.msra.mxu0 %v2027
        %2029 = vmatprep.subr.mxu0 0.0
        %v2030 = vand.u32 %v1063, 4294901760
        %2031 = vmatpush2.msra.mxu0 %v2030
        %2032 = vmatprep.subr.mxu0 0.0
        %v2033 = vand.u32 %v1062, 4294901760
        %2034 = vmatpush2.msra.mxu0 %v2033
        %2035 = vmatprep.subr.mxu0 0.0
        %v2036 = vand.u32 %v1061, 4294901760
        %2037 = vmatpush2.msra.mxu0 %v2036
        %2038 = vmatprep.subr.mxu0 0.0
        %v2039 = vand.u32 %v1060, 4294901760
        %2040 = vmatpush2.msra.mxu0 %v2039
        %2041 = vmatprep.subr.mxu0 0.0
        %v2042 = vand.u32 %v1059, 4294901760
        %2043 = vmatpush2.msra.mxu0 %v2042
        %2044 = vmatprep.subr.mxu0 0.0
        %v2045 = vand.u32 %v1058, 4294901760
        %2046 = vmatpush2.msra.mxu0 %v2045
        %2047 = vmatprep.subr.mxu0 0.0
        %v2048 = vand.u32 %v1057, 4294901760
        %2049 = vmatpush2.msra.mxu0 %v2048
        %2050 = vmatprep.subr.mxu0 0.0
        %v2051 = vand.u32 %v1056, 4294901760
        %2052 = vmatpush2.msra.mxu0 %v2051
        %2053 = vmatprep.subr.mxu0 0.0
        %v2054 = vand.u32 %v1055, 4294901760
        %2055 = vmatpush2.msra.mxu0 %v2054
        %2056 = vmatprep.subr.mxu0 0.0
        %v2057 = vand.u32 %v1054, 4294901760
        %2058 = vmatpush2.msra.mxu0 %v2057
        %2059 = vmatprep.subr.mxu0 0.0
        %v2060 = vand.u32 %v1053, 4294901760
        %2061 = vmatpush2.msra.mxu0 %v2060
        %2062 = vmatprep.subr.mxu0 0.0
        %v2063 = vand.u32 %v1052, 4294901760
        %2064 = vmatpush2.msra.mxu0 %v2063
        %2065 = vmatprep.subr.mxu0 0.0
        %v2066 = vand.u32 %v1051, 4294901760
        %2067 = vmatpush2.msra.mxu0 %v2066
        %v2068 = vand.u32 %v896, 4294901760
        %2069 = vmatprep.mubr.f32.mxu0 %v2068
        %v2070 = vand.u32 %v895, 4294901760
        %2071 = vmatmul.mubr.f32.gmra.mxu0 %v2070
        %v2072 = vpop.f32.mrf.mxu0
        %v2073 = vadd.f32 %v1948, %v2072
        %v2074 = vpop.f32.mrf.mxu0
        %v2075 = vand.u32 %v898, 4294901760
        %2076 = vmatprep.mubr.f32.mxu0 %v2075
        %v2077 = vand.u32 %v897, 4294901760
        %2078 = vmatmul.mubr.f32.gmra.mxu0 %v2077
        %v2079 = vpop.f32.mrf.mxu0
        %v2080 = vadd.f32 %v1955, %v2079
        %v2081 = vpop.f32.mrf.mxu0
        %v2082 = vand.u32 %v900, 4294901760
        %2083 = vmatprep.mubr.f32.mxu0 %v2082
        %v2084 = vand.u32 %v899, 4294901760
        %2085 = vmatmul.mubr.f32.gmra.mxu0 %v2084
        %v2086 = vpop.f32.mrf.mxu0
        %v2087 = vadd.f32 %v1962, %v2086
        %v2088 = vpop.f32.mrf.mxu0
        %v2089 = vand.u32 %v902, 4294901760
        %2090 = vmatprep.mubr.f32.mxu0 %v2089
        %v2091 = vand.u32 %v901, 4294901760
        %2092 = vmatmul.mubr.f32.gmra.mxu0 %v2091
        %v2093 = vpop.f32.mrf.mxu0
        %v2094 = vadd.f32 %v1969, %v2093
        %v2095 = vpop.f32.mrf.mxu0
        %2096 = vdwg.mxu0
        %2097 = vmatprep.subr.mxu0 0.0
        %v2098 = vand.u32 %v878, 4294901760
        %2099 = vmatpush1.msra.mxu0 %v2098
        %2100 = vmatprep.subr.mxu0 0.0
        %v2101 = vand.u32 %v877, 4294901760
        %2102 = vmatpush1.msra.mxu0 %v2101
        %2103 = vmatprep.subr.mxu0 0.0
        %v2104 = vand.u32 %v876, 4294901760
        %2105 = vmatpush1.msra.mxu0 %v2104
        %2106 = vmatprep.subr.mxu0 0.0
        %v2107 = vand.u32 %v875, 4294901760
        %2108 = vmatpush1.msra.mxu0 %v2107
        %2109 = vmatprep.subr.mxu0 0.0
        %v2110 = vand.u32 %v874, 4294901760
        %2111 = vmatpush1.msra.mxu0 %v2110
        %2112 = vmatprep.subr.mxu0 0.0
        %v2113 = vand.u32 %v873, 4294901760
        %2114 = vmatpush1.msra.mxu0 %v2113
        %2115 = vmatprep.subr.mxu0 0.0
        %v2116 = vand.u32 %v872, 4294901760
        %2117 = vmatpush1.msra.mxu0 %v2116
        %2118 = vmatprep.subr.mxu0 0.0
        %v2119 = vand.u32 %v871, 4294901760
        %2120 = vmatpush1.msra.mxu0 %v2119
        %2121 = vmatprep.subr.mxu0 0.0
        %v2122 = vand.u32 %v870, 4294901760
        %2123 = vmatpush1.msra.mxu0 %v2122
        %2124 = vmatprep.subr.mxu0 0.0
        %v2125 = vand.u32 %v869, 4294901760
        %2126 = vmatpush1.msra.mxu0 %v2125
        %2127 = vmatprep.subr.mxu0 0.0
        %v2128 = vand.u32 %v868, 4294901760
        %2129 = vmatpush1.msra.mxu0 %v2128
        %2130 = vmatprep.subr.mxu0 0.0
        %v2131 = vand.u32 %v867, 4294901760
        %2132 = vmatpush1.msra.mxu0 %v2131
        %2133 = vmatprep.subr.mxu0 0.0
        %v2134 = vand.u32 %v866, 4294901760
        %2135 = vmatpush1.msra.mxu0 %v2134
        %2136 = vmatprep.subr.mxu0 0.0
        %v2137 = vand.u32 %v865, 4294901760
        %2138 = vmatpush1.msra.mxu0 %v2137
        %2139 = vmatprep.subr.mxu0 0.0
        %v2140 = vand.u32 %v864, 4294901760
        %2141 = vmatpush1.msra.mxu0 %v2140
        %2142 = vmatprep.subr.mxu0 0.0
        %v2143 = vand.u32 %v863, 4294901760
        %2144 = vmatpush1.msra.mxu0 %v2143
        %2145 = vmatprep.subr.mxu0 0.0
        %v2146 = vand.u32 %v894, 4294901760
        %2147 = vmatpush2.msra.mxu0 %v2146
        %2148 = vmatprep.subr.mxu0 0.0
        %v2149 = vand.u32 %v893, 4294901760
        %2150 = vmatpush2.msra.mxu0 %v2149
        %2151 = vmatprep.subr.mxu0 0.0
        %v2152 = vand.u32 %v892, 4294901760
        %2153 = vmatpush2.msra.mxu0 %v2152
        %2154 = vmatprep.subr.mxu0 0.0
        %v2155 = vand.u32 %v891, 4294901760
        %2156 = vmatpush2.msra.mxu0 %v2155
        %2157 = vmatprep.subr.mxu0 0.0
        %v2158 = vand.u32 %v890, 4294901760
        %2159 = vmatpush2.msra.mxu0 %v2158
        %2160 = vmatprep.subr.mxu0 0.0
        %v2161 = vand.u32 %v889, 4294901760
        %2162 = vmatpush2.msra.mxu0 %v2161
        %2163 = vmatprep.subr.mxu0 0.0
        %v2164 = vand.u32 %v888, 4294901760
        %2165 = vmatpush2.msra.mxu0 %v2164
        %2166 = vmatprep.subr.mxu0 0.0
        %v2167 = vand.u32 %v887, 4294901760
        %2168 = vmatpush2.msra.mxu0 %v2167
        %2169 = vmatprep.subr.mxu0 0.0
        %v2170 = vand.u32 %v886, 4294901760
        %2171 = vmatpush2.msra.mxu0 %v2170
        %2172 = vmatprep.subr.mxu0 0.0
        %v2173 = vand.u32 %v885, 4294901760
        %2174 = vmatpush2.msra.mxu0 %v2173
        %2175 = vmatprep.subr.mxu0 0.0
        %v2176 = vand.u32 %v884, 4294901760
        %2177 = vmatpush2.msra.mxu0 %v2176
        %2178 = vmatprep.subr.mxu0 0.0
        %v2179 = vand.u32 %v883, 4294901760
        %2180 = vmatpush2.msra.mxu0 %v2179
        %2181 = vmatprep.subr.mxu0 0.0
        %v2182 = vand.u32 %v882, 4294901760
        %2183 = vmatpush2.msra.mxu0 %v2182
        %2184 = vmatprep.subr.mxu0 0.0
        %v2185 = vand.u32 %v881, 4294901760
        %2186 = vmatpush2.msra.mxu0 %v2185
        %2187 = vmatprep.subr.mxu0 0.0
        %v2188 = vand.u32 %v880, 4294901760
        %2189 = vmatpush2.msra.mxu0 %v2188
        %2190 = vmatprep.subr.mxu0 0.0
        %v2191 = vand.u32 %v879, 4294901760
        %2192 = vmatpush2.msra.mxu0 %v2191
        %v2193 = vand.u32 %v592, 4294901760
        %v2194 = vsub.f32 %v592, %v2193
        %v2195 = vand.u32 %v2194, 4294901760
        %v2196 = vsub.f32 %v2194, %v2195
        %v2197 = vand.u32 %v2196, 4294901760
        %2198 = vmatprep.mubr.f32.mxu0 %v2197
        %v2199 = vand.u32 %v591, 4294901760
        %v2200 = vsub.f32 %v591, %v2199
        %v2201 = vand.u32 %v2200, 4294901760
        %v2202 = vsub.f32 %v2200, %v2201
        %v2203 = vand.u32 %v2202, 4294901760
        %2204 = vmatmul.mubr.f32.gmra.mxu0 %v2203
        %v2205 = vpop.f32.mrf.mxu0
        %v2206 = vadd.f32 %v2073, %v2205
        %v2207 = vpop.f32.mrf.mxu0
        %v2208 = vand.u32 %v594, 4294901760
        %v2209 = vsub.f32 %v594, %v2208
        %v2210 = vand.u32 %v2209, 4294901760
        %v2211 = vsub.f32 %v2209, %v2210
        %v2212 = vand.u32 %v2211, 4294901760
        %2213 = vmatprep.mubr.f32.mxu0 %v2212
        %v2214 = vand.u32 %v593, 4294901760
        %v2215 = vsub.f32 %v593, %v2214
        %v2216 = vand.u32 %v2215, 4294901760
        %v2217 = vsub.f32 %v2215, %v2216
        %v2218 = vand.u32 %v2217, 4294901760
        %2219 = vmatmul.mubr.f32.gmra.mxu0 %v2218
        %v2220 = vpop.f32.mrf.mxu0
        %v2221 = vadd.f32 %v2080, %v2220
        %v2222 = vpop.f32.mrf.mxu0
        %v2223 = vand.u32 %v596, 4294901760
        %v2224 = vsub.f32 %v596, %v2223
        %v2225 = vand.u32 %v2224, 4294901760
        %v2226 = vsub.f32 %v2224, %v2225
        %v2227 = vand.u32 %v2226, 4294901760
        %2228 = vmatprep.mubr.f32.mxu0 %v2227
        %v2229 = vand.u32 %v595, 4294901760
        %v2230 = vsub.f32 %v595, %v2229
        %v2231 = vand.u32 %v2230, 4294901760
        %v2232 = vsub.f32 %v2230, %v2231
        %v2233 = vand.u32 %v2232, 4294901760
        %2234 = vmatmul.mubr.f32.gmra.mxu0 %v2233
        %v2235 = vpop.f32.mrf.mxu0
        %v2236 = vadd.f32 %v2087, %v2235
        %v2237 = vpop.f32.mrf.mxu0
        %v2238 = vand.u32 %v598, 4294901760
        %v2239 = vsub.f32 %v598, %v2238
        %v2240 = vand.u32 %v2239, 4294901760
        %v2241 = vsub.f32 %v2239, %v2240
        %v2242 = vand.u32 %v2241, 4294901760
        %2243 = vmatprep.mubr.f32.mxu0 %v2242
        %v2244 = vand.u32 %v597, 4294901760
        %v2245 = vsub.f32 %v597, %v2244
        %v2246 = vand.u32 %v2245, 4294901760
        %v2247 = vsub.f32 %v2245, %v2246
        %v2248 = vand.u32 %v2247, 4294901760
        %2249 = vmatmul.mubr.f32.gmra.mxu0 %v2248
        %v2250 = vpop.f32.mrf.mxu0
        %v2251 = vadd.f32 %v2094, %v2250
        %v2252 = vpop.f32.mrf.mxu0
        %2253 = vdwg.mxu0
        %2254 = vmatprep.subr.mxu0 0.0
        %v2255 = vand.u32 %v878, 4294901760
        %v2256 = vsub.f32 %v878, %v2255
        %v2257 = vand.u32 %v2256, 4294901760
        %v2258 = vsub.f32 %v2256, %v2257
        %v2259 = vand.u32 %v2258, 4294901760
        %2260 = vmatpush1.msra.mxu0 %v2259
        %2261 = vmatprep.subr.mxu0 0.0
        %v2262 = vand.u32 %v877, 4294901760
        %v2263 = vsub.f32 %v877, %v2262
        %v2264 = vand.u32 %v2263, 4294901760
        %v2265 = vsub.f32 %v2263, %v2264
        %v2266 = vand.u32 %v2265, 4294901760
        %2267 = vmatpush1.msra.mxu0 %v2266
        %2268 = vmatprep.subr.mxu0 0.0
        %v2269 = vand.u32 %v876, 4294901760
        %v2270 = vsub.f32 %v876, %v2269
        %v2271 = vand.u32 %v2270, 4294901760
        %v2272 = vsub.f32 %v2270, %v2271
        %v2273 = vand.u32 %v2272, 4294901760
        %2274 = vmatpush1.msra.mxu0 %v2273
        %2275 = vmatprep.subr.mxu0 0.0
        %v2276 = vand.u32 %v875, 4294901760
        %v2277 = vsub.f32 %v875, %v2276
        %v2278 = vand.u32 %v2277, 4294901760
        %v2279 = vsub.f32 %v2277, %v2278
        %v2280 = vand.u32 %v2279, 4294901760
        %2281 = vmatpush1.msra.mxu0 %v2280
        %2282 = vmatprep.subr.mxu0 0.0
        %v2283 = vand.u32 %v874, 4294901760
        %v2284 = vsub.f32 %v874, %v2283
        %v2285 = vand.u32 %v2284, 4294901760
        %v2286 = vsub.f32 %v2284, %v2285
        %v2287 = vand.u32 %v2286, 4294901760
        %2288 = vmatpush1.msra.mxu0 %v2287
        %2289 = vmatprep.subr.mxu0 0.0
        %v2290 = vand.u32 %v873, 4294901760
        %v2291 = vsub.f32 %v873, %v2290
        %v2292 = vand.u32 %v2291, 4294901760
        %v2293 = vsub.f32 %v2291, %v2292
        %v2294 = vand.u32 %v2293, 4294901760
        %2295 = vmatpush1.msra.mxu0 %v2294
        %2296 = vmatprep.subr.mxu0 0.0
        %v2297 = vand.u32 %v872, 4294901760
        %v2298 = vsub.f32 %v872, %v2297
        %v2299 = vand.u32 %v2298, 4294901760
        %v2300 = vsub.f32 %v2298, %v2299
        %v2301 = vand.u32 %v2300, 4294901760
        %2302 = vmatpush1.msra.mxu0 %v2301
        %2303 = vmatprep.subr.mxu0 0.0
        %v2304 = vand.u32 %v871, 4294901760
        %v2305 = vsub.f32 %v871, %v2304
        %v2306 = vand.u32 %v2305, 4294901760
        %v2307 = vsub.f32 %v2305, %v2306
        %v2308 = vand.u32 %v2307, 4294901760
        %2309 = vmatpush1.msra.mxu0 %v2308
        %2310 = vmatprep.subr.mxu0 0.0
        %v2311 = vand.u32 %v870, 4294901760
        %v2312 = vsub.f32 %v870, %v2311
        %v2313 = vand.u32 %v2312, 4294901760
        %v2314 = vsub.f32 %v2312, %v2313
        %v2315 = vand.u32 %v2314, 4294901760
        %2316 = vmatpush1.msra.mxu0 %v2315
        %2317 = vmatprep.subr.mxu0 0.0
        %v2318 = vand.u32 %v869, 4294901760
        %v2319 = vsub.f32 %v869, %v2318
        %v2320 = vand.u32 %v2319, 4294901760
        %v2321 = vsub.f32 %v2319, %v2320
        %v2322 = vand.u32 %v2321, 4294901760
        %2323 = vmatpush1.msra.mxu0 %v2322
        %2324 = vmatprep.subr.mxu0 0.0
        %v2325 = vand.u32 %v868, 4294901760
        %v2326 = vsub.f32 %v868, %v2325
        %v2327 = vand.u32 %v2326, 4294901760
        %v2328 = vsub.f32 %v2326, %v2327
        %v2329 = vand.u32 %v2328, 4294901760
        %2330 = vmatpush1.msra.mxu0 %v2329
        %2331 = vmatprep.subr.mxu0 0.0
        %v2332 = vand.u32 %v867, 4294901760
        %v2333 = vsub.f32 %v867, %v2332
        %v2334 = vand.u32 %v2333, 4294901760
        %v2335 = vsub.f32 %v2333, %v2334
        %v2336 = vand.u32 %v2335, 4294901760
        %2337 = vmatpush1.msra.mxu0 %v2336
        %2338 = vmatprep.subr.mxu0 0.0
        %v2339 = vand.u32 %v866, 4294901760
        %v2340 = vsub.f32 %v866, %v2339
        %v2341 = vand.u32 %v2340, 4294901760
        %v2342 = vsub.f32 %v2340, %v2341
        %v2343 = vand.u32 %v2342, 4294901760
        %2344 = vmatpush1.msra.mxu0 %v2343
        %2345 = vmatprep.subr.mxu0 0.0
        %v2346 = vand.u32 %v865, 4294901760
        %v2347 = vsub.f32 %v865, %v2346
        %v2348 = vand.u32 %v2347, 4294901760
        %v2349 = vsub.f32 %v2347, %v2348
        %v2350 = vand.u32 %v2349, 4294901760
        %2351 = vmatpush1.msra.mxu0 %v2350
        %2352 = vmatprep.subr.mxu0 0.0
        %v2353 = vand.u32 %v864, 4294901760
        %v2354 = vsub.f32 %v864, %v2353
        %v2355 = vand.u32 %v2354, 4294901760
        %v2356 = vsub.f32 %v2354, %v2355
        %v2357 = vand.u32 %v2356, 4294901760
        %2358 = vmatpush1.msra.mxu0 %v2357
        %2359 = vmatprep.subr.mxu0 0.0
        %v2360 = vand.u32 %v863, 4294901760
        %v2361 = vsub.f32 %v863, %v2360
        %v2362 = vand.u32 %v2361, 4294901760
        %v2363 = vsub.f32 %v2361, %v2362
        %v2364 = vand.u32 %v2363, 4294901760
        %2365 = vmatpush1.msra.mxu0 %v2364
        %2366 = vmatprep.subr.mxu0 0.0
        %v2367 = vand.u32 %v894, 4294901760
        %v2368 = vsub.f32 %v894, %v2367
        %v2369 = vand.u32 %v2368, 4294901760
        %v2370 = vsub.f32 %v2368, %v2369
        %v2371 = vand.u32 %v2370, 4294901760
        %2372 = vmatpush2.msra.mxu0 %v2371
        %2373 = vmatprep.subr.mxu0 0.0
        %v2374 = vand.u32 %v893, 4294901760
        %v2375 = vsub.f32 %v893, %v2374
        %v2376 = vand.u32 %v2375, 4294901760
        %v2377 = vsub.f32 %v2375, %v2376
        %v2378 = vand.u32 %v2377, 4294901760
        %2379 = vmatpush2.msra.mxu0 %v2378
        %2380 = vmatprep.subr.mxu0 0.0
        %v2381 = vand.u32 %v892, 4294901760
        %v2382 = vsub.f32 %v892, %v2381
        %v2383 = vand.u32 %v2382, 4294901760
        %v2384 = vsub.f32 %v2382, %v2383
        %v2385 = vand.u32 %v2384, 4294901760
        %2386 = vmatpush2.msra.mxu0 %v2385
        %2387 = vmatprep.subr.mxu0 0.0
        %v2388 = vand.u32 %v891, 4294901760
        %v2389 = vsub.f32 %v891, %v2388
        %v2390 = vand.u32 %v2389, 4294901760
        %v2391 = vsub.f32 %v2389, %v2390
        %v2392 = vand.u32 %v2391, 4294901760
        %2393 = vmatpush2.msra.mxu0 %v2392
        %2394 = vmatprep.subr.mxu0 0.0
        %v2395 = vand.u32 %v890, 4294901760
        %v2396 = vsub.f32 %v890, %v2395
        %v2397 = vand.u32 %v2396, 4294901760
        %v2398 = vsub.f32 %v2396, %v2397
        %v2399 = vand.u32 %v2398, 4294901760
        %2400 = vmatpush2.msra.mxu0 %v2399
        %2401 = vmatprep.subr.mxu0 0.0
        %v2402 = vand.u32 %v889, 4294901760
        %v2403 = vsub.f32 %v889, %v2402
        %v2404 = vand.u32 %v2403, 4294901760
        %v2405 = vsub.f32 %v2403, %v2404
        %v2406 = vand.u32 %v2405, 4294901760
        %2407 = vmatpush2.msra.mxu0 %v2406
        %2408 = vmatprep.subr.mxu0 0.0
        %v2409 = vand.u32 %v888, 4294901760
        %v2410 = vsub.f32 %v888, %v2409
        %v2411 = vand.u32 %v2410, 4294901760
        %v2412 = vsub.f32 %v2410, %v2411
        %v2413 = vand.u32 %v2412, 4294901760
        %2414 = vmatpush2.msra.mxu0 %v2413
        %2415 = vmatprep.subr.mxu0 0.0
        %v2416 = vand.u32 %v887, 4294901760
        %v2417 = vsub.f32 %v887, %v2416
        %v2418 = vand.u32 %v2417, 4294901760
        %v2419 = vsub.f32 %v2417, %v2418
        %v2420 = vand.u32 %v2419, 4294901760
        %2421 = vmatpush2.msra.mxu0 %v2420
        %2422 = vmatprep.subr.mxu0 0.0
        %v2423 = vand.u32 %v886, 4294901760
        %v2424 = vsub.f32 %v886, %v2423
        %v2425 = vand.u32 %v2424, 4294901760
        %v2426 = vsub.f32 %v2424, %v2425
        %v2427 = vand.u32 %v2426, 4294901760
        %2428 = vmatpush2.msra.mxu0 %v2427
        %2429 = vmatprep.subr.mxu0 0.0
        %v2430 = vand.u32 %v885, 4294901760
        %v2431 = vsub.f32 %v885, %v2430
        %v2432 = vand.u32 %v2431, 4294901760
        %v2433 = vsub.f32 %v2431, %v2432
        %v2434 = vand.u32 %v2433, 4294901760
        %2435 = vmatpush2.msra.mxu0 %v2434
        %2436 = vmatprep.subr.mxu0 0.0
        %v2437 = vand.u32 %v884, 4294901760
        %v2438 = vsub.f32 %v884, %v2437
        %v2439 = vand.u32 %v2438, 4294901760
        %v2440 = vsub.f32 %v2438, %v2439
        %v2441 = vand.u32 %v2440, 4294901760
        %2442 = vmatpush2.msra.mxu0 %v2441
        %2443 = vmatprep.subr.mxu0 0.0
        %v2444 = vand.u32 %v883, 4294901760
        %v2445 = vsub.f32 %v883, %v2444
        %v2446 = vand.u32 %v2445, 4294901760
        %v2447 = vsub.f32 %v2445, %v2446
        %v2448 = vand.u32 %v2447, 4294901760
        %2449 = vmatpush2.msra.mxu0 %v2448
        %2450 = vmatprep.subr.mxu0 0.0
        %v2451 = vand.u32 %v882, 4294901760
        %v2452 = vsub.f32 %v882, %v2451
        %v2453 = vand.u32 %v2452, 4294901760
        %v2454 = vsub.f32 %v2452, %v2453
        %v2455 = vand.u32 %v2454, 4294901760
        %2456 = vmatpush2.msra.mxu0 %v2455
        %2457 = vmatprep.subr.mxu0 0.0
        %v2458 = vand.u32 %v881, 4294901760
        %v2459 = vsub.f32 %v881, %v2458
        %v2460 = vand.u32 %v2459, 4294901760
        %v2461 = vsub.f32 %v2459, %v2460
        %v2462 = vand.u32 %v2461, 4294901760
        %2463 = vmatpush2.msra.mxu0 %v2462
        %2464 = vmatprep.subr.mxu0 0.0
        %v2465 = vand.u32 %v880, 4294901760
        %v2466 = vsub.f32 %v880, %v2465
        %v2467 = vand.u32 %v2466, 4294901760
        %v2468 = vsub.f32 %v2466, %v2467
        %v2469 = vand.u32 %v2468, 4294901760
        %2470 = vmatpush2.msra.mxu0 %v2469
        %2471 = vmatprep.subr.mxu0 0.0
        %v2472 = vand.u32 %v879, 4294901760
        %v2473 = vsub.f32 %v879, %v2472
        %v2474 = vand.u32 %v2473, 4294901760
        %v2475 = vsub.f32 %v2473, %v2474
        %v2476 = vand.u32 %v2475, 4294901760
        %2477 = vmatpush2.msra.mxu0 %v2476
        %v2478 = vand.u32 %v592, 4294901760
        %2479 = vmatprep.mubr.f32.mxu0 %v2478
        %v2480 = vand.u32 %v591, 4294901760
        %2481 = vmatmul.mubr.f32.gmra.mxu0 %v2480
        %v2482 = vpop.f32.mrf.mxu0
        %v2483 = vadd.f32 %v2206, %v2482
        %v2484 = vpop.f32.mrf.mxu0
        %v2485 = vand.u32 %v594, 4294901760
        %2486 = vmatprep.mubr.f32.mxu0 %v2485
        %v2487 = vand.u32 %v593, 4294901760
        %2488 = vmatmul.mubr.f32.gmra.mxu0 %v2487
        %v2489 = vpop.f32.mrf.mxu0
        %v2490 = vadd.f32 %v2221, %v2489
        %v2491 = vpop.f32.mrf.mxu0
        %v2492 = vand.u32 %v596, 4294901760
        %2493 = vmatprep.mubr.f32.mxu0 %v2492
        %v2494 = vand.u32 %v595, 4294901760
        %2495 = vmatmul.mubr.f32.gmra.mxu0 %v2494
        %v2496 = vpop.f32.mrf.mxu0
        %v2497 = vadd.f32 %v2236, %v2496
        %v2498 = vpop.f32.mrf.mxu0
        %v2499 = vand.u32 %v598, 4294901760
        %2500 = vmatprep.mubr.f32.mxu0 %v2499
        %v2501 = vand.u32 %v597, 4294901760
        %2502 = vmatmul.mubr.f32.gmra.mxu0 %v2501
        %v2503 = vpop.f32.mrf.mxu0
        %v2504 = vadd.f32 %v2251, %v2503
        %v2505 = vpop.f32.mrf.mxu0
        %2506 = vdwg.mxu0
        %2507 = vmatprep.subr.mxu0 0.0
        %v2508 = vand.u32 %v878, 4294901760
        %v2509 = vsub.f32 %v878, %v2508
        %2510 = vmatpush1.msra.mxu0 %v2509
        %2511 = vmatprep.subr.mxu0 0.0
        %v2512 = vand.u32 %v877, 4294901760
        %v2513 = vsub.f32 %v877, %v2512
        %2514 = vmatpush1.msra.mxu0 %v2513
        %2515 = vmatprep.subr.mxu0 0.0
        %v2516 = vand.u32 %v876, 4294901760
        %v2517 = vsub.f32 %v876, %v2516
        %2518 = vmatpush1.msra.mxu0 %v2517
        %2519 = vmatprep.subr.mxu0 0.0
        %v2520 = vand.u32 %v875, 4294901760
        %v2521 = vsub.f32 %v875, %v2520
        %2522 = vmatpush1.msra.mxu0 %v2521
        %2523 = vmatprep.subr.mxu0 0.0
        %v2524 = vand.u32 %v874, 4294901760
        %v2525 = vsub.f32 %v874, %v2524
        %2526 = vmatpush1.msra.mxu0 %v2525
        %2527 = vmatprep.subr.mxu0 0.0
        %v2528 = vand.u32 %v873, 4294901760
        %v2529 = vsub.f32 %v873, %v2528
        %2530 = vmatpush1.msra.mxu0 %v2529
        %2531 = vmatprep.subr.mxu0 0.0
        %v2532 = vand.u32 %v872, 4294901760
        %v2533 = vsub.f32 %v872, %v2532
        %2534 = vmatpush1.msra.mxu0 %v2533
        %2535 = vmatprep.subr.mxu0 0.0
        %v2536 = vand.u32 %v871, 4294901760
        %v2537 = vsub.f32 %v871, %v2536
        %2538 = vmatpush1.msra.mxu0 %v2537
        %2539 = vmatprep.subr.mxu0 0.0
        %v2540 = vand.u32 %v870, 4294901760
        %v2541 = vsub.f32 %v870, %v2540
        %2542 = vmatpush1.msra.mxu0 %v2541
        %2543 = vmatprep.subr.mxu0 0.0
        %v2544 = vand.u32 %v869, 4294901760
        %v2545 = vsub.f32 %v869, %v2544
        %2546 = vmatpush1.msra.mxu0 %v2545
        %2547 = vmatprep.subr.mxu0 0.0
        %v2548 = vand.u32 %v868, 4294901760
        %v2549 = vsub.f32 %v868, %v2548
        %2550 = vmatpush1.msra.mxu0 %v2549
        %2551 = vmatprep.subr.mxu0 0.0
        %v2552 = vand.u32 %v867, 4294901760
        %v2553 = vsub.f32 %v867, %v2552
        %2554 = vmatpush1.msra.mxu0 %v2553
        %2555 = vmatprep.subr.mxu0 0.0
        %v2556 = vand.u32 %v866, 4294901760
        %v2557 = vsub.f32 %v866, %v2556
        %2558 = vmatpush1.msra.mxu0 %v2557
        %2559 = vmatprep.subr.mxu0 0.0
        %v2560 = vand.u32 %v865, 4294901760
        %v2561 = vsub.f32 %v865, %v2560
        %2562 = vmatpush1.msra.mxu0 %v2561
        %2563 = vmatprep.subr.mxu0 0.0
        %v2564 = vand.u32 %v864, 4294901760
        %v2565 = vsub.f32 %v864, %v2564
        %2566 = vmatpush1.msra.mxu0 %v2565
        %2567 = vmatprep.subr.mxu0 0.0
        %v2568 = vand.u32 %v863, 4294901760
        %v2569 = vsub.f32 %v863, %v2568
        %2570 = vmatpush1.msra.mxu0 %v2569
        %2571 = vmatprep.subr.mxu0 0.0
        %v2572 = vand.u32 %v894, 4294901760
        %v2573 = vsub.f32 %v894, %v2572
        %2574 = vmatpush2.msra.mxu0 %v2573
        %2575 = vmatprep.subr.mxu0 0.0
        %v2576 = vand.u32 %v893, 4294901760
        %v2577 = vsub.f32 %v893, %v2576
        %2578 = vmatpush2.msra.mxu0 %v2577
        %2579 = vmatprep.subr.mxu0 0.0
        %v2580 = vand.u32 %v892, 4294901760
        %v2581 = vsub.f32 %v892, %v2580
        %2582 = vmatpush2.msra.mxu0 %v2581
        %2583 = vmatprep.subr.mxu0 0.0
        %v2584 = vand.u32 %v891, 4294901760
        %v2585 = vsub.f32 %v891, %v2584
        %2586 = vmatpush2.msra.mxu0 %v2585
        %2587 = vmatprep.subr.mxu0 0.0
        %v2588 = vand.u32 %v890, 4294901760
        %v2589 = vsub.f32 %v890, %v2588
        %2590 = vmatpush2.msra.mxu0 %v2589
        %2591 = vmatprep.subr.mxu0 0.0
        %v2592 = vand.u32 %v889, 4294901760
        %v2593 = vsub.f32 %v889, %v2592
        %2594 = vmatpush2.msra.mxu0 %v2593
        %2595 = vmatprep.subr.mxu0 0.0
        %v2596 = vand.u32 %v888, 4294901760
        %v2597 = vsub.f32 %v888, %v2596
        %2598 = vmatpush2.msra.mxu0 %v2597
        %2599 = vmatprep.subr.mxu0 0.0
        %v2600 = vand.u32 %v887, 4294901760
        %v2601 = vsub.f32 %v887, %v2600
        %2602 = vmatpush2.msra.mxu0 %v2601
        %2603 = vmatprep.subr.mxu0 0.0
        %v2604 = vand.u32 %v886, 4294901760
        %v2605 = vsub.f32 %v886, %v2604
        %2606 = vmatpush2.msra.mxu0 %v2605
        %2607 = vmatprep.subr.mxu0 0.0
        %v2608 = vand.u32 %v885, 4294901760
        %v2609 = vsub.f32 %v885, %v2608
        %2610 = vmatpush2.msra.mxu0 %v2609
        %2611 = vmatprep.subr.mxu0 0.0
        %v2612 = vand.u32 %v884, 4294901760
        %v2613 = vsub.f32 %v884, %v2612
        %2614 = vmatpush2.msra.mxu0 %v2613
        %2615 = vmatprep.subr.mxu0 0.0
        %v2616 = vand.u32 %v883, 4294901760
        %v2617 = vsub.f32 %v883, %v2616
        %2618 = vmatpush2.msra.mxu0 %v2617
        %2619 = vmatprep.subr.mxu0 0.0
        %v2620 = vand.u32 %v882, 4294901760
        %v2621 = vsub.f32 %v882, %v2620
        %2622 = vmatpush2.msra.mxu0 %v2621
        %2623 = vmatprep.subr.mxu0 0.0
        %v2624 = vand.u32 %v881, 4294901760
        %v2625 = vsub.f32 %v881, %v2624
        %2626 = vmatpush2.msra.mxu0 %v2625
        %2627 = vmatprep.subr.mxu0 0.0
        %v2628 = vand.u32 %v880, 4294901760
        %v2629 = vsub.f32 %v880, %v2628
        %2630 = vmatpush2.msra.mxu0 %v2629
        %2631 = vmatprep.subr.mxu0 0.0
        %v2632 = vand.u32 %v879, 4294901760
        %v2633 = vsub.f32 %v879, %v2632
        %2634 = vmatpush2.msra.mxu0 %v2633
        %v2635 = vand.u32 %v592, 4294901760
        %v2636 = vsub.f32 %v592, %v2635
        %2637 = vmatprep.mubr.f32.mxu0 %v2636
        %v2638 = vand.u32 %v591, 4294901760
        %v2639 = vsub.f32 %v591, %v2638
        %2640 = vmatmul.mubr.f32.gmra.mxu0 %v2639
        %v2641 = vpop.f32.mrf.mxu0
        %v2642 = vadd.f32 %v2483, %v2641
        %v2643 = vpop.f32.mrf.mxu0
        %v2644 = vand.u32 %v594, 4294901760
        %v2645 = vsub.f32 %v594, %v2644
        %2646 = vmatprep.mubr.f32.mxu0 %v2645
        %v2647 = vand.u32 %v593, 4294901760
        %v2648 = vsub.f32 %v593, %v2647
        %2649 = vmatmul.mubr.f32.gmra.mxu0 %v2648
        %v2650 = vpop.f32.mrf.mxu0
        %v2651 = vadd.f32 %v2490, %v2650
        %v2652 = vpop.f32.mrf.mxu0
        %v2653 = vand.u32 %v596, 4294901760
        %v2654 = vsub.f32 %v596, %v2653
        %2655 = vmatprep.mubr.f32.mxu0 %v2654
        %v2656 = vand.u32 %v595, 4294901760
        %v2657 = vsub.f32 %v595, %v2656
        %2658 = vmatmul.mubr.f32.gmra.mxu0 %v2657
        %v2659 = vpop.f32.mrf.mxu0
        %v2660 = vadd.f32 %v2497, %v2659
        %v2661 = vpop.f32.mrf.mxu0
        %v2662 = vand.u32 %v598, 4294901760
        %v2663 = vsub.f32 %v598, %v2662
        %2664 = vmatprep.mubr.f32.mxu0 %v2663
        %v2665 = vand.u32 %v597, 4294901760
        %v2666 = vsub.f32 %v597, %v2665
        %2667 = vmatmul.mubr.f32.gmra.mxu0 %v2666
        %v2668 = vpop.f32.mrf.mxu0
        %v2669 = vadd.f32 %v2504, %v2668
        %v2670 = vpop.f32.mrf.mxu0
        %2671 = vdwg.mxu0
        %2672 = vmatprep.subr.mxu0 0.0
        %v2673 = vand.u32 %v878, 4294901760
        %2674 = vmatpush1.msra.mxu0 %v2673
        %2675 = vmatprep.subr.mxu0 0.0
        %v2676 = vand.u32 %v877, 4294901760
        %2677 = vmatpush1.msra.mxu0 %v2676
        %2678 = vmatprep.subr.mxu0 0.0
        %v2679 = vand.u32 %v876, 4294901760
        %2680 = vmatpush1.msra.mxu0 %v2679
        %2681 = vmatprep.subr.mxu0 0.0
        %v2682 = vand.u32 %v875, 4294901760
        %2683 = vmatpush1.msra.mxu0 %v2682
        %2684 = vmatprep.subr.mxu0 0.0
        %v2685 = vand.u32 %v874, 4294901760
        %2686 = vmatpush1.msra.mxu0 %v2685
        %2687 = vmatprep.subr.mxu0 0.0
        %v2688 = vand.u32 %v873, 4294901760
        %2689 = vmatpush1.msra.mxu0 %v2688
        %2690 = vmatprep.subr.mxu0 0.0
        %v2691 = vand.u32 %v872, 4294901760
        %2692 = vmatpush1.msra.mxu0 %v2691
        %2693 = vmatprep.subr.mxu0 0.0
        %v2694 = vand.u32 %v871, 4294901760
        %2695 = vmatpush1.msra.mxu0 %v2694
        %2696 = vmatprep.subr.mxu0 0.0
        %v2697 = vand.u32 %v870, 4294901760
        %2698 = vmatpush1.msra.mxu0 %v2697
        %2699 = vmatprep.subr.mxu0 0.0
        %v2700 = vand.u32 %v869, 4294901760
        %2701 = vmatpush1.msra.mxu0 %v2700
        %2702 = vmatprep.subr.mxu0 0.0
        %v2703 = vand.u32 %v868, 4294901760
        %2704 = vmatpush1.msra.mxu0 %v2703
        %2705 = vmatprep.subr.mxu0 0.0
        %v2706 = vand.u32 %v867, 4294901760
        %2707 = vmatpush1.msra.mxu0 %v2706
        %2708 = vmatprep.subr.mxu0 0.0
        %v2709 = vand.u32 %v866, 4294901760
        %2710 = vmatpush1.msra.mxu0 %v2709
        %2711 = vmatprep.subr.mxu0 0.0
        %v2712 = vand.u32 %v865, 4294901760
        %2713 = vmatpush1.msra.mxu0 %v2712
        %2714 = vmatprep.subr.mxu0 0.0
        %v2715 = vand.u32 %v864, 4294901760
        %2716 = vmatpush1.msra.mxu0 %v2715
        %2717 = vmatprep.subr.mxu0 0.0
        %v2718 = vand.u32 %v863, 4294901760
        %2719 = vmatpush1.msra.mxu0 %v2718
        %2720 = vmatprep.subr.mxu0 0.0
        %v2721 = vand.u32 %v894, 4294901760
        %2722 = vmatpush2.msra.mxu0 %v2721
        %2723 = vmatprep.subr.mxu0 0.0
        %v2724 = vand.u32 %v893, 4294901760
        %2725 = vmatpush2.msra.mxu0 %v2724
        %2726 = vmatprep.subr.mxu0 0.0
        %v2727 = vand.u32 %v892, 4294901760
        %2728 = vmatpush2.msra.mxu0 %v2727
        %2729 = vmatprep.subr.mxu0 0.0
        %v2730 = vand.u32 %v891, 4294901760
        %2731 = vmatpush2.msra.mxu0 %v2730
        %2732 = vmatprep.subr.mxu0 0.0
        %v2733 = vand.u32 %v890, 4294901760
        %2734 = vmatpush2.msra.mxu0 %v2733
        %2735 = vmatprep.subr.mxu0 0.0
        %v2736 = vand.u32 %v889, 4294901760
        %2737 = vmatpush2.msra.mxu0 %v2736
        %2738 = vmatprep.subr.mxu0 0.0
        %v2739 = vand.u32 %v888, 4294901760
        %2740 = vmatpush2.msra.mxu0 %v2739
        %2741 = vmatprep.subr.mxu0 0.0
        %v2742 = vand.u32 %v887, 4294901760
        %2743 = vmatpush2.msra.mxu0 %v2742
        %2744 = vmatprep.subr.mxu0 0.0
        %v2745 = vand.u32 %v886, 4294901760
        %2746 = vmatpush2.msra.mxu0 %v2745
        %2747 = vmatprep.subr.mxu0 0.0
        %v2748 = vand.u32 %v885, 4294901760
        %2749 = vmatpush2.msra.mxu0 %v2748
        %2750 = vmatprep.subr.mxu0 0.0
        %v2751 = vand.u32 %v884, 4294901760
        %2752 = vmatpush2.msra.mxu0 %v2751
        %2753 = vmatprep.subr.mxu0 0.0
        %v2754 = vand.u32 %v883, 4294901760
        %2755 = vmatpush2.msra.mxu0 %v2754
        %2756 = vmatprep.subr.mxu0 0.0
        %v2757 = vand.u32 %v882, 4294901760
        %2758 = vmatpush2.msra.mxu0 %v2757
        %2759 = vmatprep.subr.mxu0 0.0
        %v2760 = vand.u32 %v881, 4294901760
        %2761 = vmatpush2.msra.mxu0 %v2760
        %2762 = vmatprep.subr.mxu0 0.0
        %v2763 = vand.u32 %v880, 4294901760
        %2764 = vmatpush2.msra.mxu0 %v2763
        %2765 = vmatprep.subr.mxu0 0.0
        %v2766 = vand.u32 %v879, 4294901760
        %2767 = vmatpush2.msra.mxu0 %v2766
        %v2768 = vand.u32 %v592, 4294901760
        %v2769 = vsub.f32 %v592, %v2768
        %v2770 = vand.u32 %v2769, 4294901760
        %2771 = vmatprep.mubr.f32.mxu0 %v2770
        %v2772 = vand.u32 %v591, 4294901760
        %v2773 = vsub.f32 %v591, %v2772
        %v2774 = vand.u32 %v2773, 4294901760
        %2775 = vmatmul.mubr.f32.gmra.mxu0 %v2774
        %v2776 = vpop.f32.mrf.mxu0
        %v2777 = vadd.f32 %v2642, %v2776
        %v2778 = vpop.f32.mrf.mxu0
        %v2779 = vand.u32 %v594, 4294901760
        %v2780 = vsub.f32 %v594, %v2779
        %v2781 = vand.u32 %v2780, 4294901760
        %2782 = vmatprep.mubr.f32.mxu0 %v2781
        %v2783 = vand.u32 %v593, 4294901760
        %v2784 = vsub.f32 %v593, %v2783
        %v2785 = vand.u32 %v2784, 4294901760
        %2786 = vmatmul.mubr.f32.gmra.mxu0 %v2785
        %v2787 = vpop.f32.mrf.mxu0
        %v2788 = vadd.f32 %v2651, %v2787
        %v2789 = vpop.f32.mrf.mxu0
        %v2790 = vand.u32 %v596, 4294901760
        %v2791 = vsub.f32 %v596, %v2790
        %v2792 = vand.u32 %v2791, 4294901760
        %2793 = vmatprep.mubr.f32.mxu0 %v2792
        %v2794 = vand.u32 %v595, 4294901760
        %v2795 = vsub.f32 %v595, %v2794
        %v2796 = vand.u32 %v2795, 4294901760
        %2797 = vmatmul.mubr.f32.gmra.mxu0 %v2796
        %v2798 = vpop.f32.mrf.mxu0
        %v2799 = vadd.f32 %v2660, %v2798
        %v2800 = vpop.f32.mrf.mxu0
        %v2801 = vand.u32 %v598, 4294901760
        %v2802 = vsub.f32 %v598, %v2801
        %v2803 = vand.u32 %v2802, 4294901760
        %2804 = vmatprep.mubr.f32.mxu0 %v2803
        %v2805 = vand.u32 %v597, 4294901760
        %v2806 = vsub.f32 %v597, %v2805
        %v2807 = vand.u32 %v2806, 4294901760
        %2808 = vmatmul.mubr.f32.gmra.mxu0 %v2807
        %v2809 = vpop.f32.mrf.mxu0
        %v2810 = vadd.f32 %v2669, %v2809
        %v2811 = vpop.f32.mrf.mxu0
        %2812 = vdwg.mxu0
        %2813 = vmatprep.subr.mxu0 0.0
        %v2814 = vand.u32 %v878, 4294901760
        %v2815 = vsub.f32 %v878, %v2814
        %v2816 = vand.u32 %v2815, 4294901760
        %2817 = vmatpush1.msra.mxu0 %v2816
        %2818 = vmatprep.subr.mxu0 0.0
        %v2819 = vand.u32 %v877, 4294901760
        %v2820 = vsub.f32 %v877, %v2819
        %v2821 = vand.u32 %v2820, 4294901760
        %2822 = vmatpush1.msra.mxu0 %v2821
        %2823 = vmatprep.subr.mxu0 0.0
        %v2824 = vand.u32 %v876, 4294901760
        %v2825 = vsub.f32 %v876, %v2824
        %v2826 = vand.u32 %v2825, 4294901760
        %2827 = vmatpush1.msra.mxu0 %v2826
        %2828 = vmatprep.subr.mxu0 0.0
        %v2829 = vand.u32 %v875, 4294901760
        %v2830 = vsub.f32 %v875, %v2829
        %v2831 = vand.u32 %v2830, 4294901760
        %2832 = vmatpush1.msra.mxu0 %v2831
        %2833 = vmatprep.subr.mxu0 0.0
        %v2834 = vand.u32 %v874, 4294901760
        %v2835 = vsub.f32 %v874, %v2834
        %v2836 = vand.u32 %v2835, 4294901760
        %2837 = vmatpush1.msra.mxu0 %v2836
        %2838 = vmatprep.subr.mxu0 0.0
        %v2839 = vand.u32 %v873, 4294901760
        %v2840 = vsub.f32 %v873, %v2839
        %v2841 = vand.u32 %v2840, 4294901760
        %2842 = vmatpush1.msra.mxu0 %v2841
        %2843 = vmatprep.subr.mxu0 0.0
        %v2844 = vand.u32 %v872, 4294901760
        %v2845 = vsub.f32 %v872, %v2844
        %v2846 = vand.u32 %v2845, 4294901760
        %2847 = vmatpush1.msra.mxu0 %v2846
        %2848 = vmatprep.subr.mxu0 0.0
        %v2849 = vand.u32 %v871, 4294901760
        %v2850 = vsub.f32 %v871, %v2849
        %v2851 = vand.u32 %v2850, 4294901760
        %2852 = vmatpush1.msra.mxu0 %v2851
        %2853 = vmatprep.subr.mxu0 0.0
        %v2854 = vand.u32 %v870, 4294901760
        %v2855 = vsub.f32 %v870, %v2854
        %v2856 = vand.u32 %v2855, 4294901760
        %2857 = vmatpush1.msra.mxu0 %v2856
        %2858 = vmatprep.subr.mxu0 0.0
        %v2859 = vand.u32 %v869, 4294901760
        %v2860 = vsub.f32 %v869, %v2859
        %v2861 = vand.u32 %v2860, 4294901760
        %2862 = vmatpush1.msra.mxu0 %v2861
        %2863 = vmatprep.subr.mxu0 0.0
        %v2864 = vand.u32 %v868, 4294901760
        %v2865 = vsub.f32 %v868, %v2864
        %v2866 = vand.u32 %v2865, 4294901760
        %2867 = vmatpush1.msra.mxu0 %v2866
        %2868 = vmatprep.subr.mxu0 0.0
        %v2869 = vand.u32 %v867, 4294901760
        %v2870 = vsub.f32 %v867, %v2869
        %v2871 = vand.u32 %v2870, 4294901760
        %2872 = vmatpush1.msra.mxu0 %v2871
        %2873 = vmatprep.subr.mxu0 0.0
        %v2874 = vand.u32 %v866, 4294901760
        %v2875 = vsub.f32 %v866, %v2874
        %v2876 = vand.u32 %v2875, 4294901760
        %2877 = vmatpush1.msra.mxu0 %v2876
        %2878 = vmatprep.subr.mxu0 0.0
        %v2879 = vand.u32 %v865, 4294901760
        %v2880 = vsub.f32 %v865, %v2879
        %v2881 = vand.u32 %v2880, 4294901760
        %2882 = vmatpush1.msra.mxu0 %v2881
        %2883 = vmatprep.subr.mxu0 0.0
        %v2884 = vand.u32 %v864, 4294901760
        %v2885 = vsub.f32 %v864, %v2884
        %v2886 = vand.u32 %v2885, 4294901760
        %2887 = vmatpush1.msra.mxu0 %v2886
        %2888 = vmatprep.subr.mxu0 0.0
        %v2889 = vand.u32 %v863, 4294901760
        %v2890 = vsub.f32 %v863, %v2889
        %v2891 = vand.u32 %v2890, 4294901760
        %2892 = vmatpush1.msra.mxu0 %v2891
        %2893 = vmatprep.subr.mxu0 0.0
        %v2894 = vand.u32 %v894, 4294901760
        %v2895 = vsub.f32 %v894, %v2894
        %v2896 = vand.u32 %v2895, 4294901760
        %2897 = vmatpush2.msra.mxu0 %v2896
        %2898 = vmatprep.subr.mxu0 0.0
        %v2899 = vand.u32 %v893, 4294901760
        %v2900 = vsub.f32 %v893, %v2899
        %v2901 = vand.u32 %v2900, 4294901760
        %2902 = vmatpush2.msra.mxu0 %v2901
        %2903 = vmatprep.subr.mxu0 0.0
        %v2904 = vand.u32 %v892, 4294901760
        %v2905 = vsub.f32 %v892, %v2904
        %v2906 = vand.u32 %v2905, 4294901760
        %2907 = vmatpush2.msra.mxu0 %v2906
        %2908 = vmatprep.subr.mxu0 0.0
        %v2909 = vand.u32 %v891, 4294901760
        %v2910 = vsub.f32 %v891, %v2909
        %v2911 = vand.u32 %v2910, 4294901760
        %2912 = vmatpush2.msra.mxu0 %v2911
        %2913 = vmatprep.subr.mxu0 0.0
        %v2914 = vand.u32 %v890, 4294901760
        %v2915 = vsub.f32 %v890, %v2914
        %v2916 = vand.u32 %v2915, 4294901760
        %2917 = vmatpush2.msra.mxu0 %v2916
        %2918 = vmatprep.subr.mxu0 0.0
        %v2919 = vand.u32 %v889, 4294901760
        %v2920 = vsub.f32 %v889, %v2919
        %v2921 = vand.u32 %v2920, 4294901760
        %2922 = vmatpush2.msra.mxu0 %v2921
        %2923 = vmatprep.subr.mxu0 0.0
        %v2924 = vand.u32 %v888, 4294901760
        %v2925 = vsub.f32 %v888, %v2924
        %v2926 = vand.u32 %v2925, 4294901760
        %2927 = vmatpush2.msra.mxu0 %v2926
        %2928 = vmatprep.subr.mxu0 0.0
        %v2929 = vand.u32 %v887, 4294901760
        %v2930 = vsub.f32 %v887, %v2929
        %v2931 = vand.u32 %v2930, 4294901760
        %2932 = vmatpush2.msra.mxu0 %v2931
        %2933 = vmatprep.subr.mxu0 0.0
        %v2934 = vand.u32 %v886, 4294901760
        %v2935 = vsub.f32 %v886, %v2934
        %v2936 = vand.u32 %v2935, 4294901760
        %2937 = vmatpush2.msra.mxu0 %v2936
        %2938 = vmatprep.subr.mxu0 0.0
        %v2939 = vand.u32 %v885, 4294901760
        %v2940 = vsub.f32 %v885, %v2939
        %v2941 = vand.u32 %v2940, 4294901760
        %2942 = vmatpush2.msra.mxu0 %v2941
        %2943 = vmatprep.subr.mxu0 0.0
        %v2944 = vand.u32 %v884, 4294901760
        %v2945 = vsub.f32 %v884, %v2944
        %v2946 = vand.u32 %v2945, 4294901760
        %2947 = vmatpush2.msra.mxu0 %v2946
        %2948 = vmatprep.subr.mxu0 0.0
        %v2949 = vand.u32 %v883, 4294901760
        %v2950 = vsub.f32 %v883, %v2949
        %v2951 = vand.u32 %v2950, 4294901760
        %2952 = vmatpush2.msra.mxu0 %v2951
        %2953 = vmatprep.subr.mxu0 0.0
        %v2954 = vand.u32 %v882, 4294901760
        %v2955 = vsub.f32 %v882, %v2954
        %v2956 = vand.u32 %v2955, 4294901760
        %2957 = vmatpush2.msra.mxu0 %v2956
        %2958 = vmatprep.subr.mxu0 0.0
        %v2959 = vand.u32 %v881, 4294901760
        %v2960 = vsub.f32 %v881, %v2959
        %v2961 = vand.u32 %v2960, 4294901760
        %2962 = vmatpush2.msra.mxu0 %v2961
        %2963 = vmatprep.subr.mxu0 0.0
        %v2964 = vand.u32 %v880, 4294901760
        %v2965 = vsub.f32 %v880, %v2964
        %v2966 = vand.u32 %v2965, 4294901760
        %2967 = vmatpush2.msra.mxu0 %v2966
        %2968 = vmatprep.subr.mxu0 0.0
        %v2969 = vand.u32 %v879, 4294901760
        %v2970 = vsub.f32 %v879, %v2969
        %v2971 = vand.u32 %v2970, 4294901760
        %2972 = vmatpush2.msra.mxu0 %v2971
        %v2973 = vand.u32 %v592, 4294901760
        %2974 = vmatprep.mubr.f32.mxu0 %v2973
        %v2975 = vand.u32 %v591, 4294901760
        %2976 = vmatmul.mubr.f32.gmra.mxu0 %v2975
        %v2977 = vpop.f32.mrf.mxu0
        %v2978 = vadd.f32 %v2777, %v2977
        %v2979 = vpop.f32.mrf.mxu0
        %v2980 = vand.u32 %v594, 4294901760
        %2981 = vmatprep.mubr.f32.mxu0 %v2980
        %v2982 = vand.u32 %v593, 4294901760
        %2983 = vmatmul.mubr.f32.gmra.mxu0 %v2982
        %v2984 = vpop.f32.mrf.mxu0
        %v2985 = vadd.f32 %v2788, %v2984
        %v2986 = vpop.f32.mrf.mxu0
        %v2987 = vand.u32 %v596, 4294901760
        %2988 = vmatprep.mubr.f32.mxu0 %v2987
        %v2989 = vand.u32 %v595, 4294901760
        %2990 = vmatmul.mubr.f32.gmra.mxu0 %v2989
        %v2991 = vpop.f32.mrf.mxu0
        %v2992 = vadd.f32 %v2799, %v2991
        %v2993 = vpop.f32.mrf.mxu0
        %v2994 = vand.u32 %v598, 4294901760
        %2995 = vmatprep.mubr.f32.mxu0 %v2994
        %v2996 = vand.u32 %v597, 4294901760
        %2997 = vmatmul.mubr.f32.gmra.mxu0 %v2996
        %v2998 = vpop.f32.mrf.mxu0
        %v2999 = vadd.f32 %v2810, %v2998
        %v3000 = vpop.f32.mrf.mxu0
        %3001 = vdwg.mxu0
        %3002 = vmatprep.subr.mxu0 0.0
        %v3003 = vand.u32 %v878, 4294901760
        %3004 = vmatpush1.msra.mxu0 %v3003
        %3005 = vmatprep.subr.mxu0 0.0
        %v3006 = vand.u32 %v877, 4294901760
        %3007 = vmatpush1.msra.mxu0 %v3006
        %3008 = vmatprep.subr.mxu0 0.0
        %v3009 = vand.u32 %v876, 4294901760
        %3010 = vmatpush1.msra.mxu0 %v3009
        %3011 = vmatprep.subr.mxu0 0.0
        %v3012 = vand.u32 %v875, 4294901760
        %3013 = vmatpush1.msra.mxu0 %v3012
        %3014 = vmatprep.subr.mxu0 0.0
        %v3015 = vand.u32 %v874, 4294901760
        %3016 = vmatpush1.msra.mxu0 %v3015
        %3017 = vmatprep.subr.mxu0 0.0
        %v3018 = vand.u32 %v873, 4294901760
        %3019 = vmatpush1.msra.mxu0 %v3018
        %3020 = vmatprep.subr.mxu0 0.0
        %v3021 = vand.u32 %v872, 4294901760
        %3022 = vmatpush1.msra.mxu0 %v3021
        %3023 = vmatprep.subr.mxu0 0.0
        %v3024 = vand.u32 %v871, 4294901760
        %3025 = vmatpush1.msra.mxu0 %v3024
        %3026 = vmatprep.subr.mxu0 0.0
        %v3027 = vand.u32 %v870, 4294901760
        %3028 = vmatpush1.msra.mxu0 %v3027
        %3029 = vmatprep.subr.mxu0 0.0
        %v3030 = vand.u32 %v869, 4294901760
        %3031 = vmatpush1.msra.mxu0 %v3030
        %3032 = vmatprep.subr.mxu0 0.0
        %v3033 = vand.u32 %v868, 4294901760
        %3034 = vmatpush1.msra.mxu0 %v3033
        %3035 = vmatprep.subr.mxu0 0.0
        %v3036 = vand.u32 %v867, 4294901760
        %3037 = vmatpush1.msra.mxu0 %v3036
        %3038 = vmatprep.subr.mxu0 0.0
        %v3039 = vand.u32 %v866, 4294901760
        %3040 = vmatpush1.msra.mxu0 %v3039
        %3041 = vmatprep.subr.mxu0 0.0
        %v3042 = vand.u32 %v865, 4294901760
        %3043 = vmatpush1.msra.mxu0 %v3042
        %3044 = vmatprep.subr.mxu0 0.0
        %v3045 = vand.u32 %v864, 4294901760
        %3046 = vmatpush1.msra.mxu0 %v3045
        %3047 = vmatprep.subr.mxu0 0.0
        %v3048 = vand.u32 %v863, 4294901760
        %3049 = vmatpush1.msra.mxu0 %v3048
        %3050 = vmatprep.subr.mxu0 0.0
        %v3051 = vand.u32 %v894, 4294901760
        %3052 = vmatpush2.msra.mxu0 %v3051
        %3053 = vmatprep.subr.mxu0 0.0
        %v3054 = vand.u32 %v893, 4294901760
        %3055 = vmatpush2.msra.mxu0 %v3054
        %3056 = vmatprep.subr.mxu0 0.0
        %v3057 = vand.u32 %v892, 4294901760
        %3058 = vmatpush2.msra.mxu0 %v3057
        %3059 = vmatprep.subr.mxu0 0.0
        %v3060 = vand.u32 %v891, 4294901760
        %3061 = vmatpush2.msra.mxu0 %v3060
        %3062 = vmatprep.subr.mxu0 0.0
        %v3063 = vand.u32 %v890, 4294901760
        %3064 = vmatpush2.msra.mxu0 %v3063
        %3065 = vmatprep.subr.mxu0 0.0
        %v3066 = vand.u32 %v889, 4294901760
        %3067 = vmatpush2.msra.mxu0 %v3066
        %3068 = vmatprep.subr.mxu0 0.0
        %v3069 = vand.u32 %v888, 4294901760
        %3070 = vmatpush2.msra.mxu0 %v3069
        %3071 = vmatprep.subr.mxu0 0.0
        %v3072 = vand.u32 %v887, 4294901760
        %3073 = vmatpush2.msra.mxu0 %v3072
        %3074 = vmatprep.subr.mxu0 0.0
        %v3075 = vand.u32 %v886, 4294901760
        %3076 = vmatpush2.msra.mxu0 %v3075
        %3077 = vmatprep.subr.mxu0 0.0
        %v3078 = vand.u32 %v885, 4294901760
        %3079 = vmatpush2.msra.mxu0 %v3078
        %3080 = vmatprep.subr.mxu0 0.0
        %v3081 = vand.u32 %v884, 4294901760
        %3082 = vmatpush2.msra.mxu0 %v3081
        %3083 = vmatprep.subr.mxu0 0.0
        %v3084 = vand.u32 %v883, 4294901760
        %3085 = vmatpush2.msra.mxu0 %v3084
        %3086 = vmatprep.subr.mxu0 0.0
        %v3087 = vand.u32 %v882, 4294901760
        %3088 = vmatpush2.msra.mxu0 %v3087
        %3089 = vmatprep.subr.mxu0 0.0
        %v3090 = vand.u32 %v881, 4294901760
        %3091 = vmatpush2.msra.mxu0 %v3090
        %3092 = vmatprep.subr.mxu0 0.0
        %v3093 = vand.u32 %v880, 4294901760
        %3094 = vmatpush2.msra.mxu0 %v3093
        %3095 = vmatprep.subr.mxu0 0.0
        %v3096 = vand.u32 %v879, 4294901760
        %3097 = vmatpush2.msra.mxu0 %v3096
        %v3098 = vand.u32 %v592, 4294901760
        %3099 = vmatprep.mubr.f32.mxu0 %v3098
        %v3100 = vand.u32 %v591, 4294901760
        %3101 = vmatmul.mubr.f32.gmra.mxu0 %v3100
        %v3102 = vpop.f32.mrf.mxu0
        %v3103 = vadd.f32 %v2978, %v3102
        %v3104 = vpop.f32.mrf.mxu0
        %v3105 = vand.u32 %v594, 4294901760
        %3106 = vmatprep.mubr.f32.mxu0 %v3105
        %v3107 = vand.u32 %v593, 4294901760
        %3108 = vmatmul.mubr.f32.gmra.mxu0 %v3107
        %v3109 = vpop.f32.mrf.mxu0
        %v3110 = vadd.f32 %v2985, %v3109
        %v3111 = vpop.f32.mrf.mxu0
        %v3112 = vand.u32 %v596, 4294901760
        %3113 = vmatprep.mubr.f32.mxu0 %v3112
        %v3114 = vand.u32 %v595, 4294901760
        %3115 = vmatmul.mubr.f32.gmra.mxu0 %v3114
        %v3116 = vpop.f32.mrf.mxu0
        %v3117 = vadd.f32 %v2992, %v3116
        %v3118 = vpop.f32.mrf.mxu0
        %v3119 = vand.u32 %v598, 4294901760
        %3120 = vmatprep.mubr.f32.mxu0 %v3119
        %v3121 = vand.u32 %v597, 4294901760
        %3122 = vmatmul.mubr.f32.gmra.mxu0 %v3121
        %v3123 = vpop.f32.mrf.mxu0
        %v3124 = vadd.f32 %v2999, %v3123
        %v3125 = vpop.f32.mrf.mxu0
        %3126 = vdwg.mxu0
        %v3127 = vld [vmem:[%s344] sm:$0xff]
        %v3128 = vld [vmem:[%s344 + $0x8] sm:$0xff]
        %v3129 = vld [vmem:[%s344 + $0x10] sm:$0xff]
        %v3130 = vld [vmem:[%s344 + $0x18] sm:$0xff]
        %v3131 = vld [vmem:[%s344 + $0x20] sm:$0xff]
        %v3132 = vld [vmem:[%s344 + $0x28] sm:$0xff]
        %v3133 = vld [vmem:[%s344 + $0x30] sm:$0xff]
        %v3134 = vld [vmem:[%s344 + $0x38] sm:$0xff]
        %v3135 = vsub.f32 %v906, %v554
        %v3136 = vsub.f32 %v906, %v555
        %v3137 = vsub.f32 %v906, %v556
        %v3138 = vsub.f32 %v906, %v557
        %v3139 = vsub.f32 %v906, %v558
        %v3140 = vsub.f32 %v906, %v559
        %v3141 = vsub.f32 %v906, %v560
        %v3142 = vsub.f32 %v906, %v561
        %v3143 = vsub.f32 %v906, %v562
        %v3144 = vsub.f32 %v906, %v563
        %v3145 = vsub.f32 %v906, %v564
        %v3146 = vsub.f32 %v906, %v565
        %v3147 = vsub.f32 %v906, %v566
        %v3148 = vsub.f32 %v906, %v567
        %v3149 = vsub.f32 %v906, %v568
        %v3150 = vsub.f32 %v906, %v569
        %v3151 = vsub.f32 %v906, %v570
        %v3152 = vsub.f32 %v906, %v571
        %v3153 = vsub.f32 %v906, %v572
        %v3154 = vsub.f32 %v906, %v573
        %v3155 = vsub.f32 %v906, %v574
        %v3156 = vsub.f32 %v906, %v575
        %v3157 = vsub.f32 %v906, %v576
        %v3158 = vsub.f32 %v906, %v577
        %v3159 = vsub.f32 %v906, %v578
        %v3160 = vsub.f32 %v906, %v579
        %v3161 = vsub.f32 %v906, %v580
        %v3162 = vsub.f32 %v906, %v581
        %v3163 = vsub.f32 %v906, %v582
        %v3164 = vsub.f32 %v906, %v583
        %v3165 = vsub.f32 %v906, %v584
        %v3166 = vsub.f32 %v906, %v585
        %v3167 = vand.u32 2147483647, %v3135
        %v3168 = vand.u32 2147483647, %v3136
        %v3169 = vand.u32 2147483647, %v3137
        %v3170 = vand.u32 2147483647, %v3138
        %v3171 = vand.u32 2147483647, %v3139
        %v3172 = vand.u32 2147483647, %v3140
        %v3173 = vand.u32 2147483647, %v3141
        %v3174 = vand.u32 2147483647, %v3142
        %v3175 = vand.u32 2147483647, %v3143
        %v3176 = vand.u32 2147483647, %v3144
        %v3177 = vand.u32 2147483647, %v3145
        %v3178 = vand.u32 2147483647, %v3146
        %v3179 = vand.u32 2147483647, %v3147
        %v3180 = vand.u32 2147483647, %v3148
        %v3181 = vand.u32 2147483647, %v3149
        %v3182 = vand.u32 2147483647, %v3150
        %v3183 = vand.u32 2147483647, %v3151
        %v3184 = vand.u32 2147483647, %v3152
        %v3185 = vand.u32 2147483647, %v3153
        %v3186 = vand.u32 2147483647, %v3154
        %v3187 = vand.u32 2147483647, %v3155
        %v3188 = vand.u32 2147483647, %v3156
        %v3189 = vand.u32 2147483647, %v3157
        %v3190 = vand.u32 2147483647, %v3158
        %v3191 = vand.u32 2147483647, %v3159
        %v3192 = vand.u32 2147483647, %v3160
        %v3193 = vand.u32 2147483647, %v3161
        %v3194 = vand.u32 2147483647, %v3162
        %v3195 = vand.u32 2147483647, %v3163
        %v3196 = vand.u32 2147483647, %v3164
        %v3197 = vand.u32 2147483647, %v3165
        %v3198 = vand.u32 2147483647, %v3166
        %v3199 = vsub.f32 1.0, %v3167
        %v3200 = vsub.f32 1.0, %v3168
        %v3201 = vsub.f32 1.0, %v3169
        %v3202 = vsub.f32 1.0, %v3170
        %v3203 = vsub.f32 1.0, %v3171
        %v3204 = vsub.f32 1.0, %v3172
        %v3205 = vsub.f32 1.0, %v3173
        %v3206 = vsub.f32 1.0, %v3174
        %v3207 = vsub.f32 1.0, %v3175
        %v3208 = vsub.f32 1.0, %v3176
        %v3209 = vsub.f32 1.0, %v3177
        %v3210 = vsub.f32 1.0, %v3178
        %v3211 = vsub.f32 1.0, %v3179
        %v3212 = vsub.f32 1.0, %v3180
        %v3213 = vsub.f32 1.0, %v3181
        %v3214 = vsub.f32 1.0, %v3182
        %v3215 = vsub.f32 1.0, %v3183
        %v3216 = vsub.f32 1.0, %v3184
        %v3217 = vsub.f32 1.0, %v3185
        %v3218 = vsub.f32 1.0, %v3186
        %v3219 = vsub.f32 1.0, %v3187
        %v3220 = vsub.f32 1.0, %v3188
        %v3221 = vsub.f32 1.0, %v3189
        %v3222 = vsub.f32 1.0, %v3190
        %v3223 = vsub.f32 1.0, %v3191
        %v3224 = vsub.f32 1.0, %v3192
        %v3225 = vsub.f32 1.0, %v3193
        %v3226 = vsub.f32 1.0, %v3194
        %v3227 = vsub.f32 1.0, %v3195
        %v3228 = vsub.f32 1.0, %v3196
        %v3229 = vsub.f32 1.0, %v3197
        %v3230 = vsub.f32 1.0, %v3198
        %v3231 = vmax.f32 %v3199, 0.0
        %v3232 = vmax.f32 %v3200, 0.0
        %v3233 = vmax.f32 %v3201, 0.0
        %v3234 = vmax.f32 %v3202, 0.0
        %v3235 = vmax.f32 %v3203, 0.0
        %v3236 = vmax.f32 %v3204, 0.0
        %v3237 = vmax.f32 %v3205, 0.0
        %v3238 = vmax.f32 %v3206, 0.0
        %v3239 = vmax.f32 %v3207, 0.0
        %v3240 = vmax.f32 %v3208, 0.0
        %v3241 = vmax.f32 %v3209, 0.0
        %v3242 = vmax.f32 %v3210, 0.0
        %v3243 = vmax.f32 %v3211, 0.0
        %v3244 = vmax.f32 %v3212, 0.0
        %v3245 = vmax.f32 %v3213, 0.0
        %v3246 = vmax.f32 %v3214, 0.0
        %v3247 = vmax.f32 %v3215, 0.0
        %v3248 = vmax.f32 %v3216, 0.0
        %v3249 = vmax.f32 %v3217, 0.0
        %v3250 = vmax.f32 %v3218, 0.0
        %v3251 = vmax.f32 %v3219, 0.0
        %v3252 = vmax.f32 %v3220, 0.0
        %v3253 = vmax.f32 %v3221, 0.0
        %v3254 = vmax.f32 %v3222, 0.0
        %v3255 = vmax.f32 %v3223, 0.0
        %v3256 = vmax.f32 %v3224, 0.0
        %v3257 = vmax.f32 %v3225, 0.0
        %v3258 = vmax.f32 %v3226, 0.0
        %v3259 = vmax.f32 %v3227, 0.0
        %v3260 = vmax.f32 %v3228, 0.0
        %v3261 = vmax.f32 %v3229, 0.0
        %v3262 = vmax.f32 %v3230, 0.0
        %v3263 = vmul.f32 %v3231, %v831
        %v3264 = vmul.f32 %v3232, %v832
        %v3265 = vmul.f32 %v3233, %v833
        %v3266 = vmul.f32 %v3234, %v834
        %v3267 = vmul.f32 %v3235, %v835
        %v3268 = vmul.f32 %v3236, %v836
        %v3269 = vmul.f32 %v3237, %v837
        %v3270 = vmul.f32 %v3238, %v838
        %v3271 = vmul.f32 %v3239, %v839
        %v3272 = vmul.f32 %v3240, %v840
        %v3273 = vmul.f32 %v3241, %v841
        %v3274 = vmul.f32 %v3242, %v842
        %v3275 = vmul.f32 %v3243, %v843
        %v3276 = vmul.f32 %v3244, %v844
        %v3277 = vmul.f32 %v3245, %v845
        %v3278 = vmul.f32 %v3246, %v846
        %v3279 = vmul.f32 %v3247, %v847
        %v3280 = vmul.f32 %v3248, %v848
        %v3281 = vmul.f32 %v3249, %v849
        %v3282 = vmul.f32 %v3250, %v850
        %v3283 = vmul.f32 %v3251, %v851
        %v3284 = vmul.f32 %v3252, %v852
        %v3285 = vmul.f32 %v3253, %v853
        %v3286 = vmul.f32 %v3254, %v854
        %v3287 = vmul.f32 %v3255, %v855
        %v3288 = vmul.f32 %v3256, %v856
        %v3289 = vmul.f32 %v3257, %v857
        %v3290 = vmul.f32 %v3258, %v858
        %v3291 = vmul.f32 %v3259, %v859
        %v3292 = vmul.f32 %v3260, %v860
        %v3293 = vmul.f32 %v3261, %v861
        %v3294 = vmul.f32 %v3262, %v862
        %3295 = vmatprep.subr.mxu0 0.0
        %v3296 = vand.u32 %v3278, 4294901760
        %3297 = vmatpush1.msra.mxu0 %v3296
        %3298 = vmatprep.subr.mxu0 0.0
        %v3299 = vand.u32 %v3277, 4294901760
        %3300 = vmatpush1.msra.mxu0 %v3299
        %3301 = vmatprep.subr.mxu0 0.0
        %v3302 = vand.u32 %v3276, 4294901760
        %3303 = vmatpush1.msra.mxu0 %v3302
        %3304 = vmatprep.subr.mxu0 0.0
        %v3305 = vand.u32 %v3275, 4294901760
        %3306 = vmatpush1.msra.mxu0 %v3305
        %3307 = vmatprep.subr.mxu0 0.0
        %v3308 = vand.u32 %v3274, 4294901760
        %3309 = vmatpush1.msra.mxu0 %v3308
        %3310 = vmatprep.subr.mxu0 0.0
        %v3311 = vand.u32 %v3273, 4294901760
        %3312 = vmatpush1.msra.mxu0 %v3311
        %3313 = vmatprep.subr.mxu0 0.0
        %v3314 = vand.u32 %v3272, 4294901760
        %3315 = vmatpush1.msra.mxu0 %v3314
        %3316 = vmatprep.subr.mxu0 0.0
        %v3317 = vand.u32 %v3271, 4294901760
        %3318 = vmatpush1.msra.mxu0 %v3317
        %3319 = vmatprep.subr.mxu0 0.0
        %v3320 = vand.u32 %v3270, 4294901760
        %3321 = vmatpush1.msra.mxu0 %v3320
        %3322 = vmatprep.subr.mxu0 0.0
        %v3323 = vand.u32 %v3269, 4294901760
        %3324 = vmatpush1.msra.mxu0 %v3323
        %3325 = vmatprep.subr.mxu0 0.0
        %v3326 = vand.u32 %v3268, 4294901760
        %3327 = vmatpush1.msra.mxu0 %v3326
        %3328 = vmatprep.subr.mxu0 0.0
        %v3329 = vand.u32 %v3267, 4294901760
        %3330 = vmatpush1.msra.mxu0 %v3329
        %3331 = vmatprep.subr.mxu0 0.0
        %v3332 = vand.u32 %v3266, 4294901760
        %3333 = vmatpush1.msra.mxu0 %v3332
        %3334 = vmatprep.subr.mxu0 0.0
        %v3335 = vand.u32 %v3265, 4294901760
        %3336 = vmatpush1.msra.mxu0 %v3335
        %3337 = vmatprep.subr.mxu0 0.0
        %v3338 = vand.u32 %v3264, 4294901760
        %3339 = vmatpush1.msra.mxu0 %v3338
        %3340 = vmatprep.subr.mxu0 0.0
        %v3341 = vand.u32 %v3263, 4294901760
        %3342 = vmatpush1.msra.mxu0 %v3341
        %3343 = vmatprep.subr.mxu0 0.0
        %v3344 = vand.u32 %v3294, 4294901760
        %3345 = vmatpush2.msra.mxu0 %v3344
        %3346 = vmatprep.subr.mxu0 0.0
        %v3347 = vand.u32 %v3293, 4294901760
        %3348 = vmatpush2.msra.mxu0 %v3347
        %3349 = vmatprep.subr.mxu0 0.0
        %v3350 = vand.u32 %v3292, 4294901760
        %3351 = vmatpush2.msra.mxu0 %v3350
        %3352 = vmatprep.subr.mxu0 0.0
        %v3353 = vand.u32 %v3291, 4294901760
        %3354 = vmatpush2.msra.mxu0 %v3353
        %3355 = vmatprep.subr.mxu0 0.0
        %v3356 = vand.u32 %v3290, 4294901760
        %3357 = vmatpush2.msra.mxu0 %v3356
        %3358 = vmatprep.subr.mxu0 0.0
        %v3359 = vand.u32 %v3289, 4294901760
        %3360 = vmatpush2.msra.mxu0 %v3359
        %3361 = vmatprep.subr.mxu0 0.0
        %v3362 = vand.u32 %v3288, 4294901760
        %3363 = vmatpush2.msra.mxu0 %v3362
        %3364 = vmatprep.subr.mxu0 0.0
        %v3365 = vand.u32 %v3287, 4294901760
        %3366 = vmatpush2.msra.mxu0 %v3365
        %3367 = vmatprep.subr.mxu0 0.0
        %v3368 = vand.u32 %v3286, 4294901760
        %3369 = vmatpush2.msra.mxu0 %v3368
        %3370 = vmatprep.subr.mxu0 0.0
        %v3371 = vand.u32 %v3285, 4294901760
        %3372 = vmatpush2.msra.mxu0 %v3371
        %3373 = vmatprep.subr.mxu0 0.0
        %v3374 = vand.u32 %v3284, 4294901760
        %3375 = vmatpush2.msra.mxu0 %v3374
        %3376 = vmatprep.subr.mxu0 0.0
        %v3377 = vand.u32 %v3283, 4294901760
        %3378 = vmatpush2.msra.mxu0 %v3377
        %3379 = vmatprep.subr.mxu0 0.0
        %v3380 = vand.u32 %v3282, 4294901760
        %3381 = vmatpush2.msra.mxu0 %v3380
        %3382 = vmatprep.subr.mxu0 0.0
        %v3383 = vand.u32 %v3281, 4294901760
        %3384 = vmatpush2.msra.mxu0 %v3383
        %3385 = vmatprep.subr.mxu0 0.0
        %v3386 = vand.u32 %v3280, 4294901760
        %3387 = vmatpush2.msra.mxu0 %v3386
        %3388 = vmatprep.subr.mxu0 0.0
        %v3389 = vand.u32 %v3279, 4294901760
        %3390 = vmatpush2.msra.mxu0 %v3389
        %v3391 = vand.u32 %v3128, 4294901760
        %v3392 = vsub.f32 %v3128, %v3391
        %v3393 = vand.u32 %v3392, 4294901760
        %v3394 = vsub.f32 %v3392, %v3393
        %v3395 = vand.u32 %v3394, 4294901760
        %3396 = vmatprep.mubr.f32.mxu0 %v3395
        %v3397 = vand.u32 %v3127, 4294901760
        %v3398 = vsub.f32 %v3127, %v3397
        %v3399 = vand.u32 %v3398, 4294901760
        %v3400 = vsub.f32 %v3398, %v3399
        %v3401 = vand.u32 %v3400, 4294901760
        %3402 = vmatmul.mubr.f32.gmra.mxu0 %v3401
        %v3403 = vpop.f32.mrf.mxu0
        %v3404 = vadd.f32 0.0, %v3403
        %v3405 = vpop.f32.mrf.mxu0
        %v3406 = vand.u32 %v3130, 4294901760
        %v3407 = vsub.f32 %v3130, %v3406
        %v3408 = vand.u32 %v3407, 4294901760
        %v3409 = vsub.f32 %v3407, %v3408
        %v3410 = vand.u32 %v3409, 4294901760
        %3411 = vmatprep.mubr.f32.mxu0 %v3410
        %v3412 = vand.u32 %v3129, 4294901760
        %v3413 = vsub.f32 %v3129, %v3412
        %v3414 = vand.u32 %v3413, 4294901760
        %v3415 = vsub.f32 %v3413, %v3414
        %v3416 = vand.u32 %v3415, 4294901760
        %3417 = vmatmul.mubr.f32.gmra.mxu0 %v3416
        %v3418 = vpop.f32.mrf.mxu0
        %v3419 = vadd.f32 0.0, %v3418
        %v3420 = vpop.f32.mrf.mxu0
        %v3421 = vand.u32 %v3132, 4294901760
        %v3422 = vsub.f32 %v3132, %v3421
        %v3423 = vand.u32 %v3422, 4294901760
        %v3424 = vsub.f32 %v3422, %v3423
        %v3425 = vand.u32 %v3424, 4294901760
        %3426 = vmatprep.mubr.f32.mxu0 %v3425
        %v3427 = vand.u32 %v3131, 4294901760
        %v3428 = vsub.f32 %v3131, %v3427
        %v3429 = vand.u32 %v3428, 4294901760
        %v3430 = vsub.f32 %v3428, %v3429
        %v3431 = vand.u32 %v3430, 4294901760
        %3432 = vmatmul.mubr.f32.gmra.mxu0 %v3431
        %v3433 = vpop.f32.mrf.mxu0
        %v3434 = vadd.f32 0.0, %v3433
        %v3435 = vpop.f32.mrf.mxu0
        %v3436 = vand.u32 %v3134, 4294901760
        %v3437 = vsub.f32 %v3134, %v3436
        %v3438 = vand.u32 %v3437, 4294901760
        %v3439 = vsub.f32 %v3437, %v3438
        %v3440 = vand.u32 %v3439, 4294901760
        %3441 = vmatprep.mubr.f32.mxu0 %v3440
        %v3442 = vand.u32 %v3133, 4294901760
        %v3443 = vsub.f32 %v3133, %v3442
        %v3444 = vand.u32 %v3443, 4294901760
        %v3445 = vsub.f32 %v3443, %v3444
        %v3446 = vand.u32 %v3445, 4294901760
        %3447 = vmatmul.mubr.f32.gmra.mxu0 %v3446
        %v3448 = vpop.f32.mrf.mxu0
        %v3449 = vadd.f32 0.0, %v3448
        %v3450 = vpop.f32.mrf.mxu0
        %3451 = vdwg.mxu0
        %3452 = vmatprep.subr.mxu0 0.0
        %v3453 = vand.u32 %v3278, 4294901760
        %v3454 = vsub.f32 %v3278, %v3453
        %v3455 = vand.u32 %v3454, 4294901760
        %v3456 = vsub.f32 %v3454, %v3455
        %v3457 = vand.u32 %v3456, 4294901760
        %3458 = vmatpush1.msra.mxu0 %v3457
        %3459 = vmatprep.subr.mxu0 0.0
        %v3460 = vand.u32 %v3277, 4294901760
        %v3461 = vsub.f32 %v3277, %v3460
        %v3462 = vand.u32 %v3461, 4294901760
        %v3463 = vsub.f32 %v3461, %v3462
        %v3464 = vand.u32 %v3463, 4294901760
        %3465 = vmatpush1.msra.mxu0 %v3464
        %3466 = vmatprep.subr.mxu0 0.0
        %v3467 = vand.u32 %v3276, 4294901760
        %v3468 = vsub.f32 %v3276, %v3467
        %v3469 = vand.u32 %v3468, 4294901760
        %v3470 = vsub.f32 %v3468, %v3469
        %v3471 = vand.u32 %v3470, 4294901760
        %3472 = vmatpush1.msra.mxu0 %v3471
        %3473 = vmatprep.subr.mxu0 0.0
        %v3474 = vand.u32 %v3275, 4294901760
        %v3475 = vsub.f32 %v3275, %v3474
        %v3476 = vand.u32 %v3475, 4294901760
        %v3477 = vsub.f32 %v3475, %v3476
        %v3478 = vand.u32 %v3477, 4294901760
        %3479 = vmatpush1.msra.mxu0 %v3478
        %3480 = vmatprep.subr.mxu0 0.0
        %v3481 = vand.u32 %v3274, 4294901760
        %v3482 = vsub.f32 %v3274, %v3481
        %v3483 = vand.u32 %v3482, 4294901760
        %v3484 = vsub.f32 %v3482, %v3483
        %v3485 = vand.u32 %v3484, 4294901760
        %3486 = vmatpush1.msra.mxu0 %v3485
        %3487 = vmatprep.subr.mxu0 0.0
        %v3488 = vand.u32 %v3273, 4294901760
        %v3489 = vsub.f32 %v3273, %v3488
        %v3490 = vand.u32 %v3489, 4294901760
        %v3491 = vsub.f32 %v3489, %v3490
        %v3492 = vand.u32 %v3491, 4294901760
        %3493 = vmatpush1.msra.mxu0 %v3492
        %3494 = vmatprep.subr.mxu0 0.0
        %v3495 = vand.u32 %v3272, 4294901760
        %v3496 = vsub.f32 %v3272, %v3495
        %v3497 = vand.u32 %v3496, 4294901760
        %v3498 = vsub.f32 %v3496, %v3497
        %v3499 = vand.u32 %v3498, 4294901760
        %3500 = vmatpush1.msra.mxu0 %v3499
        %3501 = vmatprep.subr.mxu0 0.0
        %v3502 = vand.u32 %v3271, 4294901760
        %v3503 = vsub.f32 %v3271, %v3502
        %v3504 = vand.u32 %v3503, 4294901760
        %v3505 = vsub.f32 %v3503, %v3504
        %v3506 = vand.u32 %v3505, 4294901760
        %3507 = vmatpush1.msra.mxu0 %v3506
        %3508 = vmatprep.subr.mxu0 0.0
        %v3509 = vand.u32 %v3270, 4294901760
        %v3510 = vsub.f32 %v3270, %v3509
        %v3511 = vand.u32 %v3510, 4294901760
        %v3512 = vsub.f32 %v3510, %v3511
        %v3513 = vand.u32 %v3512, 4294901760
        %3514 = vmatpush1.msra.mxu0 %v3513
        %3515 = vmatprep.subr.mxu0 0.0
        %v3516 = vand.u32 %v3269, 4294901760
        %v3517 = vsub.f32 %v3269, %v3516
        %v3518 = vand.u32 %v3517, 4294901760
        %v3519 = vsub.f32 %v3517, %v3518
        %v3520 = vand.u32 %v3519, 4294901760
        %3521 = vmatpush1.msra.mxu0 %v3520
        %3522 = vmatprep.subr.mxu0 0.0
        %v3523 = vand.u32 %v3268, 4294901760
        %v3524 = vsub.f32 %v3268, %v3523
        %v3525 = vand.u32 %v3524, 4294901760
        %v3526 = vsub.f32 %v3524, %v3525
        %v3527 = vand.u32 %v3526, 4294901760
        %3528 = vmatpush1.msra.mxu0 %v3527
        %3529 = vmatprep.subr.mxu0 0.0
        %v3530 = vand.u32 %v3267, 4294901760
        %v3531 = vsub.f32 %v3267, %v3530
        %v3532 = vand.u32 %v3531, 4294901760
        %v3533 = vsub.f32 %v3531, %v3532
        %v3534 = vand.u32 %v3533, 4294901760
        %3535 = vmatpush1.msra.mxu0 %v3534
        %3536 = vmatprep.subr.mxu0 0.0
        %v3537 = vand.u32 %v3266, 4294901760
        %v3538 = vsub.f32 %v3266, %v3537
        %v3539 = vand.u32 %v3538, 4294901760
        %v3540 = vsub.f32 %v3538, %v3539
        %v3541 = vand.u32 %v3540, 4294901760
        %3542 = vmatpush1.msra.mxu0 %v3541
        %3543 = vmatprep.subr.mxu0 0.0
        %v3544 = vand.u32 %v3265, 4294901760
        %v3545 = vsub.f32 %v3265, %v3544
        %v3546 = vand.u32 %v3545, 4294901760
        %v3547 = vsub.f32 %v3545, %v3546
        %v3548 = vand.u32 %v3547, 4294901760
        %3549 = vmatpush1.msra.mxu0 %v3548
        %3550 = vmatprep.subr.mxu0 0.0
        %v3551 = vand.u32 %v3264, 4294901760
        %v3552 = vsub.f32 %v3264, %v3551
        %v3553 = vand.u32 %v3552, 4294901760
        %v3554 = vsub.f32 %v3552, %v3553
        %v3555 = vand.u32 %v3554, 4294901760
        %3556 = vmatpush1.msra.mxu0 %v3555
        %3557 = vmatprep.subr.mxu0 0.0
        %v3558 = vand.u32 %v3263, 4294901760
        %v3559 = vsub.f32 %v3263, %v3558
        %v3560 = vand.u32 %v3559, 4294901760
        %v3561 = vsub.f32 %v3559, %v3560
        %v3562 = vand.u32 %v3561, 4294901760
        %3563 = vmatpush1.msra.mxu0 %v3562
        %3564 = vmatprep.subr.mxu0 0.0
        %v3565 = vand.u32 %v3294, 4294901760
        %v3566 = vsub.f32 %v3294, %v3565
        %v3567 = vand.u32 %v3566, 4294901760
        %v3568 = vsub.f32 %v3566, %v3567
        %v3569 = vand.u32 %v3568, 4294901760
        %3570 = vmatpush2.msra.mxu0 %v3569
        %3571 = vmatprep.subr.mxu0 0.0
        %v3572 = vand.u32 %v3293, 4294901760
        %v3573 = vsub.f32 %v3293, %v3572
        %v3574 = vand.u32 %v3573, 4294901760
        %v3575 = vsub.f32 %v3573, %v3574
        %v3576 = vand.u32 %v3575, 4294901760
        %3577 = vmatpush2.msra.mxu0 %v3576
        %3578 = vmatprep.subr.mxu0 0.0
        %v3579 = vand.u32 %v3292, 4294901760
        %v3580 = vsub.f32 %v3292, %v3579
        %v3581 = vand.u32 %v3580, 4294901760
        %v3582 = vsub.f32 %v3580, %v3581
        %v3583 = vand.u32 %v3582, 4294901760
        %3584 = vmatpush2.msra.mxu0 %v3583
        %3585 = vmatprep.subr.mxu0 0.0
        %v3586 = vand.u32 %v3291, 4294901760
        %v3587 = vsub.f32 %v3291, %v3586
        %v3588 = vand.u32 %v3587, 4294901760
        %v3589 = vsub.f32 %v3587, %v3588
        %v3590 = vand.u32 %v3589, 4294901760
        %3591 = vmatpush2.msra.mxu0 %v3590
        %3592 = vmatprep.subr.mxu0 0.0
        %v3593 = vand.u32 %v3290, 4294901760
        %v3594 = vsub.f32 %v3290, %v3593
        %v3595 = vand.u32 %v3594, 4294901760
        %v3596 = vsub.f32 %v3594, %v3595
        %v3597 = vand.u32 %v3596, 4294901760
        %3598 = vmatpush2.msra.mxu0 %v3597
        %3599 = vmatprep.subr.mxu0 0.0
        %v3600 = vand.u32 %v3289, 4294901760
        %v3601 = vsub.f32 %v3289, %v3600
        %v3602 = vand.u32 %v3601, 4294901760
        %v3603 = vsub.f32 %v3601, %v3602
        %v3604 = vand.u32 %v3603, 4294901760
        %3605 = vmatpush2.msra.mxu0 %v3604
        %3606 = vmatprep.subr.mxu0 0.0
        %v3607 = vand.u32 %v3288, 4294901760
        %v3608 = vsub.f32 %v3288, %v3607
        %v3609 = vand.u32 %v3608, 4294901760
        %v3610 = vsub.f32 %v3608, %v3609
        %v3611 = vand.u32 %v3610, 4294901760
        %3612 = vmatpush2.msra.mxu0 %v3611
        %3613 = vmatprep.subr.mxu0 0.0
        %v3614 = vand.u32 %v3287, 4294901760
        %v3615 = vsub.f32 %v3287, %v3614
        %v3616 = vand.u32 %v3615, 4294901760
        %v3617 = vsub.f32 %v3615, %v3616
        %v3618 = vand.u32 %v3617, 4294901760
        %3619 = vmatpush2.msra.mxu0 %v3618
        %3620 = vmatprep.subr.mxu0 0.0
        %v3621 = vand.u32 %v3286, 4294901760
        %v3622 = vsub.f32 %v3286, %v3621
        %v3623 = vand.u32 %v3622, 4294901760
        %v3624 = vsub.f32 %v3622, %v3623
        %v3625 = vand.u32 %v3624, 4294901760
        %3626 = vmatpush2.msra.mxu0 %v3625
        %3627 = vmatprep.subr.mxu0 0.0
        %v3628 = vand.u32 %v3285, 4294901760
        %v3629 = vsub.f32 %v3285, %v3628
        %v3630 = vand.u32 %v3629, 4294901760
        %v3631 = vsub.f32 %v3629, %v3630
        %v3632 = vand.u32 %v3631, 4294901760
        %3633 = vmatpush2.msra.mxu0 %v3632
        %3634 = vmatprep.subr.mxu0 0.0
        %v3635 = vand.u32 %v3284, 4294901760
        %v3636 = vsub.f32 %v3284, %v3635
        %v3637 = vand.u32 %v3636, 4294901760
        %v3638 = vsub.f32 %v3636, %v3637
        %v3639 = vand.u32 %v3638, 4294901760
        %3640 = vmatpush2.msra.mxu0 %v3639
        %3641 = vmatprep.subr.mxu0 0.0
        %v3642 = vand.u32 %v3283, 4294901760
        %v3643 = vsub.f32 %v3283, %v3642
        %v3644 = vand.u32 %v3643, 4294901760
        %v3645 = vsub.f32 %v3643, %v3644
        %v3646 = vand.u32 %v3645, 4294901760
        %3647 = vmatpush2.msra.mxu0 %v3646
        %3648 = vmatprep.subr.mxu0 0.0
        %v3649 = vand.u32 %v3282, 4294901760
        %v3650 = vsub.f32 %v3282, %v3649
        %v3651 = vand.u32 %v3650, 4294901760
        %v3652 = vsub.f32 %v3650, %v3651
        %v3653 = vand.u32 %v3652, 4294901760
        %3654 = vmatpush2.msra.mxu0 %v3653
        %3655 = vmatprep.subr.mxu0 0.0
        %v3656 = vand.u32 %v3281, 4294901760
        %v3657 = vsub.f32 %v3281, %v3656
        %v3658 = vand.u32 %v3657, 4294901760
        %v3659 = vsub.f32 %v3657, %v3658
        %v3660 = vand.u32 %v3659, 4294901760
        %3661 = vmatpush2.msra.mxu0 %v3660
        %3662 = vmatprep.subr.mxu0 0.0
        %v3663 = vand.u32 %v3280, 4294901760
        %v3664 = vsub.f32 %v3280, %v3663
        %v3665 = vand.u32 %v3664, 4294901760
        %v3666 = vsub.f32 %v3664, %v3665
        %v3667 = vand.u32 %v3666, 4294901760
        %3668 = vmatpush2.msra.mxu0 %v3667
        %3669 = vmatprep.subr.mxu0 0.0
        %v3670 = vand.u32 %v3279, 4294901760
        %v3671 = vsub.f32 %v3279, %v3670
        %v3672 = vand.u32 %v3671, 4294901760
        %v3673 = vsub.f32 %v3671, %v3672
        %v3674 = vand.u32 %v3673, 4294901760
        %3675 = vmatpush2.msra.mxu0 %v3674
        %v3676 = vand.u32 %v3128, 4294901760
        %3677 = vmatprep.mubr.f32.mxu0 %v3676
        %v3678 = vand.u32 %v3127, 4294901760
        %3679 = vmatmul.mubr.f32.gmra.mxu0 %v3678
        %v3680 = vpop.f32.mrf.mxu0
        %v3681 = vadd.f32 %v3404, %v3680
        %v3682 = vpop.f32.mrf.mxu0
        %v3683 = vand.u32 %v3130, 4294901760
        %3684 = vmatprep.mubr.f32.mxu0 %v3683
        %v3685 = vand.u32 %v3129, 4294901760
        %3686 = vmatmul.mubr.f32.gmra.mxu0 %v3685
        %v3687 = vpop.f32.mrf.mxu0
        %v3688 = vadd.f32 %v3419, %v3687
        %v3689 = vpop.f32.mrf.mxu0
        %v3690 = vand.u32 %v3132, 4294901760
        %3691 = vmatprep.mubr.f32.mxu0 %v3690
        %v3692 = vand.u32 %v3131, 4294901760
        %3693 = vmatmul.mubr.f32.gmra.mxu0 %v3692
        %v3694 = vpop.f32.mrf.mxu0
        %v3695 = vadd.f32 %v3434, %v3694
        %v3696 = vpop.f32.mrf.mxu0
        %v3697 = vand.u32 %v3134, 4294901760
        %3698 = vmatprep.mubr.f32.mxu0 %v3697
        %v3699 = vand.u32 %v3133, 4294901760
        %3700 = vmatmul.mubr.f32.gmra.mxu0 %v3699
        %v3701 = vpop.f32.mrf.mxu0
        %v3702 = vadd.f32 %v3449, %v3701
        %v3703 = vpop.f32.mrf.mxu0
        %3704 = vdwg.mxu0
        %3705 = vmatprep.subr.mxu0 0.0
        %v3706 = vand.u32 %v3278, 4294901760
        %v3707 = vsub.f32 %v3278, %v3706
        %3708 = vmatpush1.msra.mxu0 %v3707
        %3709 = vmatprep.subr.mxu0 0.0
        %v3710 = vand.u32 %v3277, 4294901760
        %v3711 = vsub.f32 %v3277, %v3710
        %3712 = vmatpush1.msra.mxu0 %v3711
        %3713 = vmatprep.subr.mxu0 0.0
        %v3714 = vand.u32 %v3276, 4294901760
        %v3715 = vsub.f32 %v3276, %v3714
        %3716 = vmatpush1.msra.mxu0 %v3715
        %3717 = vmatprep.subr.mxu0 0.0
        %v3718 = vand.u32 %v3275, 4294901760
        %v3719 = vsub.f32 %v3275, %v3718
        %3720 = vmatpush1.msra.mxu0 %v3719
        %3721 = vmatprep.subr.mxu0 0.0
        %v3722 = vand.u32 %v3274, 4294901760
        %v3723 = vsub.f32 %v3274, %v3722
        %3724 = vmatpush1.msra.mxu0 %v3723
        %3725 = vmatprep.subr.mxu0 0.0
        %v3726 = vand.u32 %v3273, 4294901760
        %v3727 = vsub.f32 %v3273, %v3726
        %3728 = vmatpush1.msra.mxu0 %v3727
        %3729 = vmatprep.subr.mxu0 0.0
        %v3730 = vand.u32 %v3272, 4294901760
        %v3731 = vsub.f32 %v3272, %v3730
        %3732 = vmatpush1.msra.mxu0 %v3731
        %3733 = vmatprep.subr.mxu0 0.0
        %v3734 = vand.u32 %v3271, 4294901760
        %v3735 = vsub.f32 %v3271, %v3734
        %3736 = vmatpush1.msra.mxu0 %v3735
        %3737 = vmatprep.subr.mxu0 0.0
        %v3738 = vand.u32 %v3270, 4294901760
        %v3739 = vsub.f32 %v3270, %v3738
        %3740 = vmatpush1.msra.mxu0 %v3739
        %3741 = vmatprep.subr.mxu0 0.0
        %v3742 = vand.u32 %v3269, 4294901760
        %v3743 = vsub.f32 %v3269, %v3742
        %3744 = vmatpush1.msra.mxu0 %v3743
        %3745 = vmatprep.subr.mxu0 0.0
        %v3746 = vand.u32 %v3268, 4294901760
        %v3747 = vsub.f32 %v3268, %v3746
        %3748 = vmatpush1.msra.mxu0 %v3747
        %3749 = vmatprep.subr.mxu0 0.0
        %v3750 = vand.u32 %v3267, 4294901760
        %v3751 = vsub.f32 %v3267, %v3750
        %3752 = vmatpush1.msra.mxu0 %v3751
        %3753 = vmatprep.subr.mxu0 0.0
        %v3754 = vand.u32 %v3266, 4294901760
        %v3755 = vsub.f32 %v3266, %v3754
        %3756 = vmatpush1.msra.mxu0 %v3755
        %3757 = vmatprep.subr.mxu0 0.0
        %v3758 = vand.u32 %v3265, 4294901760
        %v3759 = vsub.f32 %v3265, %v3758
        %3760 = vmatpush1.msra.mxu0 %v3759
        %3761 = vmatprep.subr.mxu0 0.0
        %v3762 = vand.u32 %v3264, 4294901760
        %v3763 = vsub.f32 %v3264, %v3762
        %3764 = vmatpush1.msra.mxu0 %v3763
        %3765 = vmatprep.subr.mxu0 0.0
        %v3766 = vand.u32 %v3263, 4294901760
        %v3767 = vsub.f32 %v3263, %v3766
        %3768 = vmatpush1.msra.mxu0 %v3767
        %3769 = vmatprep.subr.mxu0 0.0
        %v3770 = vand.u32 %v3294, 4294901760
        %v3771 = vsub.f32 %v3294, %v3770
        %3772 = vmatpush2.msra.mxu0 %v3771
        %3773 = vmatprep.subr.mxu0 0.0
        %v3774 = vand.u32 %v3293, 4294901760
        %v3775 = vsub.f32 %v3293, %v3774
        %3776 = vmatpush2.msra.mxu0 %v3775
        %3777 = vmatprep.subr.mxu0 0.0
        %v3778 = vand.u32 %v3292, 4294901760
        %v3779 = vsub.f32 %v3292, %v3778
        %3780 = vmatpush2.msra.mxu0 %v3779
        %3781 = vmatprep.subr.mxu0 0.0
        %v3782 = vand.u32 %v3291, 4294901760
        %v3783 = vsub.f32 %v3291, %v3782
        %3784 = vmatpush2.msra.mxu0 %v3783
        %3785 = vmatprep.subr.mxu0 0.0
        %v3786 = vand.u32 %v3290, 4294901760
        %v3787 = vsub.f32 %v3290, %v3786
        %3788 = vmatpush2.msra.mxu0 %v3787
        %3789 = vmatprep.subr.mxu0 0.0
        %v3790 = vand.u32 %v3289, 4294901760
        %v3791 = vsub.f32 %v3289, %v3790
        %3792 = vmatpush2.msra.mxu0 %v3791
        %3793 = vmatprep.subr.mxu0 0.0
        %v3794 = vand.u32 %v3288, 4294901760
        %v3795 = vsub.f32 %v3288, %v3794
        %3796 = vmatpush2.msra.mxu0 %v3795
        %3797 = vmatprep.subr.mxu0 0.0
        %v3798 = vand.u32 %v3287, 4294901760
        %v3799 = vsub.f32 %v3287, %v3798
        %3800 = vmatpush2.msra.mxu0 %v3799
        %3801 = vmatprep.subr.mxu0 0.0
        %v3802 = vand.u32 %v3286, 4294901760
        %v3803 = vsub.f32 %v3286, %v3802
        %3804 = vmatpush2.msra.mxu0 %v3803
        %3805 = vmatprep.subr.mxu0 0.0
        %v3806 = vand.u32 %v3285, 4294901760
        %v3807 = vsub.f32 %v3285, %v3806
        %3808 = vmatpush2.msra.mxu0 %v3807
        %3809 = vmatprep.subr.mxu0 0.0
        %v3810 = vand.u32 %v3284, 4294901760
        %v3811 = vsub.f32 %v3284, %v3810
        %3812 = vmatpush2.msra.mxu0 %v3811
        %3813 = vmatprep.subr.mxu0 0.0
        %v3814 = vand.u32 %v3283, 4294901760
        %v3815 = vsub.f32 %v3283, %v3814
        %3816 = vmatpush2.msra.mxu0 %v3815
        %3817 = vmatprep.subr.mxu0 0.0
        %v3818 = vand.u32 %v3282, 4294901760
        %v3819 = vsub.f32 %v3282, %v3818
        %3820 = vmatpush2.msra.mxu0 %v3819
        %3821 = vmatprep.subr.mxu0 0.0
        %v3822 = vand.u32 %v3281, 4294901760
        %v3823 = vsub.f32 %v3281, %v3822
        %3824 = vmatpush2.msra.mxu0 %v3823
        %3825 = vmatprep.subr.mxu0 0.0
        %v3826 = vand.u32 %v3280, 4294901760
        %v3827 = vsub.f32 %v3280, %v3826
        %3828 = vmatpush2.msra.mxu0 %v3827
        %3829 = vmatprep.subr.mxu0 0.0
        %v3830 = vand.u32 %v3279, 4294901760
        %v3831 = vsub.f32 %v3279, %v3830
        %3832 = vmatpush2.msra.mxu0 %v3831
        %v3833 = vand.u32 %v3128, 4294901760
        %v3834 = vsub.f32 %v3128, %v3833
        %3835 = vmatprep.mubr.f32.mxu0 %v3834
        %v3836 = vand.u32 %v3127, 4294901760
        %v3837 = vsub.f32 %v3127, %v3836
        %3838 = vmatmul.mubr.f32.gmra.mxu0 %v3837
        %v3839 = vpop.f32.mrf.mxu0
        %v3840 = vadd.f32 %v3681, %v3839
        %v3841 = vpop.f32.mrf.mxu0
        %v3842 = vand.u32 %v3130, 4294901760
        %v3843 = vsub.f32 %v3130, %v3842
        %3844 = vmatprep.mubr.f32.mxu0 %v3843
        %v3845 = vand.u32 %v3129, 4294901760
        %v3846 = vsub.f32 %v3129, %v3845
        %3847 = vmatmul.mubr.f32.gmra.mxu0 %v3846
        %v3848 = vpop.f32.mrf.mxu0
        %v3849 = vadd.f32 %v3688, %v3848
        %v3850 = vpop.f32.mrf.mxu0
        %v3851 = vand.u32 %v3132, 4294901760
        %v3852 = vsub.f32 %v3132, %v3851
        %3853 = vmatprep.mubr.f32.mxu0 %v3852
        %v3854 = vand.u32 %v3131, 4294901760
        %v3855 = vsub.f32 %v3131, %v3854
        %3856 = vmatmul.mubr.f32.gmra.mxu0 %v3855
        %v3857 = vpop.f32.mrf.mxu0
        %v3858 = vadd.f32 %v3695, %v3857
        %v3859 = vpop.f32.mrf.mxu0
        %v3860 = vand.u32 %v3134, 4294901760
        %v3861 = vsub.f32 %v3134, %v3860
        %3862 = vmatprep.mubr.f32.mxu0 %v3861
        %v3863 = vand.u32 %v3133, 4294901760
        %v3864 = vsub.f32 %v3133, %v3863
        %3865 = vmatmul.mubr.f32.gmra.mxu0 %v3864
        %v3866 = vpop.f32.mrf.mxu0
        %v3867 = vadd.f32 %v3702, %v3866
        %v3868 = vpop.f32.mrf.mxu0
        %3869 = vdwg.mxu0
        %3870 = vmatprep.subr.mxu0 0.0
        %v3871 = vand.u32 %v3278, 4294901760
        %3872 = vmatpush1.msra.mxu0 %v3871
        %3873 = vmatprep.subr.mxu0 0.0
        %v3874 = vand.u32 %v3277, 4294901760
        %3875 = vmatpush1.msra.mxu0 %v3874
        %3876 = vmatprep.subr.mxu0 0.0
        %v3877 = vand.u32 %v3276, 4294901760
        %3878 = vmatpush1.msra.mxu0 %v3877
        %3879 = vmatprep.subr.mxu0 0.0
        %v3880 = vand.u32 %v3275, 4294901760
        %3881 = vmatpush1.msra.mxu0 %v3880
        %3882 = vmatprep.subr.mxu0 0.0
        %v3883 = vand.u32 %v3274, 4294901760
        %3884 = vmatpush1.msra.mxu0 %v3883
        %3885 = vmatprep.subr.mxu0 0.0
        %v3886 = vand.u32 %v3273, 4294901760
        %3887 = vmatpush1.msra.mxu0 %v3886
        %3888 = vmatprep.subr.mxu0 0.0
        %v3889 = vand.u32 %v3272, 4294901760
        %3890 = vmatpush1.msra.mxu0 %v3889
        %3891 = vmatprep.subr.mxu0 0.0
        %v3892 = vand.u32 %v3271, 4294901760
        %3893 = vmatpush1.msra.mxu0 %v3892
        %3894 = vmatprep.subr.mxu0 0.0
        %v3895 = vand.u32 %v3270, 4294901760
        %3896 = vmatpush1.msra.mxu0 %v3895
        %3897 = vmatprep.subr.mxu0 0.0
        %v3898 = vand.u32 %v3269, 4294901760
        %3899 = vmatpush1.msra.mxu0 %v3898
        %3900 = vmatprep.subr.mxu0 0.0
        %v3901 = vand.u32 %v3268, 4294901760
        %3902 = vmatpush1.msra.mxu0 %v3901
        %3903 = vmatprep.subr.mxu0 0.0
        %v3904 = vand.u32 %v3267, 4294901760
        %3905 = vmatpush1.msra.mxu0 %v3904
        %3906 = vmatprep.subr.mxu0 0.0
        %v3907 = vand.u32 %v3266, 4294901760
        %3908 = vmatpush1.msra.mxu0 %v3907
        %3909 = vmatprep.subr.mxu0 0.0
        %v3910 = vand.u32 %v3265, 4294901760
        %3911 = vmatpush1.msra.mxu0 %v3910
        %3912 = vmatprep.subr.mxu0 0.0
        %v3913 = vand.u32 %v3264, 4294901760
        %3914 = vmatpush1.msra.mxu0 %v3913
        %3915 = vmatprep.subr.mxu0 0.0
        %v3916 = vand.u32 %v3263, 4294901760
        %3917 = vmatpush1.msra.mxu0 %v3916
        %3918 = vmatprep.subr.mxu0 0.0
        %v3919 = vand.u32 %v3294, 4294901760
        %3920 = vmatpush2.msra.mxu0 %v3919
        %3921 = vmatprep.subr.mxu0 0.0
        %v3922 = vand.u32 %v3293, 4294901760
        %3923 = vmatpush2.msra.mxu0 %v3922
        %3924 = vmatprep.subr.mxu0 0.0
        %v3925 = vand.u32 %v3292, 4294901760
        %3926 = vmatpush2.msra.mxu0 %v3925
        %3927 = vmatprep.subr.mxu0 0.0
        %v3928 = vand.u32 %v3291, 4294901760
        %3929 = vmatpush2.msra.mxu0 %v3928
        %3930 = vmatprep.subr.mxu0 0.0
        %v3931 = vand.u32 %v3290, 4294901760
        %3932 = vmatpush2.msra.mxu0 %v3931
        %3933 = vmatprep.subr.mxu0 0.0
        %v3934 = vand.u32 %v3289, 4294901760
        %3935 = vmatpush2.msra.mxu0 %v3934
        %3936 = vmatprep.subr.mxu0 0.0
        %v3937 = vand.u32 %v3288, 4294901760
        %3938 = vmatpush2.msra.mxu0 %v3937
        %3939 = vmatprep.subr.mxu0 0.0
        %v3940 = vand.u32 %v3287, 4294901760
        %3941 = vmatpush2.msra.mxu0 %v3940
        %3942 = vmatprep.subr.mxu0 0.0
        %v3943 = vand.u32 %v3286, 4294901760
        %3944 = vmatpush2.msra.mxu0 %v3943
        %3945 = vmatprep.subr.mxu0 0.0
        %v3946 = vand.u32 %v3285, 4294901760
        %3947 = vmatpush2.msra.mxu0 %v3946
        %3948 = vmatprep.subr.mxu0 0.0
        %v3949 = vand.u32 %v3284, 4294901760
        %3950 = vmatpush2.msra.mxu0 %v3949
        %3951 = vmatprep.subr.mxu0 0.0
        %v3952 = vand.u32 %v3283, 4294901760
        %3953 = vmatpush2.msra.mxu0 %v3952
        %3954 = vmatprep.subr.mxu0 0.0
        %v3955 = vand.u32 %v3282, 4294901760
        %3956 = vmatpush2.msra.mxu0 %v3955
        %3957 = vmatprep.subr.mxu0 0.0
        %v3958 = vand.u32 %v3281, 4294901760
        %3959 = vmatpush2.msra.mxu0 %v3958
        %3960 = vmatprep.subr.mxu0 0.0
        %v3961 = vand.u32 %v3280, 4294901760
        %3962 = vmatpush2.msra.mxu0 %v3961
        %3963 = vmatprep.subr.mxu0 0.0
        %v3964 = vand.u32 %v3279, 4294901760
        %3965 = vmatpush2.msra.mxu0 %v3964
        %v3966 = vand.u32 %v3128, 4294901760
        %v3967 = vsub.f32 %v3128, %v3966
        %v3968 = vand.u32 %v3967, 4294901760
        %3969 = vmatprep.mubr.f32.mxu0 %v3968
        %v3970 = vand.u32 %v3127, 4294901760
        %v3971 = vsub.f32 %v3127, %v3970
        %v3972 = vand.u32 %v3971, 4294901760
        %3973 = vmatmul.mubr.f32.gmra.mxu0 %v3972
        %v3974 = vpop.f32.mrf.mxu0
        %v3975 = vadd.f32 %v3840, %v3974
        %v3976 = vpop.f32.mrf.mxu0
        %v3977 = vand.u32 %v3130, 4294901760
        %v3978 = vsub.f32 %v3130, %v3977
        %v3979 = vand.u32 %v3978, 4294901760
        %3980 = vmatprep.mubr.f32.mxu0 %v3979
        %v3981 = vand.u32 %v3129, 4294901760
        %v3982 = vsub.f32 %v3129, %v3981
        %v3983 = vand.u32 %v3982, 4294901760
        %3984 = vmatmul.mubr.f32.gmra.mxu0 %v3983
        %v3985 = vpop.f32.mrf.mxu0
        %v3986 = vadd.f32 %v3849, %v3985
        %v3987 = vpop.f32.mrf.mxu0
        %v3988 = vand.u32 %v3132, 4294901760
        %v3989 = vsub.f32 %v3132, %v3988
        %v3990 = vand.u32 %v3989, 4294901760
        %3991 = vmatprep.mubr.f32.mxu0 %v3990
        %v3992 = vand.u32 %v3131, 4294901760
        %v3993 = vsub.f32 %v3131, %v3992
        %v3994 = vand.u32 %v3993, 4294901760
        %3995 = vmatmul.mubr.f32.gmra.mxu0 %v3994
        %v3996 = vpop.f32.mrf.mxu0
        %v3997 = vadd.f32 %v3858, %v3996
        %v3998 = vpop.f32.mrf.mxu0
        %v3999 = vand.u32 %v3134, 4294901760
        %v4000 = vsub.f32 %v3134, %v3999
        %v4001 = vand.u32 %v4000, 4294901760
        %4002 = vmatprep.mubr.f32.mxu0 %v4001
        %v4003 = vand.u32 %v3133, 4294901760
        %v4004 = vsub.f32 %v3133, %v4003
        %v4005 = vand.u32 %v4004, 4294901760
        %4006 = vmatmul.mubr.f32.gmra.mxu0 %v4005
        %v4007 = vpop.f32.mrf.mxu0
        %v4008 = vadd.f32 %v3867, %v4007
        %v4009 = vpop.f32.mrf.mxu0
        %4010 = vdwg.mxu0
        %4011 = vmatprep.subr.mxu0 0.0
        %v4012 = vand.u32 %v3278, 4294901760
        %v4013 = vsub.f32 %v3278, %v4012
        %v4014 = vand.u32 %v4013, 4294901760
        %4015 = vmatpush1.msra.mxu0 %v4014
        %4016 = vmatprep.subr.mxu0 0.0
        %v4017 = vand.u32 %v3277, 4294901760
        %v4018 = vsub.f32 %v3277, %v4017
        %v4019 = vand.u32 %v4018, 4294901760
        %4020 = vmatpush1.msra.mxu0 %v4019
        %4021 = vmatprep.subr.mxu0 0.0
        %v4022 = vand.u32 %v3276, 4294901760
        %v4023 = vsub.f32 %v3276, %v4022
        %v4024 = vand.u32 %v4023, 4294901760
        %4025 = vmatpush1.msra.mxu0 %v4024
        %4026 = vmatprep.subr.mxu0 0.0
        %v4027 = vand.u32 %v3275, 4294901760
        %v4028 = vsub.f32 %v3275, %v4027
        %v4029 = vand.u32 %v4028, 4294901760
        %4030 = vmatpush1.msra.mxu0 %v4029
        %4031 = vmatprep.subr.mxu0 0.0
        %v4032 = vand.u32 %v3274, 4294901760
        %v4033 = vsub.f32 %v3274, %v4032
        %v4034 = vand.u32 %v4033, 4294901760
        %4035 = vmatpush1.msra.mxu0 %v4034
        %4036 = vmatprep.subr.mxu0 0.0
        %v4037 = vand.u32 %v3273, 4294901760
        %v4038 = vsub.f32 %v3273, %v4037
        %v4039 = vand.u32 %v4038, 4294901760
        %4040 = vmatpush1.msra.mxu0 %v4039
        %4041 = vmatprep.subr.mxu0 0.0
        %v4042 = vand.u32 %v3272, 4294901760
        %v4043 = vsub.f32 %v3272, %v4042
        %v4044 = vand.u32 %v4043, 4294901760
        %4045 = vmatpush1.msra.mxu0 %v4044
        %4046 = vmatprep.subr.mxu0 0.0
        %v4047 = vand.u32 %v3271, 4294901760
        %v4048 = vsub.f32 %v3271, %v4047
        %v4049 = vand.u32 %v4048, 4294901760
        %4050 = vmatpush1.msra.mxu0 %v4049
        %4051 = vmatprep.subr.mxu0 0.0
        %v4052 = vand.u32 %v3270, 4294901760
        %v4053 = vsub.f32 %v3270, %v4052
        %v4054 = vand.u32 %v4053, 4294901760
        %4055 = vmatpush1.msra.mxu0 %v4054
        %4056 = vmatprep.subr.mxu0 0.0
        %v4057 = vand.u32 %v3269, 4294901760
        %v4058 = vsub.f32 %v3269, %v4057
        %v4059 = vand.u32 %v4058, 4294901760
        %4060 = vmatpush1.msra.mxu0 %v4059
        %4061 = vmatprep.subr.mxu0 0.0
        %v4062 = vand.u32 %v3268, 4294901760
        %v4063 = vsub.f32 %v3268, %v4062
        %v4064 = vand.u32 %v4063, 4294901760
        %4065 = vmatpush1.msra.mxu0 %v4064
        %4066 = vmatprep.subr.mxu0 0.0
        %v4067 = vand.u32 %v3267, 4294901760
        %v4068 = vsub.f32 %v3267, %v4067
        %v4069 = vand.u32 %v4068, 4294901760
        %4070 = vmatpush1.msra.mxu0 %v4069
        %4071 = vmatprep.subr.mxu0 0.0
        %v4072 = vand.u32 %v3266, 4294901760
        %v4073 = vsub.f32 %v3266, %v4072
        %v4074 = vand.u32 %v4073, 4294901760
        %4075 = vmatpush1.msra.mxu0 %v4074
        %4076 = vmatprep.subr.mxu0 0.0
        %v4077 = vand.u32 %v3265, 4294901760
        %v4078 = vsub.f32 %v3265, %v4077
        %v4079 = vand.u32 %v4078, 4294901760
        %4080 = vmatpush1.msra.mxu0 %v4079
        %4081 = vmatprep.subr.mxu0 0.0
        %v4082 = vand.u32 %v3264, 4294901760
        %v4083 = vsub.f32 %v3264, %v4082
        %v4084 = vand.u32 %v4083, 4294901760
        %4085 = vmatpush1.msra.mxu0 %v4084
        %4086 = vmatprep.subr.mxu0 0.0
        %v4087 = vand.u32 %v3263, 4294901760
        %v4088 = vsub.f32 %v3263, %v4087
        %v4089 = vand.u32 %v4088, 4294901760
        %4090 = vmatpush1.msra.mxu0 %v4089
        %4091 = vmatprep.subr.mxu0 0.0
        %v4092 = vand.u32 %v3294, 4294901760
        %v4093 = vsub.f32 %v3294, %v4092
        %v4094 = vand.u32 %v4093, 4294901760
        %4095 = vmatpush2.msra.mxu0 %v4094
        %4096 = vmatprep.subr.mxu0 0.0
        %v4097 = vand.u32 %v3293, 4294901760
        %v4098 = vsub.f32 %v3293, %v4097
        %v4099 = vand.u32 %v4098, 4294901760
        %4100 = vmatpush2.msra.mxu0 %v4099
        %4101 = vmatprep.subr.mxu0 0.0
        %v4102 = vand.u32 %v3292, 4294901760
        %v4103 = vsub.f32 %v3292, %v4102
        %v4104 = vand.u32 %v4103, 4294901760
        %4105 = vmatpush2.msra.mxu0 %v4104
        %4106 = vmatprep.subr.mxu0 0.0
        %v4107 = vand.u32 %v3291, 4294901760
        %v4108 = vsub.f32 %v3291, %v4107
        %v4109 = vand.u32 %v4108, 4294901760
        %4110 = vmatpush2.msra.mxu0 %v4109
        %4111 = vmatprep.subr.mxu0 0.0
        %v4112 = vand.u32 %v3290, 4294901760
        %v4113 = vsub.f32 %v3290, %v4112
        %v4114 = vand.u32 %v4113, 4294901760
        %4115 = vmatpush2.msra.mxu0 %v4114
        %4116 = vmatprep.subr.mxu0 0.0
        %v4117 = vand.u32 %v3289, 4294901760
        %v4118 = vsub.f32 %v3289, %v4117
        %v4119 = vand.u32 %v4118, 4294901760
        %4120 = vmatpush2.msra.mxu0 %v4119
        %4121 = vmatprep.subr.mxu0 0.0
        %v4122 = vand.u32 %v3288, 4294901760
        %v4123 = vsub.f32 %v3288, %v4122
        %v4124 = vand.u32 %v4123, 4294901760
        %4125 = vmatpush2.msra.mxu0 %v4124
        %4126 = vmatprep.subr.mxu0 0.0
        %v4127 = vand.u32 %v3287, 4294901760
        %v4128 = vsub.f32 %v3287, %v4127
        %v4129 = vand.u32 %v4128, 4294901760
        %4130 = vmatpush2.msra.mxu0 %v4129
        %4131 = vmatprep.subr.mxu0 0.0
        %v4132 = vand.u32 %v3286, 4294901760
        %v4133 = vsub.f32 %v3286, %v4132
        %v4134 = vand.u32 %v4133, 4294901760
        %4135 = vmatpush2.msra.mxu0 %v4134
        %4136 = vmatprep.subr.mxu0 0.0
        %v4137 = vand.u32 %v3285, 4294901760
        %v4138 = vsub.f32 %v3285, %v4137
        %v4139 = vand.u32 %v4138, 4294901760
        %4140 = vmatpush2.msra.mxu0 %v4139
        %4141 = vmatprep.subr.mxu0 0.0
        %v4142 = vand.u32 %v3284, 4294901760
        %v4143 = vsub.f32 %v3284, %v4142
        %v4144 = vand.u32 %v4143, 4294901760
        %4145 = vmatpush2.msra.mxu0 %v4144
        %4146 = vmatprep.subr.mxu0 0.0
        %v4147 = vand.u32 %v3283, 4294901760
        %v4148 = vsub.f32 %v3283, %v4147
        %v4149 = vand.u32 %v4148, 4294901760
        %4150 = vmatpush2.msra.mxu0 %v4149
        %4151 = vmatprep.subr.mxu0 0.0
        %v4152 = vand.u32 %v3282, 4294901760
        %v4153 = vsub.f32 %v3282, %v4152
        %v4154 = vand.u32 %v4153, 4294901760
        %4155 = vmatpush2.msra.mxu0 %v4154
        %4156 = vmatprep.subr.mxu0 0.0
        %v4157 = vand.u32 %v3281, 4294901760
        %v4158 = vsub.f32 %v3281, %v4157
        %v4159 = vand.u32 %v4158, 4294901760
        %4160 = vmatpush2.msra.mxu0 %v4159
        %4161 = vmatprep.subr.mxu0 0.0
        %v4162 = vand.u32 %v3280, 4294901760
        %v4163 = vsub.f32 %v3280, %v4162
        %v4164 = vand.u32 %v4163, 4294901760
        %4165 = vmatpush2.msra.mxu0 %v4164
        %4166 = vmatprep.subr.mxu0 0.0
        %v4167 = vand.u32 %v3279, 4294901760
        %v4168 = vsub.f32 %v3279, %v4167
        %v4169 = vand.u32 %v4168, 4294901760
        %4170 = vmatpush2.msra.mxu0 %v4169
        %v4171 = vand.u32 %v3128, 4294901760
        %4172 = vmatprep.mubr.f32.mxu0 %v4171
        %v4173 = vand.u32 %v3127, 4294901760
        %4174 = vmatmul.mubr.f32.gmra.mxu0 %v4173
        %v4175 = vpop.f32.mrf.mxu0
        %v4176 = vadd.f32 %v3975, %v4175
        %v4177 = vpop.f32.mrf.mxu0
        %v4178 = vand.u32 %v3130, 4294901760
        %4179 = vmatprep.mubr.f32.mxu0 %v4178
        %v4180 = vand.u32 %v3129, 4294901760
        %4181 = vmatmul.mubr.f32.gmra.mxu0 %v4180
        %v4182 = vpop.f32.mrf.mxu0
        %v4183 = vadd.f32 %v3986, %v4182
        %v4184 = vpop.f32.mrf.mxu0
        %v4185 = vand.u32 %v3132, 4294901760
        %4186 = vmatprep.mubr.f32.mxu0 %v4185
        %v4187 = vand.u32 %v3131, 4294901760
        %4188 = vmatmul.mubr.f32.gmra.mxu0 %v4187
        %v4189 = vpop.f32.mrf.mxu0
        %v4190 = vadd.f32 %v3997, %v4189
        %v4191 = vpop.f32.mrf.mxu0
        %v4192 = vand.u32 %v3134, 4294901760
        %4193 = vmatprep.mubr.f32.mxu0 %v4192
        %v4194 = vand.u32 %v3133, 4294901760
        %4195 = vmatmul.mubr.f32.gmra.mxu0 %v4194
        %v4196 = vpop.f32.mrf.mxu0
        %v4197 = vadd.f32 %v4008, %v4196
        %v4198 = vpop.f32.mrf.mxu0
        %4199 = vdwg.mxu0
        %4200 = vmatprep.subr.mxu0 0.0
        %v4201 = vand.u32 %v3278, 4294901760
        %4202 = vmatpush1.msra.mxu0 %v4201
        %4203 = vmatprep.subr.mxu0 0.0
        %v4204 = vand.u32 %v3277, 4294901760
        %4205 = vmatpush1.msra.mxu0 %v4204
        %4206 = vmatprep.subr.mxu0 0.0
        %v4207 = vand.u32 %v3276, 4294901760
        %4208 = vmatpush1.msra.mxu0 %v4207
        %4209 = vmatprep.subr.mxu0 0.0
        %v4210 = vand.u32 %v3275, 4294901760
        %4211 = vmatpush1.msra.mxu0 %v4210
        %4212 = vmatprep.subr.mxu0 0.0
        %v4213 = vand.u32 %v3274, 4294901760
        %4214 = vmatpush1.msra.mxu0 %v4213
        %4215 = vmatprep.subr.mxu0 0.0
        %v4216 = vand.u32 %v3273, 4294901760
        %4217 = vmatpush1.msra.mxu0 %v4216
        %4218 = vmatprep.subr.mxu0 0.0
        %v4219 = vand.u32 %v3272, 4294901760
        %4220 = vmatpush1.msra.mxu0 %v4219
        %4221 = vmatprep.subr.mxu0 0.0
        %v4222 = vand.u32 %v3271, 4294901760
        %4223 = vmatpush1.msra.mxu0 %v4222
        %4224 = vmatprep.subr.mxu0 0.0
        %v4225 = vand.u32 %v3270, 4294901760
        %4226 = vmatpush1.msra.mxu0 %v4225
        %4227 = vmatprep.subr.mxu0 0.0
        %v4228 = vand.u32 %v3269, 4294901760
        %4229 = vmatpush1.msra.mxu0 %v4228
        %4230 = vmatprep.subr.mxu0 0.0
        %v4231 = vand.u32 %v3268, 4294901760
        %4232 = vmatpush1.msra.mxu0 %v4231
        %4233 = vmatprep.subr.mxu0 0.0
        %v4234 = vand.u32 %v3267, 4294901760
        %4235 = vmatpush1.msra.mxu0 %v4234
        %4236 = vmatprep.subr.mxu0 0.0
        %v4237 = vand.u32 %v3266, 4294901760
        %4238 = vmatpush1.msra.mxu0 %v4237
        %4239 = vmatprep.subr.mxu0 0.0
        %v4240 = vand.u32 %v3265, 4294901760
        %4241 = vmatpush1.msra.mxu0 %v4240
        %4242 = vmatprep.subr.mxu0 0.0
        %v4243 = vand.u32 %v3264, 4294901760
        %4244 = vmatpush1.msra.mxu0 %v4243
        %4245 = vmatprep.subr.mxu0 0.0
        %v4246 = vand.u32 %v3263, 4294901760
        %4247 = vmatpush1.msra.mxu0 %v4246
        %4248 = vmatprep.subr.mxu0 0.0
        %v4249 = vand.u32 %v3294, 4294901760
        %4250 = vmatpush2.msra.mxu0 %v4249
        %4251 = vmatprep.subr.mxu0 0.0
        %v4252 = vand.u32 %v3293, 4294901760
        %4253 = vmatpush2.msra.mxu0 %v4252
        %4254 = vmatprep.subr.mxu0 0.0
        %v4255 = vand.u32 %v3292, 4294901760
        %4256 = vmatpush2.msra.mxu0 %v4255
        %4257 = vmatprep.subr.mxu0 0.0
        %v4258 = vand.u32 %v3291, 4294901760
        %4259 = vmatpush2.msra.mxu0 %v4258
        %4260 = vmatprep.subr.mxu0 0.0
        %v4261 = vand.u32 %v3290, 4294901760
        %4262 = vmatpush2.msra.mxu0 %v4261
        %4263 = vmatprep.subr.mxu0 0.0
        %v4264 = vand.u32 %v3289, 4294901760
        %4265 = vmatpush2.msra.mxu0 %v4264
        %4266 = vmatprep.subr.mxu0 0.0
        %v4267 = vand.u32 %v3288, 4294901760
        %4268 = vmatpush2.msra.mxu0 %v4267
        %4269 = vmatprep.subr.mxu0 0.0
        %v4270 = vand.u32 %v3287, 4294901760
        %4271 = vmatpush2.msra.mxu0 %v4270
        %4272 = vmatprep.subr.mxu0 0.0
        %v4273 = vand.u32 %v3286, 4294901760
        %4274 = vmatpush2.msra.mxu0 %v4273
        %4275 = vmatprep.subr.mxu0 0.0
        %v4276 = vand.u32 %v3285, 4294901760
        %4277 = vmatpush2.msra.mxu0 %v4276
        %4278 = vmatprep.subr.mxu0 0.0
        %v4279 = vand.u32 %v3284, 4294901760
        %4280 = vmatpush2.msra.mxu0 %v4279
        %4281 = vmatprep.subr.mxu0 0.0
        %v4282 = vand.u32 %v3283, 4294901760
        %4283 = vmatpush2.msra.mxu0 %v4282
        %4284 = vmatprep.subr.mxu0 0.0
        %v4285 = vand.u32 %v3282, 4294901760
        %4286 = vmatpush2.msra.mxu0 %v4285
        %4287 = vmatprep.subr.mxu0 0.0
        %v4288 = vand.u32 %v3281, 4294901760
        %4289 = vmatpush2.msra.mxu0 %v4288
        %4290 = vmatprep.subr.mxu0 0.0
        %v4291 = vand.u32 %v3280, 4294901760
        %4292 = vmatpush2.msra.mxu0 %v4291
        %4293 = vmatprep.subr.mxu0 0.0
        %v4294 = vand.u32 %v3279, 4294901760
        %4295 = vmatpush2.msra.mxu0 %v4294
        %v4296 = vand.u32 %v3128, 4294901760
        %4297 = vmatprep.mubr.f32.mxu0 %v4296
        %v4298 = vand.u32 %v3127, 4294901760
        %4299 = vmatmul.mubr.f32.gmra.mxu0 %v4298
        %v4300 = vpop.f32.mrf.mxu0
        %v4301 = vadd.f32 %v4176, %v4300
        %v4302 = vpop.f32.mrf.mxu0
        %v4303 = vand.u32 %v3130, 4294901760
        %4304 = vmatprep.mubr.f32.mxu0 %v4303
        %v4305 = vand.u32 %v3129, 4294901760
        %4306 = vmatmul.mubr.f32.gmra.mxu0 %v4305
        %v4307 = vpop.f32.mrf.mxu0
        %v4308 = vadd.f32 %v4183, %v4307
        %v4309 = vpop.f32.mrf.mxu0
        %v4310 = vand.u32 %v3132, 4294901760
        %4311 = vmatprep.mubr.f32.mxu0 %v4310
        %v4312 = vand.u32 %v3131, 4294901760
        %4313 = vmatmul.mubr.f32.gmra.mxu0 %v4312
        %v4314 = vpop.f32.mrf.mxu0
        %v4315 = vadd.f32 %v4190, %v4314
        %v4316 = vpop.f32.mrf.mxu0
        %v4317 = vand.u32 %v3134, 4294901760
        %4318 = vmatprep.mubr.f32.mxu0 %v4317
        %v4319 = vand.u32 %v3133, 4294901760
        %4320 = vmatmul.mubr.f32.gmra.mxu0 %v4319
        %v4321 = vpop.f32.mrf.mxu0
        %v4322 = vadd.f32 %v4197, %v4321
        %v4323 = vpop.f32.mrf.mxu0
        %4324 = vdwg.mxu0
        %v4325 = vadd.f32 %v3103, %v4301
        %v4326 = vadd.f32 %v3110, %v4308
        %v4327 = vadd.f32 %v3117, %v4315
        %v4328 = vadd.f32 %v3124, %v4322
        %v4329 = vld [vmem:[%s4] sm:$0xff]
        %v4330 = vld [vmem:[%s4 + $0x8] sm:$0xff]
        %v4331 = vld [vmem:[%s4 + $0x10] sm:$0xff]
        %v4332 = vld [vmem:[%s4 + $0x18] sm:$0xff]
        %4334 = vset.pattern.permute.xlu0 0
        %4335 = vperm.xlu0 %4334, %v4329
        %v4336 = vpop.permute.xlu0 %4335
        %4339 = vset.pattern.permute.xlu0 0
        %4340 = vperm.xlu0 %4339, %v4330
        %v4341 = vpop.permute.xlu0 %4340
        %4344 = vset.pattern.permute.xlu0 0
        %4345 = vperm.xlu0 %4344, %v4331
        %v4346 = vpop.permute.xlu0 %4345
        %4349 = vset.pattern.permute.xlu0 0
        %4350 = vperm.xlu0 %4349, %v4332
        %v4351 = vpop.permute.xlu0 %4350
        %v4353 = vmul.f32 %v4325, %v4336
        %v4354 = vmul.f32 %v4326, %v4341
        %v4355 = vmul.f32 %v4327, %v4346
        %v4356 = vmul.f32 %v4328, %v4351
        %v4357 = vadd.f32 %v4353, %v4354
        %v4358 = vadd.f32 %v4357, %v4355
        %v4359 = vadd.f32 %v4358, %v4356
        %v4360 = vrot.slane %v4359, 4
        %v4361 = vadd.f32 %v4359, %v4360
        %v4362 = vrot.slane %v4361, 2
        %v4363 = vadd.f32 %v4361, %v4362
        %v4364 = vrot.slane %v4363, 1
        %v4365 = vadd.f32 %v4363, %v4364
        %v4366 = vld [vmem:[%s5] sm:$0x7]
        %4368 = vset.pattern.permute.xlu0 0
        %4369 = vperm.xlu0 %4368, %v4366
        %v4370 = vpop.permute.xlu0 %4369
        %v4372 = vmul.f32 %v392, %v4370
        %v4373 = vadd.f32 %v4365, %v4372
        %v4375 = vrot.slane %v4372, 1
        %v4377 = vadd.f32 %v4373, %v4375
        %v4378 = vrot.slane %v4372, 2
        %v4380 = vadd.f32 %v4377, %v4378
        %v4381 = vld [vmem:[#allocation2] sm:$0x1]
        %4383 = vset.pattern.permute.xlu0 0
        %4384 = vperm.xlu0 %4383, %v4381
        %v4385 = vpop.permute.xlu0 %4384
        %v4387 = vlaneseq
        %v4388 = vshrl.u32 %v4387, 7
        %v4389 = vsub.s32 0, %v4388
        %v4390 = vrot.slane %v4385, %v4389
        %v4391 = vadd.f32 %v4380, %v4390
        %4392 = vst [vmem:[%s387] sm:$0x1] %v4391
        %s4393 = sand.u32 %s204, 1
        %s4394 = scalar_lea.sflag [#allocation5], %s4393
        %s4395 = sand.u32 %s204, 1
        %s4396 = scalar_lea.vmem [#allocation9], %s4395
        // Predicated region
        $region61: #{tpu_custom_call.1} parent=47 // pred_check
          %p4397 = pneg %p214
        $region62: #{tpu_custom_call.1} parent=47 // pred_check_branch
          %4399 = sbr.rel (%p4397) target = $region64
        $region63: #{tpu_custom_call.1} parent=47 // pred_region
          %s4401 = ssub.s32 16, 16
          %4402 = vsyncadd %s4394, %s4401
          %s4403 = smul.addr %s29, 16
          %s4404 = scalar_lea.hbm %s7, %s4403
          %s4406 = sshll.u32 %s4396, 4
          %s4407 = int_to_ptr.vmem [resolvable:$true] %s4406
          %4409 = dma.vmem_to_hbm [thread:$0]  %s4407, 16, %s4404, %s4394
        $region64: #{tpu_custom_call.1} parent=47 // pred_fallthru
          _
      $region48: #{tpu_custom_call.1} parent=5 // pred_fallthru
        _
      %p4410 = scmp.le.s32.totalorder 2, %s24
      // Predicated region
      $region65: #{tpu_custom_call.1} parent=5 // pred_check
        %p4411 = pneg %p4410
      $region66: #{tpu_custom_call.1} parent=5 // pred_check_branch
        %4413 = sbr.rel (%p4411) target = $region68
      $region67: #{tpu_custom_call.1} parent=5 // pred_region
        %s4414 = ssub.s32 %s24, 2
        // Predicated region
        $region69: #{tpu_custom_call.1} parent=67 // pred_check
          %p4415 = pneg %p220
        $region70: #{tpu_custom_call.1} parent=67 // pred_check_branch
          %4417 = sbr.rel (%p4415) target = $region72
        $region71: #{tpu_custom_call.1} parent=67 // pred_region
          %s4418 = sand.u32 %s205, 1
          %s4419 = scalar_lea.sflag [#allocation5], %s4418
          %s4420 = sand.u32 %s205, 1
          %s4421 = scalar_lea.vmem [#allocation9], %s4420
          %4422 = dma.done %s4419, 16
        $region72: #{tpu_custom_call.1} parent=67 // pred_fallthru
          _
      $region68: #{tpu_custom_call.1} parent=5 // pred_fallthru
        _
    $region6: #{tpu_custom_call.1} parent=1 // loop_footer
      %s28 = sadd.s32 1, %s24
    $region7: #{tpu_custom_call.1} parent=1 // loop_footer_branch
      %23 = sbr.rel target = $region3
    $region8: #{tpu_custom_call.1} parent=1 // loop_exit
      _
    %4423 = vsyncpa [#allocation4], 1
    %s4424 = scalar_lea.sflag [#allocation4], 1
    %4425 = vsyncpa %s4424, 1
    %4426 = vsyncpa [#allocation7], 1
    %s4427 = scalar_lea.sflag [#allocation7], 1
    %4428 = vsyncpa %s4427, 1
    %4429 = vsyncpa [#allocation5], 1
    %s4430 = scalar_lea.sflag [#allocation5], 1
    %4431 = vsyncpa %s4430, 1

</llo_original>
